<compile_context>
chip_gen: v6e
topology: v6e:2x2x1
jax: 0.10.0
libtpu: 0.0.40
codegen_flags: <defaults>
</compile_context>

<pallas_src>
import functools

import jax
import jax.numpy as jnp
from jax import lax
from jax.experimental import pallas as pl
from jax.experimental.pallas import tpu as pltpu


def _round_up(n, m):
    return ((n + m - 1) // m) * m


def _lstm2_kernel(xp_ref, wrec_ref, wx2_ref, b2_ref, wp_ref, bp_ref, out_ref,
                  *, is_relu_activ):
    """Single-invocation 2-layer LSTM recurrence + final projection.

    xp_ref:   (T, B, 4Hp)  precomputed x @ Wx1 + b1, time-major
    wrec_ref: (2Hp, 8Hp)   block-diag(Wh1, Wh2), fused recurrent weights
    wx2_ref:  (Hp, 4Hp)    layer-2 input weights (consume fresh h1)
    b2_ref:   (1, 4Hp)
    wp_ref:   (Hp, Cp)     output projection (padded lane-dense)
    bp_ref:   (1, Cp)
    out_ref:  (B, Cp)
    """
    T, B, G = xp_ref.shape          # G = 4 * Hp
    Hp = G // 4

    # Constant operands: loaded once, live across the whole recurrence.
    wrec = wrec_ref[...]            # (2Hp, 8Hp)
    wx2 = wx2_ref[...]              # (Hp, 4Hp)
    b2 = b2_ref[...]                # (1, 4Hp)

    def gates(pre, c):
        # Hp is a multiple of 128 -> every slice is lane-aligned (full vregs).
        g = jnp.tanh(pre[:, 0 * Hp:1 * Hp])
        i = jax.nn.sigmoid(pre[:, 1 * Hp:2 * Hp])
        f = jax.nn.sigmoid(pre[:, 2 * Hp:3 * Hp])
        o = jax.nn.sigmoid(pre[:, 3 * Hp:4 * Hp])
        c_new = g * i + c * f
        h_new = jnp.tanh(c_new) * o
        if is_relu_activ:
            h_new = jnp.maximum(h_new, 0.0)
        return h_new, c_new

    def step(t, carry):
        h1, c1, h2, c2 = carry
        # One fused MXU push for both recurrent contributions (old h1, old h2).
        hh = jnp.concatenate([h1, h2], axis=1)                          # (B, 2Hp)
        rec = jnp.dot(hh, wrec, preferred_element_type=jnp.float32)     # (B, 8Hp)
        # Layer 1: input projection was hoisted out of the loop (xp_ref).
        pre1 = xp_ref[t] + rec[:, :G]
        h1, c1 = gates(pre1, c1)
        # Layer 2: needs the fresh h1, so this matmul stays in the serial path.
        pre2 = (jnp.dot(h1, wx2, preferred_element_type=jnp.float32)
                + rec[:, G:] + b2)
        h2, c2 = gates(pre2, c2)
        return h1, c1, h2, c2

    z = jnp.zeros((B, Hp), jnp.float32)
    _, _, h2, _ = lax.fori_loop(0, T, step, (z, z, z, z), unroll=True)

    # Lane-dense (B, Cp) output; wrapper slices back to (B, C).
    out_ref[...] = (jnp.dot(h2, wp_ref[...], preferred_element_type=jnp.float32)
                    + bp_ref[...])


def lstm_mnist_2layers_forward(x, params, *, is_relu_activ=False):
    """x: (B, T, I) float32.  Returns logits (B, num_classes)."""
    B, T, I = x.shape
    H = params["Wgh1"].shape[0]
    C = params["Wph"].shape[1]
    Hp = _round_up(H, 128)          # lane-align hidden size (zero-padded, exact)
    Cp = _round_up(C, 128)          # lane-dense output

    gate_order = ("g", "i", "f", "o")

    def pad2(w, rows, cols):
        return jnp.pad(w, ((0, rows - w.shape[0]), (0, cols - w.shape[1])))

    def fuse_w(names, rows):
        return jnp.concatenate([pad2(params[n], rows, Hp) for n in names], axis=1)

    def fuse_b(names):
        return jnp.concatenate(
            [jnp.pad(params[n], (0, Hp - H)) for n in names])[None, :]

    wx1 = fuse_w([f"W{g}x1" for g in gate_order], I)       # (I, 4Hp)
    wh1 = fuse_w([f"W{g}h1" for g in gate_order], Hp)      # (Hp, 4Hp)
    b1 = fuse_b([f"b{g}1" for g in gate_order])            # (1, 4Hp)
    wx2 = fuse_w([f"W{g}x2" for g in gate_order], Hp)      # (Hp, 4Hp)
    wh2 = fuse_w([f"W{g}h2" for g in gate_order], Hp)      # (Hp, 4Hp)
    b2 = fuse_b([f"b{g}2" for g in gate_order])            # (1, 4Hp)

    # Block-diagonal fused recurrent weight: [h1|h2] @ w_rec -> [pre1_rec|pre2_rec].
    zero = jnp.zeros((Hp, 4 * Hp), jnp.float32)
    w_rec = jnp.concatenate(
        [jnp.concatenate([wh1, zero], axis=1),
         jnp.concatenate([zero, wh2], axis=1)], axis=0)     # (2Hp, 8Hp)

    wp = jnp.pad(params["Wph"], ((0, Hp - H), (0, Cp - C)))  # (Hp, Cp)
    bp = jnp.pad(params["bp"], (0, Cp - C))[None, :]         # (1, Cp)

    # Hoisted, batched input projection (one big matmul in plain XLA), with b1
    # folded in so nothing bias-related remains in the per-timestep path.
    x_tm = jnp.transpose(x, (1, 0, 2))                        # (T, B, I)
    xp = jnp.einsum("tbi,ih->tbh", x_tm, wx1,
                    preferred_element_type=jnp.float32) + b1  # (T, B, 4Hp)

    kernel = functools.partial(_lstm2_kernel, is_relu_activ=is_relu_activ)
    vmem = pl.BlockSpec(memory_space=pltpu.MemorySpace.VMEM)

    out = pl.pallas_call(
        kernel,
        out_shape=jax.ShapeDtypeStruct((B, Cp), jnp.float32),
        in_specs=[vmem] * 6,
        out_specs=vmem,
    )(xp, w_rec, wx2, b2, wp, bp)
    return out[:, :C]


def init_params(key, input_size, hidden_size, num_classes):
    """Deterministic init matching reset_parameters: U(-1/sqrt(H), 1/sqrt(H))."""
    stdv = 1.0 / jnp.sqrt(jnp.float32(hidden_size))
    names_shapes = [
        ("Wgx1", (input_size, hidden_size)), ("Wgh1", (hidden_size, hidden_size)), ("bg1", (hidden_size,)),
        ("Wix1", (input_size, hidden_size)), ("Wih1", (hidden_size, hidden_size)), ("bi1", (hidden_size,)),
        ("Wfx1", (input_size, hidden_size)), ("Wfh1", (hidden_size, hidden_size)), ("bf1", (hidden_size,)),
        ("Wox1", (input_size, hidden_size)), ("Woh1", (hidden_size, hidden_size)), ("bo1", (hidden_size,)),
        ("Wgx2", (hidden_size, hidden_size)), ("Wgh2", (hidden_size, hidden_size)), ("bg2", (hidden_size,)),
        ("Wix2", (hidden_size, hidden_size)), ("Wih2", (hidden_size, hidden_size)), ("bi2", (hidden_size,)),
        ("Wfx2", (hidden_size, hidden_size)), ("Wfh2", (hidden_size, hidden_size)), ("bf2", (hidden_size,)),
        ("Wox2", (hidden_size, hidden_size)), ("Woh2", (hidden_size, hidden_size)), ("bo2", (hidden_size,)),
        ("Wph", (hidden_size, num_classes)), ("bp", (num_classes,)),
    ]
    params = {}
    keys = jax.random.split(key, len(names_shapes))
    for k, (name, shape) in zip(keys, names_shapes):
        params[name] = jax.random.uniform(k, shape, jnp.float32,
                                          minval=-stdv, maxval=stdv)
    return params


def reference_forward(x, p, *, is_relu_activ=False):
    """Pure-JAX reference mirroring the PyTorch forward literally."""
    B = x.shape[0]
    H = p["Wgh1"].shape[0]
    x_tm = jnp.transpose(x, (1, 0, 2))
    h1 = jnp.zeros((B, H), jnp.float32)
    h2 = jnp.zeros((B, H), jnp.float32)
    c1 = jnp.zeros((B, H), jnp.float32)
    c2 = jnp.zeros((B, H), jnp.float32)
    for x_step in x_tm:
        g = jnp.tanh(x_step @ p["Wgx1"] + h1 @ p["Wgh1"] + p["bg1"])
        i = jax.nn.sigmoid(x_step @ p["Wix1"] + h1 @ p["Wih1"] + p["bi1"])
        f = jax.nn.sigmoid(x_step @ p["Wfx1"] + h1 @ p["Wfh1"] + p["bf1"])
        o = jax.nn.sigmoid(x_step @ p["Wox1"] + h1 @ p["Woh1"] + p["bo1"])
        c1 = g * i + c1 * f
        h1 = jnp.tanh(c1) * o
        if is_relu_activ:
            h1 = jax.nn.relu(h1)
        g = jnp.tanh(h1 @ p["Wgx2"] + h2 @ p["Wgh2"] + p["bg2"])
        i = jax.nn.sigmoid(h1 @ p["Wix2"] + h2 @ p["Wih2"] + p["bi2"])
        f = jax.nn.sigmoid(h1 @ p["Wfx2"] + h2 @ p["Wfh2"] + p["bf2"])
        o = jax.nn.sigmoid(h1 @ p["Wox2"] + h2 @ p["Woh2"] + p["bo2"])
        c2 = g * i + c2 * f
        h2 = jnp.tanh(c2) * o
        if is_relu_activ:
            h2 = jax.nn.relu(h2)
    return h2 @ p["Wph"] + p["bp"]


if __name__ == "__main__":
    # Small MNIST-row-like setup: batch=8, seq=8 rows, input_size=16, hidden=32, 10 classes.
    B, T, I, H, C = 8, 8, 16, 32, 10

    key = jax.random.PRNGKey(0)
    kx, kp = jax.random.split(key)
    x = jax.random.normal(kx, (B, T, I), jnp.float32)
    params = init_params(kp, I, H, C)

    out = lstm_mnist_2layers_forward(x, params, is_relu_activ=False)
    out = jax.block_until_ready(out)

    ref = reference_forward(x, params, is_relu_activ=False)
    assert out.shape == (B, C)
    assert jnp.allclose(out, ref, atol=2e-5, rtol=2e-5), (
        f"max abs err {jnp.max(jnp.abs(out - ref))}")

    print("KERNEL_OK")
</pallas_src>

<mosaic_0001>
module attributes {stable_mosaic.version = 11 : i64} {
  func.func @_lstm2_kernel(%arg0: memref<8x8x512xf32, #tpu.memory_space<vmem>>, %arg1: memref<256x1024xf32, #tpu.memory_space<vmem>>, %arg2: memref<128x512xf32, #tpu.memory_space<vmem>>, %arg3: memref<1x512xf32, #tpu.memory_space<vmem>>, %arg4: memref<128x128xf32, #tpu.memory_space<vmem>>, %arg5: memref<1x128xf32, #tpu.memory_space<vmem>>, %arg6: memref<8x128xf32, #tpu.memory_space<vmem>>) attributes {dimension_semantics = [], scalar_prefetch = 0 : i64, scratch_operands = 0 : i64, tpu.core_type = #tpu.core_type<tc>} {
    %c0 = arith.constant 0 : index
    %c0_0 = arith.constant 0 : index
    %0 = vector.load %arg1[%c0, %c0_0] : memref<256x1024xf32, #tpu.memory_space<vmem>>, vector<256x1024xf32>
    %c0_1 = arith.constant 0 : index
    %c0_2 = arith.constant 0 : index
    %1 = vector.load %arg2[%c0_1, %c0_2] : memref<128x512xf32, #tpu.memory_space<vmem>>, vector<128x512xf32>
    %c0_3 = arith.constant 0 : index
    %c0_4 = arith.constant 0 : index
    %2 = vector.load %arg3[%c0_3, %c0_4] : memref<1x512xf32, #tpu.memory_space<vmem>>, vector<1x512xf32>
    %cst = arith.constant 0.000000e+00 : f32
    %3 = vector.broadcast %cst : f32 to vector<8x128xf32>
    %c0_i32 = arith.constant 0 : i32
    %4 = tpu.concatenate %3, %3 in 1 : vector<8x128xf32>, vector<8x128xf32> -> vector<8x256xf32>
    %cst_5 = arith.constant dense<0.000000e+00> : vector<8x1024xf32>
    %5 = tpu.matmul %4, %0, %cst_5 {dimension_numbers = #tpu.dot_dimension_numbers<[1], [0], [0], [1], [0, 0, 1, 1], [], []>} : vector<8x256xf32>, vector<256x1024xf32>, vector<8x1024xf32> -> vector<8x1024xf32>
    %6 = arith.index_cast %c0_i32 : i32 to index
    %c0_6 = arith.constant 0 : index
    %c0_7 = arith.constant 0 : index
    %7 = vector.load %arg0[%6, %c0_6, %c0_7] : memref<8x8x512xf32, #tpu.memory_space<vmem>>, vector<1x8x512xf32>
    %8 = vector.shape_cast %7 : vector<1x8x512xf32> to vector<8x512xf32>
    %9 = vector.extract_strided_slice %5 {offsets = [0, 0], sizes = [8, 512], strides = [1, 1]} : vector<8x1024xf32> to vector<8x512xf32>
    %10 = arith.addf %8, %9 : vector<8x512xf32>
    %11 = vector.extract_strided_slice %10 {offsets = [0, 0], sizes = [8, 128], strides = [1, 1]} : vector<8x512xf32> to vector<8x128xf32>
    %12 = math.tanh %11 : vector<8x128xf32>
    %13 = vector.extract_strided_slice %10 {offsets = [0, 128], sizes = [8, 128], strides = [1, 1]} : vector<8x512xf32> to vector<8x128xf32>
    %14 = arith.negf %13 : vector<8x128xf32>
    %15 = math.exp %14 : vector<8x128xf32>
    %cst_8 = arith.constant 1.000000e+00 : f32
    %16 = vector.broadcast %cst_8 : f32 to vector<8x128xf32>
    %17 = arith.addf %16, %15 : vector<8x128xf32>
    %18 = arith.divf %16, %17 : vector<8x128xf32>
    %19 = vector.extract_strided_slice %10 {offsets = [0, 256], sizes = [8, 128], strides = [1, 1]} : vector<8x512xf32> to vector<8x128xf32>
    %20 = arith.negf %19 : vector<8x128xf32>
    %21 = math.exp %20 : vector<8x128xf32>
    %cst_9 = arith.constant 1.000000e+00 : f32
    %22 = vector.broadcast %cst_9 : f32 to vector<8x128xf32>
    %23 = arith.addf %22, %21 : vector<8x128xf32>
    %24 = arith.divf %22, %23 : vector<8x128xf32>
    %25 = vector.extract_strided_slice %10 {offsets = [0, 384], sizes = [8, 128], strides = [1, 1]} : vector<8x512xf32> to vector<8x128xf32>
    %26 = arith.negf %25 : vector<8x128xf32>
    %27 = math.exp %26 : vector<8x128xf32>
    %cst_10 = arith.constant 1.000000e+00 : f32
    %28 = vector.broadcast %cst_10 : f32 to vector<8x128xf32>
    %29 = arith.addf %28, %27 : vector<8x128xf32>
    %30 = arith.divf %28, %29 : vector<8x128xf32>
    %31 = arith.mulf %12, %18 : vector<8x128xf32>
    %32 = arith.mulf %3, %24 : vector<8x128xf32>
    %33 = arith.addf %31, %32 : vector<8x128xf32>
    %34 = math.tanh %33 : vector<8x128xf32>
    %35 = arith.mulf %34, %30 : vector<8x128xf32>
    %cst_11 = arith.constant dense<0.000000e+00> : vector<8x512xf32>
    %36 = tpu.matmul %35, %1, %cst_11 {dimension_numbers = #tpu.dot_dimension_numbers<[1], [0], [0], [1], [0, 0, 1, 1], [], []>} : vector<8x128xf32>, vector<128x512xf32>, vector<8x512xf32> -> vector<8x512xf32>
    %37 = vector.extract_strided_slice %5 {offsets = [0, 512], sizes = [8, 512], strides = [1, 1]} : vector<8x1024xf32> to vector<8x512xf32>
    %38 = arith.addf %36, %37 : vector<8x512xf32>
    %39 = vector.broadcast %2 : vector<1x512xf32> to vector<8x512xf32>
    %40 = arith.addf %38, %39 : vector<8x512xf32>
    %41 = vector.extract_strided_slice %40 {offsets = [0, 0], sizes = [8, 128], strides = [1, 1]} : vector<8x512xf32> to vector<8x128xf32>
    %42 = math.tanh %41 : vector<8x128xf32>
    %43 = vector.extract_strided_slice %40 {offsets = [0, 128], sizes = [8, 128], strides = [1, 1]} : vector<8x512xf32> to vector<8x128xf32>
    %44 = arith.negf %43 : vector<8x128xf32>
    %45 = math.exp %44 : vector<8x128xf32>
    %cst_12 = arith.constant 1.000000e+00 : f32
    %46 = vector.broadcast %cst_12 : f32 to vector<8x128xf32>
    %47 = arith.addf %46, %45 : vector<8x128xf32>
    %48 = arith.divf %46, %47 : vector<8x128xf32>
    %49 = vector.extract_strided_slice %40 {offsets = [0, 256], sizes = [8, 128], strides = [1, 1]} : vector<8x512xf32> to vector<8x128xf32>
    %50 = arith.negf %49 : vector<8x128xf32>
    %51 = math.exp %50 : vector<8x128xf32>
    %cst_13 = arith.constant 1.000000e+00 : f32
    %52 = vector.broadcast %cst_13 : f32 to vector<8x128xf32>
    %53 = arith.addf %52, %51 : vector<8x128xf32>
    %54 = arith.divf %52, %53 : vector<8x128xf32>
    %55 = vector.extract_strided_slice %40 {offsets = [0, 384], sizes = [8, 128], strides = [1, 1]} : vector<8x512xf32> to vector<8x128xf32>
    %56 = arith.negf %55 : vector<8x128xf32>
    %57 = math.exp %56 : vector<8x128xf32>
    %cst_14 = arith.constant 1.000000e+00 : f32
    %58 = vector.broadcast %cst_14 : f32 to vector<8x128xf32>
    %59 = arith.addf %58, %57 : vector<8x128xf32>
    %60 = arith.divf %58, %59 : vector<8x128xf32>
    %61 = arith.mulf %42, %48 : vector<8x128xf32>
    %62 = arith.mulf %3, %54 : vector<8x128xf32>
    %63 = arith.addf %61, %62 : vector<8x128xf32>
    %64 = math.tanh %63 : vector<8x128xf32>
    %65 = arith.mulf %64, %60 : vector<8x128xf32>
    %c1_i32 = arith.constant 1 : i32
    %66 = tpu.concatenate %35, %65 in 1 : vector<8x128xf32>, vector<8x128xf32> -> vector<8x256xf32>
    %cst_15 = arith.constant dense<0.000000e+00> : vector<8x1024xf32>
    %67 = tpu.matmul %66, %0, %cst_15 {dimension_numbers = #tpu.dot_dimension_numbers<[1], [0], [0], [1], [0, 0, 1, 1], [], []>} : vector<8x256xf32>, vector<256x1024xf32>, vector<8x1024xf32> -> vector<8x1024xf32>
    %68 = arith.index_cast %c1_i32 : i32 to index
    %c0_16 = arith.constant 0 : index
    %c0_17 = arith.constant 0 : index
    %69 = vector.load %arg0[%68, %c0_16, %c0_17] : memref<8x8x512xf32, #tpu.memory_space<vmem>>, vector<1x8x512xf32>
    %70 = vector.shape_cast %69 : vector<1x8x512xf32> to vector<8x512xf32>
    %71 = vector.extract_strided_slice %67 {offsets = [0, 0], sizes = [8, 512], strides = [1, 1]} : vector<8x1024xf32> to vector<8x512xf32>
    %72 = arith.addf %70, %71 : vector<8x512xf32>
    %73 = vector.extract_strided_slice %72 {offsets = [0, 0], sizes = [8, 128], strides = [1, 1]} : vector<8x512xf32> to vector<8x128xf32>
    %74 = math.tanh %73 : vector<8x128xf32>
    %75 = vector.extract_strided_slice %72 {offsets = [0, 128], sizes = [8, 128], strides = [1, 1]} : vector<8x512xf32> to vector<8x128xf32>
    %76 = arith.negf %75 : vector<8x128xf32>
    %77 = math.exp %76 : vector<8x128xf32>
    %cst_18 = arith.constant 1.000000e+00 : f32
    %78 = vector.broadcast %cst_18 : f32 to vector<8x128xf32>
    %79 = arith.addf %78, %77 : vector<8x128xf32>
    %80 = arith.divf %78, %79 : vector<8x128xf32>
    %81 = vector.extract_strided_slice %72 {offsets = [0, 256], sizes = [8, 128], strides = [1, 1]} : vector<8x512xf32> to vector<8x128xf32>
    %82 = arith.negf %81 : vector<8x128xf32>
    %83 = math.exp %82 : vector<8x128xf32>
    %cst_19 = arith.constant 1.000000e+00 : f32
    %84 = vector.broadcast %cst_19 : f32 to vector<8x128xf32>
    %85 = arith.addf %84, %83 : vector<8x128xf32>
    %86 = arith.divf %84, %85 : vector<8x128xf32>
    %87 = vector.extract_strided_slice %72 {offsets = [0, 384], sizes = [8, 128], strides = [1, 1]} : vector<8x512xf32> to vector<8x128xf32>
    %88 = arith.negf %87 : vector<8x128xf32>
    %89 = math.exp %88 : vector<8x128xf32>
    %cst_20 = arith.constant 1.000000e+00 : f32
    %90 = vector.broadcast %cst_20 : f32 to vector<8x128xf32>
    %91 = arith.addf %90, %89 : vector<8x128xf32>
    %92 = arith.divf %90, %91 : vector<8x128xf32>
    %93 = arith.mulf %74, %80 : vector<8x128xf32>
    %94 = arith.mulf %33, %86 : vector<8x128xf32>
    %95 = arith.addf %93, %94 : vector<8x128xf32>
    %96 = math.tanh %95 : vector<8x128xf32>
    %97 = arith.mulf %96, %92 : vector<8x128xf32>
    %cst_21 = arith.constant dense<0.000000e+00> : vector<8x512xf32>
    %98 = tpu.matmul %97, %1, %cst_21 {dimension_numbers = #tpu.dot_dimension_numbers<[1], [0], [0], [1], [0, 0, 1, 1], [], []>} : vector<8x128xf32>, vector<128x512xf32>, vector<8x512xf32> -> vector<8x512xf32>
    %99 = vector.extract_strided_slice %67 {offsets = [0, 512], sizes = [8, 512], strides = [1, 1]} : vector<8x1024xf32> to vector<8x512xf32>
    %100 = arith.addf %98, %99 : vector<8x512xf32>
    %101 = vector.broadcast %2 : vector<1x512xf32> to vector<8x512xf32>
    %102 = arith.addf %100, %101 : vector<8x512xf32>
    %103 = vector.extract_strided_slice %102 {offsets = [0, 0], sizes = [8, 128], strides = [1, 1]} : vector<8x512xf32> to vector<8x128xf32>
    %104 = math.tanh %103 : vector<8x128xf32>
    %105 = vector.extract_strided_slice %102 {offsets = [0, 128], sizes = [8, 128], strides = [1, 1]} : vector<8x512xf32> to vector<8x128xf32>
    %106 = arith.negf %105 : vector<8x128xf32>
    %107 = math.exp %106 : vector<8x128xf32>
    %cst_22 = arith.constant 1.000000e+00 : f32
    %108 = vector.broadcast %cst_22 : f32 to vector<8x128xf32>
    %109 = arith.addf %108, %107 : vector<8x128xf32>
    %110 = arith.divf %108, %109 : vector<8x128xf32>
    %111 = vector.extract_strided_slice %102 {offsets = [0, 256], sizes = [8, 128], strides = [1, 1]} : vector<8x512xf32> to vector<8x128xf32>
    %112 = arith.negf %111 : vector<8x128xf32>
    %113 = math.exp %112 : vector<8x128xf32>
    %cst_23 = arith.constant 1.000000e+00 : f32
    %114 = vector.broadcast %cst_23 : f32 to vector<8x128xf32>
    %115 = arith.addf %114, %113 : vector<8x128xf32>
    %116 = arith.divf %114, %115 : vector<8x128xf32>
    %117 = vector.extract_strided_slice %102 {offsets = [0, 384], sizes = [8, 128], strides = [1, 1]} : vector<8x512xf32> to vector<8x128xf32>
    %118 = arith.negf %117 : vector<8x128xf32>
    %119 = math.exp %118 : vector<8x128xf32>
    %cst_24 = arith.constant 1.000000e+00 : f32
    %120 = vector.broadcast %cst_24 : f32 to vector<8x128xf32>
    %121 = arith.addf %120, %119 : vector<8x128xf32>
    %122 = arith.divf %120, %121 : vector<8x128xf32>
    %123 = arith.mulf %104, %110 : vector<8x128xf32>
    %124 = arith.mulf %63, %116 : vector<8x128xf32>
    %125 = arith.addf %123, %124 : vector<8x128xf32>
    %126 = math.tanh %125 : vector<8x128xf32>
    %127 = arith.mulf %126, %122 : vector<8x128xf32>
    %c2_i32 = arith.constant 2 : i32
    %128 = tpu.concatenate %97, %127 in 1 : vector<8x128xf32>, vector<8x128xf32> -> vector<8x256xf32>
    %cst_25 = arith.constant dense<0.000000e+00> : vector<8x1024xf32>
    %129 = tpu.matmul %128, %0, %cst_25 {dimension_numbers = #tpu.dot_dimension_numbers<[1], [0], [0], [1], [0, 0, 1, 1], [], []>} : vector<8x256xf32>, vector<256x1024xf32>, vector<8x1024xf32> -> vector<8x1024xf32>
    %130 = arith.index_cast %c2_i32 : i32 to index
    %c0_26 = arith.constant 0 : index
    %c0_27 = arith.constant 0 : index
    %131 = vector.load %arg0[%130, %c0_26, %c0_27] : memref<8x8x512xf32, #tpu.memory_space<vmem>>, vector<1x8x512xf32>
    %132 = vector.shape_cast %131 : vector<1x8x512xf32> to vector<8x512xf32>
    %133 = vector.extract_strided_slice %129 {offsets = [0, 0], sizes = [8, 512], strides = [1, 1]} : vector<8x1024xf32> to vector<8x512xf32>
    %134 = arith.addf %132, %133 : vector<8x512xf32>
    %135 = vector.extract_strided_slice %134 {offsets = [0, 0], sizes = [8, 128], strides = [1, 1]} : vector<8x512xf32> to vector<8x128xf32>
    %136 = math.tanh %135 : vector<8x128xf32>
    %137 = vector.extract_strided_slice %134 {offsets = [0, 128], sizes = [8, 128], strides = [1, 1]} : vector<8x512xf32> to vector<8x128xf32>
    %138 = arith.negf %137 : vector<8x128xf32>
    %139 = math.exp %138 : vector<8x128xf32>
    %cst_28 = arith.constant 1.000000e+00 : f32
    %140 = vector.broadcast %cst_28 : f32 to vector<8x128xf32>
    %141 = arith.addf %140, %139 : vector<8x128xf32>
    %142 = arith.divf %140, %141 : vector<8x128xf32>
    %143 = vector.extract_strided_slice %134 {offsets = [0, 256], sizes = [8, 128], strides = [1, 1]} : vector<8x512xf32> to vector<8x128xf32>
    %144 = arith.negf %143 : vector<8x128xf32>
    %145 = math.exp %144 : vector<8x128xf32>
    %cst_29 = arith.constant 1.000000e+00 : f32
    %146 = vector.broadcast %cst_29 : f32 to vector<8x128xf32>
    %147 = arith.addf %146, %145 : vector<8x128xf32>
    %148 = arith.divf %146, %147 : vector<8x128xf32>
    %149 = vector.extract_strided_slice %134 {offsets = [0, 384], sizes = [8, 128], strides = [1, 1]} : vector<8x512xf32> to vector<8x128xf32>
    %150 = arith.negf %149 : vector<8x128xf32>
    %151 = math.exp %150 : vector<8x128xf32>
    %cst_30 = arith.constant 1.000000e+00 : f32
    %152 = vector.broadcast %cst_30 : f32 to vector<8x128xf32>
    %153 = arith.addf %152, %151 : vector<8x128xf32>
    %154 = arith.divf %152, %153 : vector<8x128xf32>
    %155 = arith.mulf %136, %142 : vector<8x128xf32>
    %156 = arith.mulf %95, %148 : vector<8x128xf32>
    %157 = arith.addf %155, %156 : vector<8x128xf32>
    %158 = math.tanh %157 : vector<8x128xf32>
    %159 = arith.mulf %158, %154 : vector<8x128xf32>
    %cst_31 = arith.constant dense<0.000000e+00> : vector<8x512xf32>
    %160 = tpu.matmul %159, %1, %cst_31 {dimension_numbers = #tpu.dot_dimension_numbers<[1], [0], [0], [1], [0, 0, 1, 1], [], []>} : vector<8x128xf32>, vector<128x512xf32>, vector<8x512xf32> -> vector<8x512xf32>
    %161 = vector.extract_strided_slice %129 {offsets = [0, 512], sizes = [8, 512], strides = [1, 1]} : vector<8x1024xf32> to vector<8x512xf32>
    %162 = arith.addf %160, %161 : vector<8x512xf32>
    %163 = vector.broadcast %2 : vector<1x512xf32> to vector<8x512xf32>
    %164 = arith.addf %162, %163 : vector<8x512xf32>
    %165 = vector.extract_strided_slice %164 {offsets = [0, 0], sizes = [8, 128], strides = [1, 1]} : vector<8x512xf32> to vector<8x128xf32>
    %166 = math.tanh %165 : vector<8x128xf32>
    %167 = vector.extract_strided_slice %164 {offsets = [0, 128], sizes = [8, 128], strides = [1, 1]} : vector<8x512xf32> to vector<8x128xf32>
    %168 = arith.negf %167 : vector<8x128xf32>
    %169 = math.exp %168 : vector<8x128xf32>
    %cst_32 = arith.constant 1.000000e+00 : f32
    %170 = vector.broadcast %cst_32 : f32 to vector<8x128xf32>
    %171 = arith.addf %170, %169 : vector<8x128xf32>
    %172 = arith.divf %170, %171 : vector<8x128xf32>
    %173 = vector.extract_strided_slice %164 {offsets = [0, 256], sizes = [8, 128], strides = [1, 1]} : vector<8x512xf32> to vector<8x128xf32>
    %174 = arith.negf %173 : vector<8x128xf32>
    %175 = math.exp %174 : vector<8x128xf32>
    %cst_33 = arith.constant 1.000000e+00 : f32
    %176 = vector.broadcast %cst_33 : f32 to vector<8x128xf32>
    %177 = arith.addf %176, %175 : vector<8x128xf32>
    %178 = arith.divf %176, %177 : vector<8x128xf32>
    %179 = vector.extract_strided_slice %164 {offsets = [0, 384], sizes = [8, 128], strides = [1, 1]} : vector<8x512xf32> to vector<8x128xf32>
    %180 = arith.negf %179 : vector<8x128xf32>
    %181 = math.exp %180 : vector<8x128xf32>
    %cst_34 = arith.constant 1.000000e+00 : f32
    %182 = vector.broadcast %cst_34 : f32 to vector<8x128xf32>
    %183 = arith.addf %182, %181 : vector<8x128xf32>
    %184 = arith.divf %182, %183 : vector<8x128xf32>
    %185 = arith.mulf %166, %172 : vector<8x128xf32>
    %186 = arith.mulf %125, %178 : vector<8x128xf32>
    %187 = arith.addf %185, %186 : vector<8x128xf32>
    %188 = math.tanh %187 : vector<8x128xf32>
    %189 = arith.mulf %188, %184 : vector<8x128xf32>
    %c3_i32 = arith.constant 3 : i32
    %190 = tpu.concatenate %159, %189 in 1 : vector<8x128xf32>, vector<8x128xf32> -> vector<8x256xf32>
    %cst_35 = arith.constant dense<0.000000e+00> : vector<8x1024xf32>
    %191 = tpu.matmul %190, %0, %cst_35 {dimension_numbers = #tpu.dot_dimension_numbers<[1], [0], [0], [1], [0, 0, 1, 1], [], []>} : vector<8x256xf32>, vector<256x1024xf32>, vector<8x1024xf32> -> vector<8x1024xf32>
    %192 = arith.index_cast %c3_i32 : i32 to index
    %c0_36 = arith.constant 0 : index
    %c0_37 = arith.constant 0 : index
    %193 = vector.load %arg0[%192, %c0_36, %c0_37] : memref<8x8x512xf32, #tpu.memory_space<vmem>>, vector<1x8x512xf32>
    %194 = vector.shape_cast %193 : vector<1x8x512xf32> to vector<8x512xf32>
    %195 = vector.extract_strided_slice %191 {offsets = [0, 0], sizes = [8, 512], strides = [1, 1]} : vector<8x1024xf32> to vector<8x512xf32>
    %196 = arith.addf %194, %195 : vector<8x512xf32>
    %197 = vector.extract_strided_slice %196 {offsets = [0, 0], sizes = [8, 128], strides = [1, 1]} : vector<8x512xf32> to vector<8x128xf32>
    %198 = math.tanh %197 : vector<8x128xf32>
    %199 = vector.extract_strided_slice %196 {offsets = [0, 128], sizes = [8, 128], strides = [1, 1]} : vector<8x512xf32> to vector<8x128xf32>
    %200 = arith.negf %199 : vector<8x128xf32>
    %201 = math.exp %200 : vector<8x128xf32>
    %cst_38 = arith.constant 1.000000e+00 : f32
    %202 = vector.broadcast %cst_38 : f32 to vector<8x128xf32>
    %203 = arith.addf %202, %201 : vector<8x128xf32>
    %204 = arith.divf %202, %203 : vector<8x128xf32>
    %205 = vector.extract_strided_slice %196 {offsets = [0, 256], sizes = [8, 128], strides = [1, 1]} : vector<8x512xf32> to vector<8x128xf32>
    %206 = arith.negf %205 : vector<8x128xf32>
    %207 = math.exp %206 : vector<8x128xf32>
    %cst_39 = arith.constant 1.000000e+00 : f32
    %208 = vector.broadcast %cst_39 : f32 to vector<8x128xf32>
    %209 = arith.addf %208, %207 : vector<8x128xf32>
    %210 = arith.divf %208, %209 : vector<8x128xf32>
    %211 = vector.extract_strided_slice %196 {offsets = [0, 384], sizes = [8, 128], strides = [1, 1]} : vector<8x512xf32> to vector<8x128xf32>
    %212 = arith.negf %211 : vector<8x128xf32>
    %213 = math.exp %212 : vector<8x128xf32>
    %cst_40 = arith.constant 1.000000e+00 : f32
    %214 = vector.broadcast %cst_40 : f32 to vector<8x128xf32>
    %215 = arith.addf %214, %213 : vector<8x128xf32>
    %216 = arith.divf %214, %215 : vector<8x128xf32>
    %217 = arith.mulf %198, %204 : vector<8x128xf32>
    %218 = arith.mulf %157, %210 : vector<8x128xf32>
    %219 = arith.addf %217, %218 : vector<8x128xf32>
    %220 = math.tanh %219 : vector<8x128xf32>
    %221 = arith.mulf %220, %216 : vector<8x128xf32>
    %cst_41 = arith.constant dense<0.000000e+00> : vector<8x512xf32>
    %222 = tpu.matmul %221, %1, %cst_41 {dimension_numbers = #tpu.dot_dimension_numbers<[1], [0], [0], [1], [0, 0, 1, 1], [], []>} : vector<8x128xf32>, vector<128x512xf32>, vector<8x512xf32> -> vector<8x512xf32>
    %223 = vector.extract_strided_slice %191 {offsets = [0, 512], sizes = [8, 512], strides = [1, 1]} : vector<8x1024xf32> to vector<8x512xf32>
    %224 = arith.addf %222, %223 : vector<8x512xf32>
    %225 = vector.broadcast %2 : vector<1x512xf32> to vector<8x512xf32>
    %226 = arith.addf %224, %225 : vector<8x512xf32>
    %227 = vector.extract_strided_slice %226 {offsets = [0, 0], sizes = [8, 128], strides = [1, 1]} : vector<8x512xf32> to vector<8x128xf32>
    %228 = math.tanh %227 : vector<8x128xf32>
    %229 = vector.extract_strided_slice %226 {offsets = [0, 128], sizes = [8, 128], strides = [1, 1]} : vector<8x512xf32> to vector<8x128xf32>
    %230 = arith.negf %229 : vector<8x128xf32>
    %231 = math.exp %230 : vector<8x128xf32>
    %cst_42 = arith.constant 1.000000e+00 : f32
    %232 = vector.broadcast %cst_42 : f32 to vector<8x128xf32>
    %233 = arith.addf %232, %231 : vector<8x128xf32>
    %234 = arith.divf %232, %233 : vector<8x128xf32>
    %235 = vector.extract_strided_slice %226 {offsets = [0, 256], sizes = [8, 128], strides = [1, 1]} : vector<8x512xf32> to vector<8x128xf32>
    %236 = arith.negf %235 : vector<8x128xf32>
    %237 = math.exp %236 : vector<8x128xf32>
    %cst_43 = arith.constant 1.000000e+00 : f32
    %238 = vector.broadcast %cst_43 : f32 to vector<8x128xf32>
    %239 = arith.addf %238, %237 : vector<8x128xf32>
    %240 = arith.divf %238, %239 : vector<8x128xf32>
    %241 = vector.extract_strided_slice %226 {offsets = [0, 384], sizes = [8, 128], strides = [1, 1]} : vector<8x512xf32> to vector<8x128xf32>
    %242 = arith.negf %241 : vector<8x128xf32>
    %243 = math.exp %242 : vector<8x128xf32>
    %cst_44 = arith.constant 1.000000e+00 : f32
    %244 = vector.broadcast %cst_44 : f32 to vector<8x128xf32>
    %245 = arith.addf %244, %243 : vector<8x128xf32>
    %246 = arith.divf %244, %245 : vector<8x128xf32>
    %247 = arith.mulf %228, %234 : vector<8x128xf32>
    %248 = arith.mulf %187, %240 : vector<8x128xf32>
    %249 = arith.addf %247, %248 : vector<8x128xf32>
    %250 = math.tanh %249 : vector<8x128xf32>
    %251 = arith.mulf %250, %246 : vector<8x128xf32>
    %c4_i32 = arith.constant 4 : i32
    %252 = tpu.concatenate %221, %251 in 1 : vector<8x128xf32>, vector<8x128xf32> -> vector<8x256xf32>
    %cst_45 = arith.constant dense<0.000000e+00> : vector<8x1024xf32>
    %253 = tpu.matmul %252, %0, %cst_45 {dimension_numbers = #tpu.dot_dimension_numbers<[1], [0], [0], [1], [0, 0, 1, 1], [], []>} : vector<8x256xf32>, vector<256x1024xf32>, vector<8x1024xf32> -> vector<8x1024xf32>
    %254 = arith.index_cast %c4_i32 : i32 to index
    %c0_46 = arith.constant 0 : index
    %c0_47 = arith.constant 0 : index
    %255 = vector.load %arg0[%254, %c0_46, %c0_47] : memref<8x8x512xf32, #tpu.memory_space<vmem>>, vector<1x8x512xf32>
    %256 = vector.shape_cast %255 : vector<1x8x512xf32> to vector<8x512xf32>
    %257 = vector.extract_strided_slice %253 {offsets = [0, 0], sizes = [8, 512], strides = [1, 1]} : vector<8x1024xf32> to vector<8x512xf32>
    %258 = arith.addf %256, %257 : vector<8x512xf32>
    %259 = vector.extract_strided_slice %258 {offsets = [0, 0], sizes = [8, 128], strides = [1, 1]} : vector<8x512xf32> to vector<8x128xf32>
    %260 = math.tanh %259 : vector<8x128xf32>
    %261 = vector.extract_strided_slice %258 {offsets = [0, 128], sizes = [8, 128], strides = [1, 1]} : vector<8x512xf32> to vector<8x128xf32>
    %262 = arith.negf %261 : vector<8x128xf32>
    %263 = math.exp %262 : vector<8x128xf32>
    %cst_48 = arith.constant 1.000000e+00 : f32
    %264 = vector.broadcast %cst_48 : f32 to vector<8x128xf32>
    %265 = arith.addf %264, %263 : vector<8x128xf32>
    %266 = arith.divf %264, %265 : vector<8x128xf32>
    %267 = vector.extract_strided_slice %258 {offsets = [0, 256], sizes = [8, 128], strides = [1, 1]} : vector<8x512xf32> to vector<8x128xf32>
    %268 = arith.negf %267 : vector<8x128xf32>
    %269 = math.exp %268 : vector<8x128xf32>
    %cst_49 = arith.constant 1.000000e+00 : f32
    %270 = vector.broadcast %cst_49 : f32 to vector<8x128xf32>
    %271 = arith.addf %270, %269 : vector<8x128xf32>
    %272 = arith.divf %270, %271 : vector<8x128xf32>
    %273 = vector.extract_strided_slice %258 {offsets = [0, 384], sizes = [8, 128], strides = [1, 1]} : vector<8x512xf32> to vector<8x128xf32>
    %274 = arith.negf %273 : vector<8x128xf32>
    %275 = math.exp %274 : vector<8x128xf32>
    %cst_50 = arith.constant 1.000000e+00 : f32
    %276 = vector.broadcast %cst_50 : f32 to vector<8x128xf32>
    %277 = arith.addf %276, %275 : vector<8x128xf32>
    %278 = arith.divf %276, %277 : vector<8x128xf32>
    %279 = arith.mulf %260, %266 : vector<8x128xf32>
    %280 = arith.mulf %219, %272 : vector<8x128xf32>
    %281 = arith.addf %279, %280 : vector<8x128xf32>
    %282 = math.tanh %281 : vector<8x128xf32>
    %283 = arith.mulf %282, %278 : vector<8x128xf32>
    %cst_51 = arith.constant dense<0.000000e+00> : vector<8x512xf32>
    %284 = tpu.matmul %283, %1, %cst_51 {dimension_numbers = #tpu.dot_dimension_numbers<[1], [0], [0], [1], [0, 0, 1, 1], [], []>} : vector<8x128xf32>, vector<128x512xf32>, vector<8x512xf32> -> vector<8x512xf32>
    %285 = vector.extract_strided_slice %253 {offsets = [0, 512], sizes = [8, 512], strides = [1, 1]} : vector<8x1024xf32> to vector<8x512xf32>
    %286 = arith.addf %284, %285 : vector<8x512xf32>
    %287 = vector.broadcast %2 : vector<1x512xf32> to vector<8x512xf32>
    %288 = arith.addf %286, %287 : vector<8x512xf32>
    %289 = vector.extract_strided_slice %288 {offsets = [0, 0], sizes = [8, 128], strides = [1, 1]} : vector<8x512xf32> to vector<8x128xf32>
    %290 = math.tanh %289 : vector<8x128xf32>
    %291 = vector.extract_strided_slice %288 {offsets = [0, 128], sizes = [8, 128], strides = [1, 1]} : vector<8x512xf32> to vector<8x128xf32>
    %292 = arith.negf %291 : vector<8x128xf32>
    %293 = math.exp %292 : vector<8x128xf32>
    %cst_52 = arith.constant 1.000000e+00 : f32
    %294 = vector.broadcast %cst_52 : f32 to vector<8x128xf32>
    %295 = arith.addf %294, %293 : vector<8x128xf32>
    %296 = arith.divf %294, %295 : vector<8x128xf32>
    %297 = vector.extract_strided_slice %288 {offsets = [0, 256], sizes = [8, 128], strides = [1, 1]} : vector<8x512xf32> to vector<8x128xf32>
    %298 = arith.negf %297 : vector<8x128xf32>
    %299 = math.exp %298 : vector<8x128xf32>
    %cst_53 = arith.constant 1.000000e+00 : f32
    %300 = vector.broadcast %cst_53 : f32 to vector<8x128xf32>
    %301 = arith.addf %300, %299 : vector<8x128xf32>
    %302 = arith.divf %300, %301 : vector<8x128xf32>
    %303 = vector.extract_strided_slice %288 {offsets = [0, 384], sizes = [8, 128], strides = [1, 1]} : vector<8x512xf32> to vector<8x128xf32>
    %304 = arith.negf %303 : vector<8x128xf32>
    %305 = math.exp %304 : vector<8x128xf32>
    %cst_54 = arith.constant 1.000000e+00 : f32
    %306 = vector.broadcast %cst_54 : f32 to vector<8x128xf32>
    %307 = arith.addf %306, %305 : vector<8x128xf32>
    %308 = arith.divf %306, %307 : vector<8x128xf32>
    %309 = arith.mulf %290, %296 : vector<8x128xf32>
    %310 = arith.mulf %249, %302 : vector<8x128xf32>
    %311 = arith.addf %309, %310 : vector<8x128xf32>
    %312 = math.tanh %311 : vector<8x128xf32>
    %313 = arith.mulf %312, %308 : vector<8x128xf32>
    %c5_i32 = arith.constant 5 : i32
    %314 = tpu.concatenate %283, %313 in 1 : vector<8x128xf32>, vector<8x128xf32> -> vector<8x256xf32>
    %cst_55 = arith.constant dense<0.000000e+00> : vector<8x1024xf32>
    %315 = tpu.matmul %314, %0, %cst_55 {dimension_numbers = #tpu.dot_dimension_numbers<[1], [0], [0], [1], [0, 0, 1, 1], [], []>} : vector<8x256xf32>, vector<256x1024xf32>, vector<8x1024xf32> -> vector<8x1024xf32>
    %316 = arith.index_cast %c5_i32 : i32 to index
    %c0_56 = arith.constant 0 : index
    %c0_57 = arith.constant 0 : index
    %317 = vector.load %arg0[%316, %c0_56, %c0_57] : memref<8x8x512xf32, #tpu.memory_space<vmem>>, vector<1x8x512xf32>
    %318 = vector.shape_cast %317 : vector<1x8x512xf32> to vector<8x512xf32>
    %319 = vector.extract_strided_slice %315 {offsets = [0, 0], sizes = [8, 512], strides = [1, 1]} : vector<8x1024xf32> to vector<8x512xf32>
    %320 = arith.addf %318, %319 : vector<8x512xf32>
    %321 = vector.extract_strided_slice %320 {offsets = [0, 0], sizes = [8, 128], strides = [1, 1]} : vector<8x512xf32> to vector<8x128xf32>
    %322 = math.tanh %321 : vector<8x128xf32>
    %323 = vector.extract_strided_slice %320 {offsets = [0, 128], sizes = [8, 128], strides = [1, 1]} : vector<8x512xf32> to vector<8x128xf32>
    %324 = arith.negf %323 : vector<8x128xf32>
    %325 = math.exp %324 : vector<8x128xf32>
    %cst_58 = arith.constant 1.000000e+00 : f32
    %326 = vector.broadcast %cst_58 : f32 to vector<8x128xf32>
    %327 = arith.addf %326, %325 : vector<8x128xf32>
    %328 = arith.divf %326, %327 : vector<8x128xf32>
    %329 = vector.extract_strided_slice %320 {offsets = [0, 256], sizes = [8, 128], strides = [1, 1]} : vector<8x512xf32> to vector<8x128xf32>
    %330 = arith.negf %329 : vector<8x128xf32>
    %331 = math.exp %330 : vector<8x128xf32>
    %cst_59 = arith.constant 1.000000e+00 : f32
    %332 = vector.broadcast %cst_59 : f32 to vector<8x128xf32>
    %333 = arith.addf %332, %331 : vector<8x128xf32>
    %334 = arith.divf %332, %333 : vector<8x128xf32>
    %335 = vector.extract_strided_slice %320 {offsets = [0, 384], sizes = [8, 128], strides = [1, 1]} : vector<8x512xf32> to vector<8x128xf32>
    %336 = arith.negf %335 : vector<8x128xf32>
    %337 = math.exp %336 : vector<8x128xf32>
    %cst_60 = arith.constant 1.000000e+00 : f32
    %338 = vector.broadcast %cst_60 : f32 to vector<8x128xf32>
    %339 = arith.addf %338, %337 : vector<8x128xf32>
    %340 = arith.divf %338, %339 : vector<8x128xf32>
    %341 = arith.mulf %322, %328 : vector<8x128xf32>
    %342 = arith.mulf %281, %334 : vector<8x128xf32>
    %343 = arith.addf %341, %342 : vector<8x128xf32>
    %344 = math.tanh %343 : vector<8x128xf32>
    %345 = arith.mulf %344, %340 : vector<8x128xf32>
    %cst_61 = arith.constant dense<0.000000e+00> : vector<8x512xf32>
    %346 = tpu.matmul %345, %1, %cst_61 {dimension_numbers = #tpu.dot_dimension_numbers<[1], [0], [0], [1], [0, 0, 1, 1], [], []>} : vector<8x128xf32>, vector<128x512xf32>, vector<8x512xf32> -> vector<8x512xf32>
    %347 = vector.extract_strided_slice %315 {offsets = [0, 512], sizes = [8, 512], strides = [1, 1]} : vector<8x1024xf32> to vector<8x512xf32>
    %348 = arith.addf %346, %347 : vector<8x512xf32>
    %349 = vector.broadcast %2 : vector<1x512xf32> to vector<8x512xf32>
    %350 = arith.addf %348, %349 : vector<8x512xf32>
    %351 = vector.extract_strided_slice %350 {offsets = [0, 0], sizes = [8, 128], strides = [1, 1]} : vector<8x512xf32> to vector<8x128xf32>
    %352 = math.tanh %351 : vector<8x128xf32>
    %353 = vector.extract_strided_slice %350 {offsets = [0, 128], sizes = [8, 128], strides = [1, 1]} : vector<8x512xf32> to vector<8x128xf32>
    %354 = arith.negf %353 : vector<8x128xf32>
    %355 = math.exp %354 : vector<8x128xf32>
    %cst_62 = arith.constant 1.000000e+00 : f32
    %356 = vector.broadcast %cst_62 : f32 to vector<8x128xf32>
    %357 = arith.addf %356, %355 : vector<8x128xf32>
    %358 = arith.divf %356, %357 : vector<8x128xf32>
    %359 = vector.extract_strided_slice %350 {offsets = [0, 256], sizes = [8, 128], strides = [1, 1]} : vector<8x512xf32> to vector<8x128xf32>
    %360 = arith.negf %359 : vector<8x128xf32>
    %361 = math.exp %360 : vector<8x128xf32>
    %cst_63 = arith.constant 1.000000e+00 : f32
    %362 = vector.broadcast %cst_63 : f32 to vector<8x128xf32>
    %363 = arith.addf %362, %361 : vector<8x128xf32>
    %364 = arith.divf %362, %363 : vector<8x128xf32>
    %365 = vector.extract_strided_slice %350 {offsets = [0, 384], sizes = [8, 128], strides = [1, 1]} : vector<8x512xf32> to vector<8x128xf32>
    %366 = arith.negf %365 : vector<8x128xf32>
    %367 = math.exp %366 : vector<8x128xf32>
    %cst_64 = arith.constant 1.000000e+00 : f32
    %368 = vector.broadcast %cst_64 : f32 to vector<8x128xf32>
    %369 = arith.addf %368, %367 : vector<8x128xf32>
    %370 = arith.divf %368, %369 : vector<8x128xf32>
    %371 = arith.mulf %352, %358 : vector<8x128xf32>
    %372 = arith.mulf %311, %364 : vector<8x128xf32>
    %373 = arith.addf %371, %372 : vector<8x128xf32>
    %374 = math.tanh %373 : vector<8x128xf32>
    %375 = arith.mulf %374, %370 : vector<8x128xf32>
    %c6_i32 = arith.constant 6 : i32
    %376 = tpu.concatenate %345, %375 in 1 : vector<8x128xf32>, vector<8x128xf32> -> vector<8x256xf32>
    %cst_65 = arith.constant dense<0.000000e+00> : vector<8x1024xf32>
    %377 = tpu.matmul %376, %0, %cst_65 {dimension_numbers = #tpu.dot_dimension_numbers<[1], [0], [0], [1], [0, 0, 1, 1], [], []>} : vector<8x256xf32>, vector<256x1024xf32>, vector<8x1024xf32> -> vector<8x1024xf32>
    %378 = arith.index_cast %c6_i32 : i32 to index
    %c0_66 = arith.constant 0 : index
    %c0_67 = arith.constant 0 : index
    %379 = vector.load %arg0[%378, %c0_66, %c0_67] : memref<8x8x512xf32, #tpu.memory_space<vmem>>, vector<1x8x512xf32>
    %380 = vector.shape_cast %379 : vector<1x8x512xf32> to vector<8x512xf32>
    %381 = vector.extract_strided_slice %377 {offsets = [0, 0], sizes = [8, 512], strides = [1, 1]} : vector<8x1024xf32> to vector<8x512xf32>
    %382 = arith.addf %380, %381 : vector<8x512xf32>
    %383 = vector.extract_strided_slice %382 {offsets = [0, 0], sizes = [8, 128], strides = [1, 1]} : vector<8x512xf32> to vector<8x128xf32>
    %384 = math.tanh %383 : vector<8x128xf32>
    %385 = vector.extract_strided_slice %382 {offsets = [0, 128], sizes = [8, 128], strides = [1, 1]} : vector<8x512xf32> to vector<8x128xf32>
    %386 = arith.negf %385 : vector<8x128xf32>
    %387 = math.exp %386 : vector<8x128xf32>
    %cst_68 = arith.constant 1.000000e+00 : f32
    %388 = vector.broadcast %cst_68 : f32 to vector<8x128xf32>
    %389 = arith.addf %388, %387 : vector<8x128xf32>
    %390 = arith.divf %388, %389 : vector<8x128xf32>
    %391 = vector.extract_strided_slice %382 {offsets = [0, 256], sizes = [8, 128], strides = [1, 1]} : vector<8x512xf32> to vector<8x128xf32>
    %392 = arith.negf %391 : vector<8x128xf32>
    %393 = math.exp %392 : vector<8x128xf32>
    %cst_69 = arith.constant 1.000000e+00 : f32
    %394 = vector.broadcast %cst_69 : f32 to vector<8x128xf32>
    %395 = arith.addf %394, %393 : vector<8x128xf32>
    %396 = arith.divf %394, %395 : vector<8x128xf32>
    %397 = vector.extract_strided_slice %382 {offsets = [0, 384], sizes = [8, 128], strides = [1, 1]} : vector<8x512xf32> to vector<8x128xf32>
    %398 = arith.negf %397 : vector<8x128xf32>
    %399 = math.exp %398 : vector<8x128xf32>
    %cst_70 = arith.constant 1.000000e+00 : f32
    %400 = vector.broadcast %cst_70 : f32 to vector<8x128xf32>
    %401 = arith.addf %400, %399 : vector<8x128xf32>
    %402 = arith.divf %400, %401 : vector<8x128xf32>
    %403 = arith.mulf %384, %390 : vector<8x128xf32>
    %404 = arith.mulf %343, %396 : vector<8x128xf32>
    %405 = arith.addf %403, %404 : vector<8x128xf32>
    %406 = math.tanh %405 : vector<8x128xf32>
    %407 = arith.mulf %406, %402 : vector<8x128xf32>
    %cst_71 = arith.constant dense<0.000000e+00> : vector<8x512xf32>
    %408 = tpu.matmul %407, %1, %cst_71 {dimension_numbers = #tpu.dot_dimension_numbers<[1], [0], [0], [1], [0, 0, 1, 1], [], []>} : vector<8x128xf32>, vector<128x512xf32>, vector<8x512xf32> -> vector<8x512xf32>
    %409 = vector.extract_strided_slice %377 {offsets = [0, 512], sizes = [8, 512], strides = [1, 1]} : vector<8x1024xf32> to vector<8x512xf32>
    %410 = arith.addf %408, %409 : vector<8x512xf32>
    %411 = vector.broadcast %2 : vector<1x512xf32> to vector<8x512xf32>
    %412 = arith.addf %410, %411 : vector<8x512xf32>
    %413 = vector.extract_strided_slice %412 {offsets = [0, 0], sizes = [8, 128], strides = [1, 1]} : vector<8x512xf32> to vector<8x128xf32>
    %414 = math.tanh %413 : vector<8x128xf32>
    %415 = vector.extract_strided_slice %412 {offsets = [0, 128], sizes = [8, 128], strides = [1, 1]} : vector<8x512xf32> to vector<8x128xf32>
    %416 = arith.negf %415 : vector<8x128xf32>
    %417 = math.exp %416 : vector<8x128xf32>
    %cst_72 = arith.constant 1.000000e+00 : f32
    %418 = vector.broadcast %cst_72 : f32 to vector<8x128xf32>
    %419 = arith.addf %418, %417 : vector<8x128xf32>
    %420 = arith.divf %418, %419 : vector<8x128xf32>
    %421 = vector.extract_strided_slice %412 {offsets = [0, 256], sizes = [8, 128], strides = [1, 1]} : vector<8x512xf32> to vector<8x128xf32>
    %422 = arith.negf %421 : vector<8x128xf32>
    %423 = math.exp %422 : vector<8x128xf32>
    %cst_73 = arith.constant 1.000000e+00 : f32
    %424 = vector.broadcast %cst_73 : f32 to vector<8x128xf32>
    %425 = arith.addf %424, %423 : vector<8x128xf32>
    %426 = arith.divf %424, %425 : vector<8x128xf32>
    %427 = vector.extract_strided_slice %412 {offsets = [0, 384], sizes = [8, 128], strides = [1, 1]} : vector<8x512xf32> to vector<8x128xf32>
    %428 = arith.negf %427 : vector<8x128xf32>
    %429 = math.exp %428 : vector<8x128xf32>
    %cst_74 = arith.constant 1.000000e+00 : f32
    %430 = vector.broadcast %cst_74 : f32 to vector<8x128xf32>
    %431 = arith.addf %430, %429 : vector<8x128xf32>
    %432 = arith.divf %430, %431 : vector<8x128xf32>
    %433 = arith.mulf %414, %420 : vector<8x128xf32>
    %434 = arith.mulf %373, %426 : vector<8x128xf32>
    %435 = arith.addf %433, %434 : vector<8x128xf32>
    %436 = math.tanh %435 : vector<8x128xf32>
    %437 = arith.mulf %436, %432 : vector<8x128xf32>
    %c7_i32 = arith.constant 7 : i32
    %438 = tpu.concatenate %407, %437 in 1 : vector<8x128xf32>, vector<8x128xf32> -> vector<8x256xf32>
    %cst_75 = arith.constant dense<0.000000e+00> : vector<8x1024xf32>
    %439 = tpu.matmul %438, %0, %cst_75 {dimension_numbers = #tpu.dot_dimension_numbers<[1], [0], [0], [1], [0, 0, 1, 1], [], []>} : vector<8x256xf32>, vector<256x1024xf32>, vector<8x1024xf32> -> vector<8x1024xf32>
    %440 = arith.index_cast %c7_i32 : i32 to index
    %c0_76 = arith.constant 0 : index
    %c0_77 = arith.constant 0 : index
    %441 = vector.load %arg0[%440, %c0_76, %c0_77] : memref<8x8x512xf32, #tpu.memory_space<vmem>>, vector<1x8x512xf32>
    %442 = vector.shape_cast %441 : vector<1x8x512xf32> to vector<8x512xf32>
    %443 = vector.extract_strided_slice %439 {offsets = [0, 0], sizes = [8, 512], strides = [1, 1]} : vector<8x1024xf32> to vector<8x512xf32>
    %444 = arith.addf %442, %443 : vector<8x512xf32>
    %445 = vector.extract_strided_slice %444 {offsets = [0, 0], sizes = [8, 128], strides = [1, 1]} : vector<8x512xf32> to vector<8x128xf32>
    %446 = math.tanh %445 : vector<8x128xf32>
    %447 = vector.extract_strided_slice %444 {offsets = [0, 128], sizes = [8, 128], strides = [1, 1]} : vector<8x512xf32> to vector<8x128xf32>
    %448 = arith.negf %447 : vector<8x128xf32>
    %449 = math.exp %448 : vector<8x128xf32>
    %cst_78 = arith.constant 1.000000e+00 : f32
    %450 = vector.broadcast %cst_78 : f32 to vector<8x128xf32>
    %451 = arith.addf %450, %449 : vector<8x128xf32>
    %452 = arith.divf %450, %451 : vector<8x128xf32>
    %453 = vector.extract_strided_slice %444 {offsets = [0, 256], sizes = [8, 128], strides = [1, 1]} : vector<8x512xf32> to vector<8x128xf32>
    %454 = arith.negf %453 : vector<8x128xf32>
    %455 = math.exp %454 : vector<8x128xf32>
    %cst_79 = arith.constant 1.000000e+00 : f32
    %456 = vector.broadcast %cst_79 : f32 to vector<8x128xf32>
    %457 = arith.addf %456, %455 : vector<8x128xf32>
    %458 = arith.divf %456, %457 : vector<8x128xf32>
    %459 = vector.extract_strided_slice %444 {offsets = [0, 384], sizes = [8, 128], strides = [1, 1]} : vector<8x512xf32> to vector<8x128xf32>
    %460 = arith.negf %459 : vector<8x128xf32>
    %461 = math.exp %460 : vector<8x128xf32>
    %cst_80 = arith.constant 1.000000e+00 : f32
    %462 = vector.broadcast %cst_80 : f32 to vector<8x128xf32>
    %463 = arith.addf %462, %461 : vector<8x128xf32>
    %464 = arith.divf %462, %463 : vector<8x128xf32>
    %465 = arith.mulf %446, %452 : vector<8x128xf32>
    %466 = arith.mulf %405, %458 : vector<8x128xf32>
    %467 = arith.addf %465, %466 : vector<8x128xf32>
    %468 = math.tanh %467 : vector<8x128xf32>
    %469 = arith.mulf %468, %464 : vector<8x128xf32>
    %cst_81 = arith.constant dense<0.000000e+00> : vector<8x512xf32>
    %470 = tpu.matmul %469, %1, %cst_81 {dimension_numbers = #tpu.dot_dimension_numbers<[1], [0], [0], [1], [0, 0, 1, 1], [], []>} : vector<8x128xf32>, vector<128x512xf32>, vector<8x512xf32> -> vector<8x512xf32>
    %471 = vector.extract_strided_slice %439 {offsets = [0, 512], sizes = [8, 512], strides = [1, 1]} : vector<8x1024xf32> to vector<8x512xf32>
    %472 = arith.addf %470, %471 : vector<8x512xf32>
    %473 = vector.broadcast %2 : vector<1x512xf32> to vector<8x512xf32>
    %474 = arith.addf %472, %473 : vector<8x512xf32>
    %475 = vector.extract_strided_slice %474 {offsets = [0, 0], sizes = [8, 128], strides = [1, 1]} : vector<8x512xf32> to vector<8x128xf32>
    %476 = math.tanh %475 : vector<8x128xf32>
    %477 = vector.extract_strided_slice %474 {offsets = [0, 128], sizes = [8, 128], strides = [1, 1]} : vector<8x512xf32> to vector<8x128xf32>
    %478 = arith.negf %477 : vector<8x128xf32>
    %479 = math.exp %478 : vector<8x128xf32>
    %cst_82 = arith.constant 1.000000e+00 : f32
    %480 = vector.broadcast %cst_82 : f32 to vector<8x128xf32>
    %481 = arith.addf %480, %479 : vector<8x128xf32>
    %482 = arith.divf %480, %481 : vector<8x128xf32>
    %483 = vector.extract_strided_slice %474 {offsets = [0, 256], sizes = [8, 128], strides = [1, 1]} : vector<8x512xf32> to vector<8x128xf32>
    %484 = arith.negf %483 : vector<8x128xf32>
    %485 = math.exp %484 : vector<8x128xf32>
    %cst_83 = arith.constant 1.000000e+00 : f32
    %486 = vector.broadcast %cst_83 : f32 to vector<8x128xf32>
    %487 = arith.addf %486, %485 : vector<8x128xf32>
    %488 = arith.divf %486, %487 : vector<8x128xf32>
    %489 = vector.extract_strided_slice %474 {offsets = [0, 384], sizes = [8, 128], strides = [1, 1]} : vector<8x512xf32> to vector<8x128xf32>
    %490 = arith.negf %489 : vector<8x128xf32>
    %491 = math.exp %490 : vector<8x128xf32>
    %cst_84 = arith.constant 1.000000e+00 : f32
    %492 = vector.broadcast %cst_84 : f32 to vector<8x128xf32>
    %493 = arith.addf %492, %491 : vector<8x128xf32>
    %494 = arith.divf %492, %493 : vector<8x128xf32>
    %495 = arith.mulf %476, %482 : vector<8x128xf32>
    %496 = arith.mulf %435, %488 : vector<8x128xf32>
    %497 = arith.addf %495, %496 : vector<8x128xf32>
    %498 = math.tanh %497 : vector<8x128xf32>
    %499 = arith.mulf %498, %494 : vector<8x128xf32>
    %c8_i32 = arith.constant 8 : i32
    %c0_85 = arith.constant 0 : index
    %c0_86 = arith.constant 0 : index
    %500 = vector.load %arg4[%c0_85, %c0_86] : memref<128x128xf32, #tpu.memory_space<vmem>>, vector<128x128xf32>
    %cst_87 = arith.constant dense<0.000000e+00> : vector<8x128xf32>
    %501 = tpu.matmul %499, %500, %cst_87 {dimension_numbers = #tpu.dot_dimension_numbers<[1], [0], [0], [1], [0, 0, 1, 1], [], []>} : vector<8x128xf32>, vector<128x128xf32>, vector<8x128xf32> -> vector<8x128xf32>
    %c0_88 = arith.constant 0 : index
    %c0_89 = arith.constant 0 : index
    %502 = vector.load %arg5[%c0_88, %c0_89] : memref<1x128xf32, #tpu.memory_space<vmem>>, vector<1x128xf32>
    %503 = vector.broadcast %502 : vector<1x128xf32> to vector<8x128xf32>
    %504 = arith.addf %501, %503 : vector<8x128xf32>
    %c0_90 = arith.constant 0 : index
    %c0_91 = arith.constant 0 : index
    %505 = vector.load %arg6[%c0_90, %c0_91] : memref<8x128xf32, #tpu.memory_space<vmem>>, vector<8x128xf32>
    tpu.vector_store %arg6[%c0_90, %c0_91], %504 {strides = array<i32>} : memref<8x128xf32, #tpu.memory_space<vmem>>, vector<8x128xf32>,
    return
  }
}

</mosaic_0001>

<llo_original>
// kernel: tpu_custom_call.1
$region0: #{tpu_custom_call.1}
  #allocation0 [shape = 'u32[]', space=smem, size = 0x4, offset = 0x4, fixed_abs, tag = 'smem constant byte address 0x4 - core index']
  #allocation1 [shape = 'u32[144,128]{1,0:T(1,128)}', space=vmem, size = 0x12000, scoped, tag = 'internal scratch']
  %s0 = inlined_call_operand.hbm [shape: f32[8,8,512], index: 0, kind: input, shape index: {}]
  %s1 = inlined_call_operand.hbm [shape: f32[256,1024], index: 1, kind: input, shape index: {}]
  %s2 = inlined_call_operand.hbm [shape: f32[128,512], index: 2, kind: input, shape index: {}]
  %s3 = inlined_call_operand.vmem [shape: f32[1,512], index: 3, kind: input, shape index: {}]
  %s4 = inlined_call_operand.hbm [shape: f32[128,128], index: 4, kind: input, shape index: {}]
  %s5 = inlined_call_operand.vmem [shape: f32[1,128], index: 5, kind: input, shape index: {}]
  %s6 = inlined_call_operand.hbm [shape: f32[8,128], index: 6, kind: output, shape index: {}]
  %s7 = sld [smem:[#allocation0]]
  $region50: #{tpu_custom_call.1} parent=0
    _
  %s9 = ssub.s32 1, %s7
  %s10 = scalar_select 0, %s9, %s7
  $region1: #{tpu_custom_call.1} parent=0
    #allocation2 [shape = 'u8[131072]{0}', space=vmem, size = 0x20000, scoped, tag = 'input window, operand 0, single buffered']
    #allocation3 [shape = 's32[1]{0}', space=sflag, size = 0x4, scoped, tag = 'scoped memory for tpu_custom_call.1']
    #allocation4 [shape = 's32[1]{0}', space=sflag, size = 0x4, scoped, tag = 'scoped memory for tpu_custom_call.1']
    #allocation5 [shape = 'u8[1048576]{0}', space=vmem, size = 0x100000, scoped, tag = 'input window, operand 1, single buffered']
    #allocation6 [shape = 's32[1]{0}', space=sflag, size = 0x4, scoped, tag = 'scoped memory for tpu_custom_call.1']
    #allocation7 [shape = 'u8[262144]{0}', space=vmem, size = 0x40000, scoped, tag = 'input window, operand 2, single buffered']
    #allocation8 [shape = 'u8[65536]{0}', space=vmem, size = 0x10000, scoped, tag = 'input window, operand 4, single buffered']
    #allocation9 [shape = 's32[1]{0}', space=sflag, size = 0x4, scoped, tag = 'scoped memory for tpu_custom_call.1']
    #allocation10 [shape = 'u8[4096]{0}', space=vmem, size = 0x1000, scoped, tag = 'output window, operand 0, single buffered']
    %11 = vsyncpa [#allocation3], 0
    %12 = vsyncpa [#allocation6], 0
    %13 = vsyncpa [#allocation9], 0
    %14 = vsyncpa [#allocation4], 0
    // Predicated region
    $region2: #{tpu_custom_call.1} parent=1 // pred_check
      _
    $region3: #{tpu_custom_call.1} parent=1 // pred_check_branch
      %16 = sbr.rel (0) target = $region5
    $region4: #{tpu_custom_call.1} parent=1 // pred_region
      %s18 = ssub.s32 4096, 4096
      %19 = vsyncadd [#allocation3], %s18
      %s20 = sshll.u32 [#allocation2], 4
      %s21 = int_to_ptr.vmem [resolvable:$true] %s20
      %26 = dma.hbm_to_vmem [thread:$0]  %s0, 4096, %s21, [#allocation3], 512, 512, 32
    $region5: #{tpu_custom_call.1} parent=1 // pred_fallthru
      _
    // Predicated region
    $region6: #{tpu_custom_call.1} parent=1 // pred_check
      _
    $region7: #{tpu_custom_call.1} parent=1 // pred_check_branch
      %28 = sbr.rel (0) target = $region9
    $region8: #{tpu_custom_call.1} parent=1 // pred_region
      %s30 = ssub.s32 32768, 32768
      %31 = vsyncadd [#allocation6], %s30
      %s32 = sshll.u32 [#allocation5], 4
      %s33 = int_to_ptr.vmem [resolvable:$true] %s32
      %38 = dma.hbm_to_vmem [thread:$0]  %s1, 32768, %s33, [#allocation6], 1024, 1024, 64
    $region9: #{tpu_custom_call.1} parent=1 // pred_fallthru
      _
    // Predicated region
    $region10: #{tpu_custom_call.1} parent=1 // pred_check
      _
    $region11: #{tpu_custom_call.1} parent=1 // pred_check_branch
      %40 = sbr.rel (0) target = $region13
    $region12: #{tpu_custom_call.1} parent=1 // pred_region
      %s42 = ssub.s32 8192, 8192
      %43 = vsyncadd [#allocation6], %s42
      %s44 = sshll.u32 [#allocation7], 4
      %s45 = int_to_ptr.vmem [resolvable:$true] %s44
      %50 = dma.hbm_to_vmem [thread:$0]  %s2, 8192, %s45, [#allocation6], 512, 512, 32
    $region13: #{tpu_custom_call.1} parent=1 // pred_fallthru
      _
    // Predicated region
    $region14: #{tpu_custom_call.1} parent=1 // pred_check
      _
    $region15: #{tpu_custom_call.1} parent=1 // pred_check_branch
      %52 = sbr.rel (0) target = $region17
    $region16: #{tpu_custom_call.1} parent=1 // pred_region
      _
    $region17: #{tpu_custom_call.1} parent=1 // pred_fallthru
      _
    // Predicated region
    $region18: #{tpu_custom_call.1} parent=1 // pred_check
      _
    $region19: #{tpu_custom_call.1} parent=1 // pred_check_branch
      %54 = sbr.rel (0) target = $region21
    $region20: #{tpu_custom_call.1} parent=1 // pred_region
      %s56 = ssub.s32 2048, 2048
      %57 = vsyncadd [#allocation9], %s56
      %s58 = sshll.u32 [#allocation8], 4
      %s59 = int_to_ptr.vmem [resolvable:$true] %s58
      %64 = dma.hbm_to_vmem [thread:$0]  %s4, 2048, %s59, [#allocation9], 128, 128, 8
    $region21: #{tpu_custom_call.1} parent=1 // pred_fallthru
      _
    // Predicated region
    $region22: #{tpu_custom_call.1} parent=1 // pred_check
      _
    $region23: #{tpu_custom_call.1} parent=1 // pred_check_branch
      %66 = sbr.rel (0) target = $region25
    $region24: #{tpu_custom_call.1} parent=1 // pred_region
      _
    $region25: #{tpu_custom_call.1} parent=1 // pred_fallthru
      _
    // Predicated region
    $region26: #{tpu_custom_call.1} parent=1 // pred_check
      _
    $region27: #{tpu_custom_call.1} parent=1 // pred_check_branch
      %68 = sbr.rel (0) target = $region29
    $region28: #{tpu_custom_call.1} parent=1 // pred_region
      %69 = dma.done [#allocation3], 4096
    $region29: #{tpu_custom_call.1} parent=1 // pred_fallthru
      _
    // Predicated region
    $region30: #{tpu_custom_call.1} parent=1 // pred_check
      _
    $region31: #{tpu_custom_call.1} parent=1 // pred_check_branch
      %71 = sbr.rel (0) target = $region33
    $region32: #{tpu_custom_call.1} parent=1 // pred_region
      %72 = dma.done [#allocation6], 32768
    $region33: #{tpu_custom_call.1} parent=1 // pred_fallthru
      _
    // Predicated region
    $region34: #{tpu_custom_call.1} parent=1 // pred_check
      _
    $region35: #{tpu_custom_call.1} parent=1 // pred_check_branch
      %74 = sbr.rel (0) target = $region37
    $region36: #{tpu_custom_call.1} parent=1 // pred_region
      %75 = dma.done [#allocation6], 8192
    $region37: #{tpu_custom_call.1} parent=1 // pred_fallthru
      _
    // Predicated region
    $region38: #{tpu_custom_call.1} parent=1 // pred_check
      _
    $region39: #{tpu_custom_call.1} parent=1 // pred_check_branch
      %77 = sbr.rel (0) target = $region41
    $region40: #{tpu_custom_call.1} parent=1 // pred_region
      %78 = dma.done [#allocation9], 2048
    $region41: #{tpu_custom_call.1} parent=1 // pred_fallthru
      _
    %v79 = vld [vmem:[#allocation5] sm:$0xff]
    %v80 = vld [vmem:[#allocation5 + $0x8] sm:$0xff]
    %v81 = vld [vmem:[#allocation5 + $0x10] sm:$0xff]
    %v82 = vld [vmem:[#allocation5 + $0x18] sm:$0xff]
    %v83 = vld [vmem:[#allocation5 + $0x20] sm:$0xff]
    %v84 = vld [vmem:[#allocation5 + $0x28] sm:$0xff]
    %v85 = vld [vmem:[#allocation5 + $0x30] sm:$0xff]
    %v86 = vld [vmem:[#allocation5 + $0x38] sm:$0xff]
    %v87 = vld [vmem:[#allocation5 + $0x40] sm:$0xff]
    %v88 = vld [vmem:[#allocation5 + $0x48] sm:$0xff]
    %v89 = vld [vmem:[#allocation5 + $0x50] sm:$0xff]
    %v90 = vld [vmem:[#allocation5 + $0x58] sm:$0xff]
    %v91 = vld [vmem:[#allocation5 + $0x60] sm:$0xff]
    %v92 = vld [vmem:[#allocation5 + $0x68] sm:$0xff]
    %v93 = vld [vmem:[#allocation5 + $0x70] sm:$0xff]
    %v94 = vld [vmem:[#allocation5 + $0x78] sm:$0xff]
    %v95 = vld [vmem:[#allocation5 + $0x80] sm:$0xff]
    %v96 = vld [vmem:[#allocation5 + $0x88] sm:$0xff]
    %v97 = vld [vmem:[#allocation5 + $0x90] sm:$0xff]
    %v98 = vld [vmem:[#allocation5 + $0x98] sm:$0xff]
    %v99 = vld [vmem:[#allocation5 + $0xa0] sm:$0xff]
    %v100 = vld [vmem:[#allocation5 + $0xa8] sm:$0xff]
    %v101 = vld [vmem:[#allocation5 + $0xb0] sm:$0xff]
    %v102 = vld [vmem:[#allocation5 + $0xb8] sm:$0xff]
    %v103 = vld [vmem:[#allocation5 + $0xc0] sm:$0xff]
    %v104 = vld [vmem:[#allocation5 + $0xc8] sm:$0xff]
    %v105 = vld [vmem:[#allocation5 + $0xd0] sm:$0xff]
    %v106 = vld [vmem:[#allocation5 + $0xd8] sm:$0xff]
    %v107 = vld [vmem:[#allocation5 + $0xe0] sm:$0xff]
    %v108 = vld [vmem:[#allocation5 + $0xe8] sm:$0xff]
    %v109 = vld [vmem:[#allocation5 + $0xf0] sm:$0xff]
    %v110 = vld [vmem:[#allocation5 + $0xf8] sm:$0xff]
    %v111 = vld [vmem:[#allocation5 + $0x100] sm:$0xff]
    %v112 = vld [vmem:[#allocation5 + $0x108] sm:$0xff]
    %v113 = vld [vmem:[#allocation5 + $0x110] sm:$0xff]
    %v114 = vld [vmem:[#allocation5 + $0x118] sm:$0xff]
    %v115 = vld [vmem:[#allocation5 + $0x120] sm:$0xff]
    %v116 = vld [vmem:[#allocation5 + $0x128] sm:$0xff]
    %v117 = vld [vmem:[#allocation5 + $0x130] sm:$0xff]
    %v118 = vld [vmem:[#allocation5 + $0x138] sm:$0xff]
    %v119 = vld [vmem:[#allocation5 + $0x140] sm:$0xff]
    %v120 = vld [vmem:[#allocation5 + $0x148] sm:$0xff]
    %v121 = vld [vmem:[#allocation5 + $0x150] sm:$0xff]
    %v122 = vld [vmem:[#allocation5 + $0x158] sm:$0xff]
    %v123 = vld [vmem:[#allocation5 + $0x160] sm:$0xff]
    %v124 = vld [vmem:[#allocation5 + $0x168] sm:$0xff]
    %v125 = vld [vmem:[#allocation5 + $0x170] sm:$0xff]
    %v126 = vld [vmem:[#allocation5 + $0x178] sm:$0xff]
    %v127 = vld [vmem:[#allocation5 + $0x180] sm:$0xff]
    %v128 = vld [vmem:[#allocation5 + $0x188] sm:$0xff]
    %v129 = vld [vmem:[#allocation5 + $0x190] sm:$0xff]
    %v130 = vld [vmem:[#allocation5 + $0x198] sm:$0xff]
    %v131 = vld [vmem:[#allocation5 + $0x1a0] sm:$0xff]
    %v132 = vld [vmem:[#allocation5 + $0x1a8] sm:$0xff]
    %v133 = vld [vmem:[#allocation5 + $0x1b0] sm:$0xff]
    %v134 = vld [vmem:[#allocation5 + $0x1b8] sm:$0xff]
    %v135 = vld [vmem:[#allocation5 + $0x1c0] sm:$0xff]
    %v136 = vld [vmem:[#allocation5 + $0x1c8] sm:$0xff]
    %v137 = vld [vmem:[#allocation5 + $0x1d0] sm:$0xff]
    %v138 = vld [vmem:[#allocation5 + $0x1d8] sm:$0xff]
    %v139 = vld [vmem:[#allocation5 + $0x1e0] sm:$0xff]
    %v140 = vld [vmem:[#allocation5 + $0x1e8] sm:$0xff]
    %v141 = vld [vmem:[#allocation5 + $0x1f0] sm:$0xff]
    %v142 = vld [vmem:[#allocation5 + $0x1f8] sm:$0xff]
    %v143 = vld [vmem:[#allocation5 + $0x200] sm:$0xff]
    %v144 = vld [vmem:[#allocation5 + $0x208] sm:$0xff]
    %v145 = vld [vmem:[#allocation5 + $0x210] sm:$0xff]
    %v146 = vld [vmem:[#allocation5 + $0x218] sm:$0xff]
    %v147 = vld [vmem:[#allocation5 + $0x220] sm:$0xff]
    %v148 = vld [vmem:[#allocation5 + $0x228] sm:$0xff]
    %v149 = vld [vmem:[#allocation5 + $0x230] sm:$0xff]
    %v150 = vld [vmem:[#allocation5 + $0x238] sm:$0xff]
    %v151 = vld [vmem:[#allocation5 + $0x240] sm:$0xff]
    %v152 = vld [vmem:[#allocation5 + $0x248] sm:$0xff]
    %v153 = vld [vmem:[#allocation5 + $0x250] sm:$0xff]
    %v154 = vld [vmem:[#allocation5 + $0x258] sm:$0xff]
    %v155 = vld [vmem:[#allocation5 + $0x260] sm:$0xff]
    %v156 = vld [vmem:[#allocation5 + $0x268] sm:$0xff]
    %v157 = vld [vmem:[#allocation5 + $0x270] sm:$0xff]
    %v158 = vld [vmem:[#allocation5 + $0x278] sm:$0xff]
    %v159 = vld [vmem:[#allocation5 + $0x280] sm:$0xff]
    %v160 = vld [vmem:[#allocation5 + $0x288] sm:$0xff]
    %v161 = vld [vmem:[#allocation5 + $0x290] sm:$0xff]
    %v162 = vld [vmem:[#allocation5 + $0x298] sm:$0xff]
    %v163 = vld [vmem:[#allocation5 + $0x2a0] sm:$0xff]
    %v164 = vld [vmem:[#allocation5 + $0x2a8] sm:$0xff]
    %v165 = vld [vmem:[#allocation5 + $0x2b0] sm:$0xff]
    %v166 = vld [vmem:[#allocation5 + $0x2b8] sm:$0xff]
    %v167 = vld [vmem:[#allocation5 + $0x2c0] sm:$0xff]
    %v168 = vld [vmem:[#allocation5 + $0x2c8] sm:$0xff]
    %v169 = vld [vmem:[#allocation5 + $0x2d0] sm:$0xff]
    %v170 = vld [vmem:[#allocation5 + $0x2d8] sm:$0xff]
    %v171 = vld [vmem:[#allocation5 + $0x2e0] sm:$0xff]
    %v172 = vld [vmem:[#allocation5 + $0x2e8] sm:$0xff]
    %v173 = vld [vmem:[#allocation5 + $0x2f0] sm:$0xff]
    %v174 = vld [vmem:[#allocation5 + $0x2f8] sm:$0xff]
    %v175 = vld [vmem:[#allocation5 + $0x300] sm:$0xff]
    %v176 = vld [vmem:[#allocation5 + $0x308] sm:$0xff]
    %v177 = vld [vmem:[#allocation5 + $0x310] sm:$0xff]
    %v178 = vld [vmem:[#allocation5 + $0x318] sm:$0xff]
    %v179 = vld [vmem:[#allocation5 + $0x320] sm:$0xff]
    %v180 = vld [vmem:[#allocation5 + $0x328] sm:$0xff]
    %v181 = vld [vmem:[#allocation5 + $0x330] sm:$0xff]
    %v182 = vld [vmem:[#allocation5 + $0x338] sm:$0xff]
    %v183 = vld [vmem:[#allocation5 + $0x340] sm:$0xff]
    %v184 = vld [vmem:[#allocation5 + $0x348] sm:$0xff]
    %v185 = vld [vmem:[#allocation5 + $0x350] sm:$0xff]
    %v186 = vld [vmem:[#allocation5 + $0x358] sm:$0xff]
    %v187 = vld [vmem:[#allocation5 + $0x360] sm:$0xff]
    %v188 = vld [vmem:[#allocation5 + $0x368] sm:$0xff]
    %v189 = vld [vmem:[#allocation5 + $0x370] sm:$0xff]
    %v190 = vld [vmem:[#allocation5 + $0x378] sm:$0xff]
    %v191 = vld [vmem:[#allocation5 + $0x380] sm:$0xff]
    %v192 = vld [vmem:[#allocation5 + $0x388] sm:$0xff]
    %v193 = vld [vmem:[#allocation5 + $0x390] sm:$0xff]
    %v194 = vld [vmem:[#allocation5 + $0x398] sm:$0xff]
    %v195 = vld [vmem:[#allocation5 + $0x3a0] sm:$0xff]
    %v196 = vld [vmem:[#allocation5 + $0x3a8] sm:$0xff]
    %v197 = vld [vmem:[#allocation5 + $0x3b0] sm:$0xff]
    %v198 = vld [vmem:[#allocation5 + $0x3b8] sm:$0xff]
    %v199 = vld [vmem:[#allocation5 + $0x3c0] sm:$0xff]
    %v200 = vld [vmem:[#allocation5 + $0x3c8] sm:$0xff]
    %v201 = vld [vmem:[#allocation5 + $0x3d0] sm:$0xff]
    %v202 = vld [vmem:[#allocation5 + $0x3d8] sm:$0xff]
    %v203 = vld [vmem:[#allocation5 + $0x3e0] sm:$0xff]
    %v204 = vld [vmem:[#allocation5 + $0x3e8] sm:$0xff]
    %v205 = vld [vmem:[#allocation5 + $0x3f0] sm:$0xff]
    %v206 = vld [vmem:[#allocation5 + $0x3f8] sm:$0xff]
    %v207 = vld [vmem:[#allocation5 + $0x400] sm:$0xff]
    %v208 = vld [vmem:[#allocation5 + $0x408] sm:$0xff]
    %v209 = vld [vmem:[#allocation5 + $0x410] sm:$0xff]
    %v210 = vld [vmem:[#allocation5 + $0x418] sm:$0xff]
    %v211 = vld [vmem:[#allocation5 + $0x420] sm:$0xff]
    %v212 = vld [vmem:[#allocation5 + $0x428] sm:$0xff]
    %v213 = vld [vmem:[#allocation5 + $0x430] sm:$0xff]
    %v214 = vld [vmem:[#allocation5 + $0x438] sm:$0xff]
    %v215 = vld [vmem:[#allocation5 + $0x440] sm:$0xff]
    %v216 = vld [vmem:[#allocation5 + $0x448] sm:$0xff]
    %v217 = vld [vmem:[#allocation5 + $0x450] sm:$0xff]
    %v218 = vld [vmem:[#allocation5 + $0x458] sm:$0xff]
    %v219 = vld [vmem:[#allocation5 + $0x460] sm:$0xff]
    %v220 = vld [vmem:[#allocation5 + $0x468] sm:$0xff]
    %v221 = vld [vmem:[#allocation5 + $0x470] sm:$0xff]
    %v222 = vld [vmem:[#allocation5 + $0x478] sm:$0xff]
    %v223 = vld [vmem:[#allocation5 + $0x480] sm:$0xff]
    %v224 = vld [vmem:[#allocation5 + $0x488] sm:$0xff]
    %v225 = vld [vmem:[#allocation5 + $0x490] sm:$0xff]
    %v226 = vld [vmem:[#allocation5 + $0x498] sm:$0xff]
    %v227 = vld [vmem:[#allocation5 + $0x4a0] sm:$0xff]
    %v228 = vld [vmem:[#allocation5 + $0x4a8] sm:$0xff]
    %v229 = vld [vmem:[#allocation5 + $0x4b0] sm:$0xff]
    %v230 = vld [vmem:[#allocation5 + $0x4b8] sm:$0xff]
    %v231 = vld [vmem:[#allocation5 + $0x4c0] sm:$0xff]
    %v232 = vld [vmem:[#allocation5 + $0x4c8] sm:$0xff]
    %v233 = vld [vmem:[#allocation5 + $0x4d0] sm:$0xff]
    %v234 = vld [vmem:[#allocation5 + $0x4d8] sm:$0xff]
    %v235 = vld [vmem:[#allocation5 + $0x4e0] sm:$0xff]
    %v236 = vld [vmem:[#allocation5 + $0x4e8] sm:$0xff]
    %v237 = vld [vmem:[#allocation5 + $0x4f0] sm:$0xff]
    %v238 = vld [vmem:[#allocation5 + $0x4f8] sm:$0xff]
    %v239 = vld [vmem:[#allocation5 + $0x500] sm:$0xff]
    %v240 = vld [vmem:[#allocation5 + $0x508] sm:$0xff]
    %v241 = vld [vmem:[#allocation5 + $0x510] sm:$0xff]
    %v242 = vld [vmem:[#allocation5 + $0x518] sm:$0xff]
    %v243 = vld [vmem:[#allocation5 + $0x520] sm:$0xff]
    %v244 = vld [vmem:[#allocation5 + $0x528] sm:$0xff]
    %v245 = vld [vmem:[#allocation5 + $0x530] sm:$0xff]
    %v246 = vld [vmem:[#allocation5 + $0x538] sm:$0xff]
    %v247 = vld [vmem:[#allocation5 + $0x540] sm:$0xff]
    %v248 = vld [vmem:[#allocation5 + $0x548] sm:$0xff]
    %v249 = vld [vmem:[#allocation5 + $0x550] sm:$0xff]
    %v250 = vld [vmem:[#allocation5 + $0x558] sm:$0xff]
    %v251 = vld [vmem:[#allocation5 + $0x560] sm:$0xff]
    %v252 = vld [vmem:[#allocation5 + $0x568] sm:$0xff]
    %v253 = vld [vmem:[#allocation5 + $0x570] sm:$0xff]
    %v254 = vld [vmem:[#allocation5 + $0x578] sm:$0xff]
    %v255 = vld [vmem:[#allocation5 + $0x580] sm:$0xff]
    %v256 = vld [vmem:[#allocation5 + $0x588] sm:$0xff]
    %v257 = vld [vmem:[#allocation5 + $0x590] sm:$0xff]
    %v258 = vld [vmem:[#allocation5 + $0x598] sm:$0xff]
    %v259 = vld [vmem:[#allocation5 + $0x5a0] sm:$0xff]
    %v260 = vld [vmem:[#allocation5 + $0x5a8] sm:$0xff]
    %v261 = vld [vmem:[#allocation5 + $0x5b0] sm:$0xff]
    %v262 = vld [vmem:[#allocation5 + $0x5b8] sm:$0xff]
    %v263 = vld [vmem:[#allocation5 + $0x5c0] sm:$0xff]
    %v264 = vld [vmem:[#allocation5 + $0x5c8] sm:$0xff]
    %v265 = vld [vmem:[#allocation5 + $0x5d0] sm:$0xff]
    %v266 = vld [vmem:[#allocation5 + $0x5d8] sm:$0xff]
    %v267 = vld [vmem:[#allocation5 + $0x5e0] sm:$0xff]
    %v268 = vld [vmem:[#allocation5 + $0x5e8] sm:$0xff]
    %v269 = vld [vmem:[#allocation5 + $0x5f0] sm:$0xff]
    %v270 = vld [vmem:[#allocation5 + $0x5f8] sm:$0xff]
    %v271 = vld [vmem:[#allocation5 + $0x600] sm:$0xff]
    %v272 = vld [vmem:[#allocation5 + $0x608] sm:$0xff]
    %v273 = vld [vmem:[#allocation5 + $0x610] sm:$0xff]
    %v274 = vld [vmem:[#allocation5 + $0x618] sm:$0xff]
    %v275 = vld [vmem:[#allocation5 + $0x620] sm:$0xff]
    %v276 = vld [vmem:[#allocation5 + $0x628] sm:$0xff]
    %v277 = vld [vmem:[#allocation5 + $0x630] sm:$0xff]
    %v278 = vld [vmem:[#allocation5 + $0x638] sm:$0xff]
    %v279 = vld [vmem:[#allocation5 + $0x640] sm:$0xff]
    %v280 = vld [vmem:[#allocation5 + $0x648] sm:$0xff]
    %v281 = vld [vmem:[#allocation5 + $0x650] sm:$0xff]
    %v282 = vld [vmem:[#allocation5 + $0x658] sm:$0xff]
    %v283 = vld [vmem:[#allocation5 + $0x660] sm:$0xff]
    %v284 = vld [vmem:[#allocation5 + $0x668] sm:$0xff]
    %v285 = vld [vmem:[#allocation5 + $0x670] sm:$0xff]
    %v286 = vld [vmem:[#allocation5 + $0x678] sm:$0xff]
    %v287 = vld [vmem:[#allocation5 + $0x680] sm:$0xff]
    %v288 = vld [vmem:[#allocation5 + $0x688] sm:$0xff]
    %v289 = vld [vmem:[#allocation5 + $0x690] sm:$0xff]
    %v290 = vld [vmem:[#allocation5 + $0x698] sm:$0xff]
    %v291 = vld [vmem:[#allocation5 + $0x6a0] sm:$0xff]
    %v292 = vld [vmem:[#allocation5 + $0x6a8] sm:$0xff]
    %v293 = vld [vmem:[#allocation5 + $0x6b0] sm:$0xff]
    %v294 = vld [vmem:[#allocation5 + $0x6b8] sm:$0xff]
    %v295 = vld [vmem:[#allocation5 + $0x6c0] sm:$0xff]
    %v296 = vld [vmem:[#allocation5 + $0x6c8] sm:$0xff]
    %v297 = vld [vmem:[#allocation5 + $0x6d0] sm:$0xff]
    %v298 = vld [vmem:[#allocation5 + $0x6d8] sm:$0xff]
    %v299 = vld [vmem:[#allocation5 + $0x6e0] sm:$0xff]
    %v300 = vld [vmem:[#allocation5 + $0x6e8] sm:$0xff]
    %v301 = vld [vmem:[#allocation5 + $0x6f0] sm:$0xff]
    %v302 = vld [vmem:[#allocation5 + $0x6f8] sm:$0xff]
    %v303 = vld [vmem:[#allocation5 + $0x700] sm:$0xff]
    %v304 = vld [vmem:[#allocation5 + $0x708] sm:$0xff]
    %v305 = vld [vmem:[#allocation5 + $0x710] sm:$0xff]
    %v306 = vld [vmem:[#allocation5 + $0x718] sm:$0xff]
    %v307 = vld [vmem:[#allocation5 + $0x720] sm:$0xff]
    %v308 = vld [vmem:[#allocation5 + $0x728] sm:$0xff]
    %v309 = vld [vmem:[#allocation5 + $0x730] sm:$0xff]
    %v310 = vld [vmem:[#allocation5 + $0x738] sm:$0xff]
    %v311 = vld [vmem:[#allocation5 + $0x740] sm:$0xff]
    %v312 = vld [vmem:[#allocation5 + $0x748] sm:$0xff]
    %v313 = vld [vmem:[#allocation5 + $0x750] sm:$0xff]
    %v314 = vld [vmem:[#allocation5 + $0x758] sm:$0xff]
    %v315 = vld [vmem:[#allocation5 + $0x760] sm:$0xff]
    %v316 = vld [vmem:[#allocation5 + $0x768] sm:$0xff]
    %v317 = vld [vmem:[#allocation5 + $0x770] sm:$0xff]
    %v318 = vld [vmem:[#allocation5 + $0x778] sm:$0xff]
    %v319 = vld [vmem:[#allocation5 + $0x780] sm:$0xff]
    %v320 = vld [vmem:[#allocation5 + $0x788] sm:$0xff]
    %v321 = vld [vmem:[#allocation5 + $0x790] sm:$0xff]
    %v322 = vld [vmem:[#allocation5 + $0x798] sm:$0xff]
    %v323 = vld [vmem:[#allocation5 + $0x7a0] sm:$0xff]
    %v324 = vld [vmem:[#allocation5 + $0x7a8] sm:$0xff]
    %v325 = vld [vmem:[#allocation5 + $0x7b0] sm:$0xff]
    %v326 = vld [vmem:[#allocation5 + $0x7b8] sm:$0xff]
    %v327 = vld [vmem:[#allocation5 + $0x7c0] sm:$0xff]
    %v328 = vld [vmem:[#allocation5 + $0x7c8] sm:$0xff]
    %v329 = vld [vmem:[#allocation5 + $0x7d0] sm:$0xff]
    %v330 = vld [vmem:[#allocation5 + $0x7d8] sm:$0xff]
    %v331 = vld [vmem:[#allocation5 + $0x7e0] sm:$0xff]
    %v332 = vld [vmem:[#allocation5 + $0x7e8] sm:$0xff]
    %v333 = vld [vmem:[#allocation5 + $0x7f0] sm:$0xff]
    %v334 = vld [vmem:[#allocation5 + $0x7f8] sm:$0xff]
    %v335 = vld [vmem:[#allocation7] sm:$0xff]
    %v336 = vld [vmem:[#allocation7 + $0x8] sm:$0xff]
    %v337 = vld [vmem:[#allocation7 + $0x10] sm:$0xff]
    %v338 = vld [vmem:[#allocation7 + $0x18] sm:$0xff]
    %v339 = vld [vmem:[#allocation7 + $0x20] sm:$0xff]
    %v340 = vld [vmem:[#allocation7 + $0x28] sm:$0xff]
    %v341 = vld [vmem:[#allocation7 + $0x30] sm:$0xff]
    %v342 = vld [vmem:[#allocation7 + $0x38] sm:$0xff]
    %v343 = vld [vmem:[#allocation7 + $0x40] sm:$0xff]
    %v344 = vld [vmem:[#allocation7 + $0x48] sm:$0xff]
    %v345 = vld [vmem:[#allocation7 + $0x50] sm:$0xff]
    %v346 = vld [vmem:[#allocation7 + $0x58] sm:$0xff]
    %v347 = vld [vmem:[#allocation7 + $0x60] sm:$0xff]
    %v348 = vld [vmem:[#allocation7 + $0x68] sm:$0xff]
    %v349 = vld [vmem:[#allocation7 + $0x70] sm:$0xff]
    %v350 = vld [vmem:[#allocation7 + $0x78] sm:$0xff]
    %v351 = vld [vmem:[#allocation7 + $0x80] sm:$0xff]
    %v352 = vld [vmem:[#allocation7 + $0x88] sm:$0xff]
    %v353 = vld [vmem:[#allocation7 + $0x90] sm:$0xff]
    %v354 = vld [vmem:[#allocation7 + $0x98] sm:$0xff]
    %v355 = vld [vmem:[#allocation7 + $0xa0] sm:$0xff]
    %v356 = vld [vmem:[#allocation7 + $0xa8] sm:$0xff]
    %v357 = vld [vmem:[#allocation7 + $0xb0] sm:$0xff]
    %v358 = vld [vmem:[#allocation7 + $0xb8] sm:$0xff]
    %v359 = vld [vmem:[#allocation7 + $0xc0] sm:$0xff]
    %v360 = vld [vmem:[#allocation7 + $0xc8] sm:$0xff]
    %v361 = vld [vmem:[#allocation7 + $0xd0] sm:$0xff]
    %v362 = vld [vmem:[#allocation7 + $0xd8] sm:$0xff]
    %v363 = vld [vmem:[#allocation7 + $0xe0] sm:$0xff]
    %v364 = vld [vmem:[#allocation7 + $0xe8] sm:$0xff]
    %v365 = vld [vmem:[#allocation7 + $0xf0] sm:$0xff]
    %v366 = vld [vmem:[#allocation7 + $0xf8] sm:$0xff]
    %v367 = vld [vmem:[#allocation7 + $0x100] sm:$0xff]
    %v368 = vld [vmem:[#allocation7 + $0x108] sm:$0xff]
    %v369 = vld [vmem:[#allocation7 + $0x110] sm:$0xff]
    %v370 = vld [vmem:[#allocation7 + $0x118] sm:$0xff]
    %v371 = vld [vmem:[#allocation7 + $0x120] sm:$0xff]
    %v372 = vld [vmem:[#allocation7 + $0x128] sm:$0xff]
    %v373 = vld [vmem:[#allocation7 + $0x130] sm:$0xff]
    %v374 = vld [vmem:[#allocation7 + $0x138] sm:$0xff]
    %v375 = vld [vmem:[#allocation7 + $0x140] sm:$0xff]
    %v376 = vld [vmem:[#allocation7 + $0x148] sm:$0xff]
    %v377 = vld [vmem:[#allocation7 + $0x150] sm:$0xff]
    %v378 = vld [vmem:[#allocation7 + $0x158] sm:$0xff]
    %v379 = vld [vmem:[#allocation7 + $0x160] sm:$0xff]
    %v380 = vld [vmem:[#allocation7 + $0x168] sm:$0xff]
    %v381 = vld [vmem:[#allocation7 + $0x170] sm:$0xff]
    %v382 = vld [vmem:[#allocation7 + $0x178] sm:$0xff]
    %v383 = vld [vmem:[#allocation7 + $0x180] sm:$0xff]
    %v384 = vld [vmem:[#allocation7 + $0x188] sm:$0xff]
    %v385 = vld [vmem:[#allocation7 + $0x190] sm:$0xff]
    %v386 = vld [vmem:[#allocation7 + $0x198] sm:$0xff]
    %v387 = vld [vmem:[#allocation7 + $0x1a0] sm:$0xff]
    %v388 = vld [vmem:[#allocation7 + $0x1a8] sm:$0xff]
    %v389 = vld [vmem:[#allocation7 + $0x1b0] sm:$0xff]
    %v390 = vld [vmem:[#allocation7 + $0x1b8] sm:$0xff]
    %v391 = vld [vmem:[#allocation7 + $0x1c0] sm:$0xff]
    %v392 = vld [vmem:[#allocation7 + $0x1c8] sm:$0xff]
    %v393 = vld [vmem:[#allocation7 + $0x1d0] sm:$0xff]
    %v394 = vld [vmem:[#allocation7 + $0x1d8] sm:$0xff]
    %v395 = vld [vmem:[#allocation7 + $0x1e0] sm:$0xff]
    %v396 = vld [vmem:[#allocation7 + $0x1e8] sm:$0xff]
    %v397 = vld [vmem:[#allocation7 + $0x1f0] sm:$0xff]
    %v398 = vld [vmem:[#allocation7 + $0x1f8] sm:$0xff]
    %v399 = vld [vmem:[%s3] sm:$0xf]
    %400 = vmatprep.subr.mxu0 %v200
    %401 = vmatpush1.msra.mxu0 %v199
    %402 = vmatprep.subr.mxu0 %v192
    %403 = vmatpush1.msra.mxu0 %v191
    %404 = vmatprep.subr.mxu0 %v184
    %405 = vmatpush1.msra.mxu0 %v183
    %406 = vmatprep.subr.mxu0 %v176
    %407 = vmatpush1.msra.mxu0 %v175
    %408 = vmatprep.subr.mxu0 %v168
    %409 = vmatpush1.msra.mxu0 %v167
    %410 = vmatprep.subr.mxu0 %v160
    %411 = vmatpush1.msra.mxu0 %v159
    %412 = vmatprep.subr.mxu0 %v152
    %413 = vmatpush1.msra.mxu0 %v151
    %414 = vmatprep.subr.mxu0 %v144
    %415 = vmatpush1.msra.mxu0 %v143
    %416 = vmatprep.subr.mxu0 %v136
    %417 = vmatpush1.msra.mxu0 %v135
    %418 = vmatprep.subr.mxu0 %v128
    %419 = vmatpush1.msra.mxu0 %v127
    %420 = vmatprep.subr.mxu0 %v120
    %421 = vmatpush1.msra.mxu0 %v119
    %422 = vmatprep.subr.mxu0 %v112
    %423 = vmatpush1.msra.mxu0 %v111
    %424 = vmatprep.subr.mxu0 %v104
    %425 = vmatpush1.msra.mxu0 %v103
    %426 = vmatprep.subr.mxu0 %v96
    %427 = vmatpush1.msra.mxu0 %v95
    %428 = vmatprep.subr.mxu0 %v88
    %429 = vmatpush1.msra.mxu0 %v87
    %430 = vmatprep.subr.mxu0 %v80
    %431 = vmatpush1.msra.mxu0 %v79
    %432 = vmatprep.subr.mxu0 %v328
    %433 = vmatpush2.msra.mxu0 %v327
    %434 = vmatprep.subr.mxu0 %v320
    %435 = vmatpush2.msra.mxu0 %v319
    %436 = vmatprep.subr.mxu0 %v312
    %437 = vmatpush2.msra.mxu0 %v311
    %438 = vmatprep.subr.mxu0 %v304
    %439 = vmatpush2.msra.mxu0 %v303
    %440 = vmatprep.subr.mxu0 %v296
    %441 = vmatpush2.msra.mxu0 %v295
    %442 = vmatprep.subr.mxu0 %v288
    %443 = vmatpush2.msra.mxu0 %v287
    %444 = vmatprep.subr.mxu0 %v280
    %445 = vmatpush2.msra.mxu0 %v279
    %446 = vmatprep.subr.mxu0 %v272
    %447 = vmatpush2.msra.mxu0 %v271
    %448 = vmatprep.subr.mxu0 %v264
    %449 = vmatpush2.msra.mxu0 %v263
    %450 = vmatprep.subr.mxu0 %v256
    %451 = vmatpush2.msra.mxu0 %v255
    %452 = vmatprep.subr.mxu0 %v248
    %453 = vmatpush2.msra.mxu0 %v247
    %454 = vmatprep.subr.mxu0 %v240
    %455 = vmatpush2.msra.mxu0 %v239
    %456 = vmatprep.subr.mxu0 %v232
    %457 = vmatpush2.msra.mxu0 %v231
    %458 = vmatprep.subr.mxu0 %v224
    %459 = vmatpush2.msra.mxu0 %v223
    %460 = vmatprep.subr.mxu0 %v216
    %461 = vmatpush2.msra.mxu0 %v215
    %462 = vmatprep.subr.mxu0 %v208
    %463 = vmatpush2.msra.mxu0 %v207
    %464 = vmatprep.mubr.f32.mxu0 0.0
    %465 = vmatmul.mubr.f32.gmra.mxu0 0.0
    %v466 = vpop.f32.mrf.mxu0
    %v467 = vadd.f32 0.0, %v466
    %v468 = vpop.f32.mrf.mxu0
    %v469 = vadd.f32 0.0, %v468
    %470 = vdwg.mxu0
    %471 = vmatprep.subr.mxu0 %v202
    %472 = vmatpush1.msra.mxu0 %v201
    %473 = vmatprep.subr.mxu0 %v194
    %474 = vmatpush1.msra.mxu0 %v193
    %475 = vmatprep.subr.mxu0 %v186
    %476 = vmatpush1.msra.mxu0 %v185
    %477 = vmatprep.subr.mxu0 %v178
    %478 = vmatpush1.msra.mxu0 %v177
    %479 = vmatprep.subr.mxu0 %v170
    %480 = vmatpush1.msra.mxu0 %v169
    %481 = vmatprep.subr.mxu0 %v162
    %482 = vmatpush1.msra.mxu0 %v161
    %483 = vmatprep.subr.mxu0 %v154
    %484 = vmatpush1.msra.mxu0 %v153
    %485 = vmatprep.subr.mxu0 %v146
    %486 = vmatpush1.msra.mxu0 %v145
    %487 = vmatprep.subr.mxu0 %v138
    %488 = vmatpush1.msra.mxu0 %v137
    %489 = vmatprep.subr.mxu0 %v130
    %490 = vmatpush1.msra.mxu0 %v129
    %491 = vmatprep.subr.mxu0 %v122
    %492 = vmatpush1.msra.mxu0 %v121
    %493 = vmatprep.subr.mxu0 %v114
    %494 = vmatpush1.msra.mxu0 %v113
    %495 = vmatprep.subr.mxu0 %v106
    %496 = vmatpush1.msra.mxu0 %v105
    %497 = vmatprep.subr.mxu0 %v98
    %498 = vmatpush1.msra.mxu0 %v97
    %499 = vmatprep.subr.mxu0 %v90
    %500 = vmatpush1.msra.mxu0 %v89
    %501 = vmatprep.subr.mxu0 %v82
    %502 = vmatpush1.msra.mxu0 %v81
    %503 = vmatprep.subr.mxu0 %v330
    %504 = vmatpush2.msra.mxu0 %v329
    %505 = vmatprep.subr.mxu0 %v322
    %506 = vmatpush2.msra.mxu0 %v321
    %507 = vmatprep.subr.mxu0 %v314
    %508 = vmatpush2.msra.mxu0 %v313
    %509 = vmatprep.subr.mxu0 %v306
    %510 = vmatpush2.msra.mxu0 %v305
    %511 = vmatprep.subr.mxu0 %v298
    %512 = vmatpush2.msra.mxu0 %v297
    %513 = vmatprep.subr.mxu0 %v290
    %514 = vmatpush2.msra.mxu0 %v289
    %515 = vmatprep.subr.mxu0 %v282
    %516 = vmatpush2.msra.mxu0 %v281
    %517 = vmatprep.subr.mxu0 %v274
    %518 = vmatpush2.msra.mxu0 %v273
    %519 = vmatprep.subr.mxu0 %v266
    %520 = vmatpush2.msra.mxu0 %v265
    %521 = vmatprep.subr.mxu0 %v258
    %522 = vmatpush2.msra.mxu0 %v257
    %523 = vmatprep.subr.mxu0 %v250
    %524 = vmatpush2.msra.mxu0 %v249
    %525 = vmatprep.subr.mxu0 %v242
    %526 = vmatpush2.msra.mxu0 %v241
    %527 = vmatprep.subr.mxu0 %v234
    %528 = vmatpush2.msra.mxu0 %v233
    %529 = vmatprep.subr.mxu0 %v226
    %530 = vmatpush2.msra.mxu0 %v225
    %531 = vmatprep.subr.mxu0 %v218
    %532 = vmatpush2.msra.mxu0 %v217
    %533 = vmatprep.subr.mxu0 %v210
    %534 = vmatpush2.msra.mxu0 %v209
    %535 = vmatprep.mubr.f32.mxu0 0.0
    %536 = vmatmul.mubr.f32.gmra.mxu0 0.0
    %v537 = vpop.f32.mrf.mxu0
    %v538 = vadd.f32 0.0, %v537
    %v539 = vpop.f32.mrf.mxu0
    %v540 = vadd.f32 0.0, %v539
    %541 = vdwg.mxu0
    %542 = vmatprep.subr.mxu0 %v204
    %543 = vmatpush1.msra.mxu0 %v203
    %544 = vmatprep.subr.mxu0 %v196
    %545 = vmatpush1.msra.mxu0 %v195
    %546 = vmatprep.subr.mxu0 %v188
    %547 = vmatpush1.msra.mxu0 %v187
    %548 = vmatprep.subr.mxu0 %v180
    %549 = vmatpush1.msra.mxu0 %v179
    %550 = vmatprep.subr.mxu0 %v172
    %551 = vmatpush1.msra.mxu0 %v171
    %552 = vmatprep.subr.mxu0 %v164
    %553 = vmatpush1.msra.mxu0 %v163
    %554 = vmatprep.subr.mxu0 %v156
    %555 = vmatpush1.msra.mxu0 %v155
    %556 = vmatprep.subr.mxu0 %v148
    %557 = vmatpush1.msra.mxu0 %v147
    %558 = vmatprep.subr.mxu0 %v140
    %559 = vmatpush1.msra.mxu0 %v139
    %560 = vmatprep.subr.mxu0 %v132
    %561 = vmatpush1.msra.mxu0 %v131
    %562 = vmatprep.subr.mxu0 %v124
    %563 = vmatpush1.msra.mxu0 %v123
    %564 = vmatprep.subr.mxu0 %v116
    %565 = vmatpush1.msra.mxu0 %v115
    %566 = vmatprep.subr.mxu0 %v108
    %567 = vmatpush1.msra.mxu0 %v107
    %568 = vmatprep.subr.mxu0 %v100
    %569 = vmatpush1.msra.mxu0 %v99
    %570 = vmatprep.subr.mxu0 %v92
    %571 = vmatpush1.msra.mxu0 %v91
    %572 = vmatprep.subr.mxu0 %v84
    %573 = vmatpush1.msra.mxu0 %v83
    %574 = vmatprep.subr.mxu0 %v332
    %575 = vmatpush2.msra.mxu0 %v331
    %576 = vmatprep.subr.mxu0 %v324
    %577 = vmatpush2.msra.mxu0 %v323
    %578 = vmatprep.subr.mxu0 %v316
    %579 = vmatpush2.msra.mxu0 %v315
    %580 = vmatprep.subr.mxu0 %v308
    %581 = vmatpush2.msra.mxu0 %v307
    %582 = vmatprep.subr.mxu0 %v300
    %583 = vmatpush2.msra.mxu0 %v299
    %584 = vmatprep.subr.mxu0 %v292
    %585 = vmatpush2.msra.mxu0 %v291
    %586 = vmatprep.subr.mxu0 %v284
    %587 = vmatpush2.msra.mxu0 %v283
    %588 = vmatprep.subr.mxu0 %v276
    %589 = vmatpush2.msra.mxu0 %v275
    %590 = vmatprep.subr.mxu0 %v268
    %591 = vmatpush2.msra.mxu0 %v267
    %592 = vmatprep.subr.mxu0 %v260
    %593 = vmatpush2.msra.mxu0 %v259
    %594 = vmatprep.subr.mxu0 %v252
    %595 = vmatpush2.msra.mxu0 %v251
    %596 = vmatprep.subr.mxu0 %v244
    %597 = vmatpush2.msra.mxu0 %v243
    %598 = vmatprep.subr.mxu0 %v236
    %599 = vmatpush2.msra.mxu0 %v235
    %600 = vmatprep.subr.mxu0 %v228
    %601 = vmatpush2.msra.mxu0 %v227
    %602 = vmatprep.subr.mxu0 %v220
    %603 = vmatpush2.msra.mxu0 %v219
    %604 = vmatprep.subr.mxu0 %v212
    %605 = vmatpush2.msra.mxu0 %v211
    %606 = vmatprep.mubr.f32.mxu0 0.0
    %607 = vmatmul.mubr.f32.gmra.mxu0 0.0
    %v608 = vpop.f32.mrf.mxu0
    %v609 = vadd.f32 0.0, %v608
    %v610 = vpop.f32.mrf.mxu0
    %v611 = vadd.f32 0.0, %v610
    %612 = vdwg.mxu0
    %613 = vmatprep.subr.mxu0 %v206
    %614 = vmatpush1.msra.mxu0 %v205
    %615 = vmatprep.subr.mxu0 %v198
    %616 = vmatpush1.msra.mxu0 %v197
    %617 = vmatprep.subr.mxu0 %v190
    %618 = vmatpush1.msra.mxu0 %v189
    %619 = vmatprep.subr.mxu0 %v182
    %620 = vmatpush1.msra.mxu0 %v181
    %621 = vmatprep.subr.mxu0 %v174
    %622 = vmatpush1.msra.mxu0 %v173
    %623 = vmatprep.subr.mxu0 %v166
    %624 = vmatpush1.msra.mxu0 %v165
    %625 = vmatprep.subr.mxu0 %v158
    %626 = vmatpush1.msra.mxu0 %v157
    %627 = vmatprep.subr.mxu0 %v150
    %628 = vmatpush1.msra.mxu0 %v149
    %629 = vmatprep.subr.mxu0 %v142
    %630 = vmatpush1.msra.mxu0 %v141
    %631 = vmatprep.subr.mxu0 %v134
    %632 = vmatpush1.msra.mxu0 %v133
    %633 = vmatprep.subr.mxu0 %v126
    %634 = vmatpush1.msra.mxu0 %v125
    %635 = vmatprep.subr.mxu0 %v118
    %636 = vmatpush1.msra.mxu0 %v117
    %637 = vmatprep.subr.mxu0 %v110
    %638 = vmatpush1.msra.mxu0 %v109
    %639 = vmatprep.subr.mxu0 %v102
    %640 = vmatpush1.msra.mxu0 %v101
    %641 = vmatprep.subr.mxu0 %v94
    %642 = vmatpush1.msra.mxu0 %v93
    %643 = vmatprep.subr.mxu0 %v86
    %644 = vmatpush1.msra.mxu0 %v85
    %645 = vmatprep.subr.mxu0 %v334
    %646 = vmatpush2.msra.mxu0 %v333
    %647 = vmatprep.subr.mxu0 %v326
    %648 = vmatpush2.msra.mxu0 %v325
    %649 = vmatprep.subr.mxu0 %v318
    %650 = vmatpush2.msra.mxu0 %v317
    %651 = vmatprep.subr.mxu0 %v310
    %652 = vmatpush2.msra.mxu0 %v309
    %653 = vmatprep.subr.mxu0 %v302
    %654 = vmatpush2.msra.mxu0 %v301
    %655 = vmatprep.subr.mxu0 %v294
    %656 = vmatpush2.msra.mxu0 %v293
    %657 = vmatprep.subr.mxu0 %v286
    %658 = vmatpush2.msra.mxu0 %v285
    %659 = vmatprep.subr.mxu0 %v278
    %660 = vmatpush2.msra.mxu0 %v277
    %661 = vmatprep.subr.mxu0 %v270
    %662 = vmatpush2.msra.mxu0 %v269
    %663 = vmatprep.subr.mxu0 %v262
    %664 = vmatpush2.msra.mxu0 %v261
    %665 = vmatprep.subr.mxu0 %v254
    %666 = vmatpush2.msra.mxu0 %v253
    %667 = vmatprep.subr.mxu0 %v246
    %668 = vmatpush2.msra.mxu0 %v245
    %669 = vmatprep.subr.mxu0 %v238
    %670 = vmatpush2.msra.mxu0 %v237
    %671 = vmatprep.subr.mxu0 %v230
    %672 = vmatpush2.msra.mxu0 %v229
    %673 = vmatprep.subr.mxu0 %v222
    %674 = vmatpush2.msra.mxu0 %v221
    %675 = vmatprep.subr.mxu0 %v214
    %676 = vmatpush2.msra.mxu0 %v213
    %677 = vmatprep.mubr.f32.mxu0 0.0
    %678 = vmatmul.mubr.f32.gmra.mxu0 0.0
    %v679 = vpop.f32.mrf.mxu0
    %v680 = vadd.f32 0.0, %v679
    %v681 = vpop.f32.mrf.mxu0
    %v682 = vadd.f32 0.0, %v681
    %683 = vdwg.mxu0
    %v684 = vld [vmem:[#allocation2] sm:$0xff]
    %v685 = vld [vmem:[#allocation2 + $0x8] sm:$0xff]
    %v686 = vld [vmem:[#allocation2 + $0x10] sm:$0xff]
    %v687 = vld [vmem:[#allocation2 + $0x18] sm:$0xff]
    %v688 = vadd.f32 %v684, %v467
    %v689 = vadd.f32 %v685, %v469
    %v690 = vadd.f32 %v686, %v538
    %v691 = vadd.f32 %v687, %v540
    %v692 = vtanh.pop %v688
    %v693 = vxor.u32 %v689, 2147483648
    %v694 = vmul.f32 %v693, 1.442695
    %v695 = vpow.pop %v694
    %v696 = vadd.f32 %v695, 1.0
    %v697 = vrcp.pop %v696
    %v698 = vmul.f32 1.0, %v697
    %v699 = vxor.u32 %v690, 2147483648
    %v700 = vmul.f32 %v699, 1.442695
    %v701 = vpow.pop %v700
    %v702 = vadd.f32 %v701, 1.0
    %v703 = vrcp.pop %v702
    %v704 = vmul.f32 1.0, %v703
    %v705 = vxor.u32 %v691, 2147483648
    %v706 = vmul.f32 %v705, 1.442695
    %v707 = vpow.pop %v706
    %v708 = vadd.f32 %v707, 1.0
    %v709 = vrcp.pop %v708
    %v710 = vmul.f32 1.0, %v709
    %v711 = vmul.f32 %v692, %v698
    %v712 = vmul.f32 %v704, 0.0
    %v713 = vadd.f32 %v711, %v712
    %v714 = vtanh.pop %v713
    %v715 = vmul.f32 %v714, %v710
    %716 = vmatprep.subr.mxu0 %v396
    %717 = vmatpush1.msra.mxu0 %v395
    %718 = vmatprep.subr.mxu0 %v392
    %719 = vmatpush1.msra.mxu0 %v391
    %720 = vmatprep.subr.mxu0 %v388
    %721 = vmatpush1.msra.mxu0 %v387
    %722 = vmatprep.subr.mxu0 %v384
    %723 = vmatpush1.msra.mxu0 %v383
    %724 = vmatprep.subr.mxu0 %v380
    %725 = vmatpush1.msra.mxu0 %v379
    %726 = vmatprep.subr.mxu0 %v376
    %727 = vmatpush1.msra.mxu0 %v375
    %728 = vmatprep.subr.mxu0 %v372
    %729 = vmatpush1.msra.mxu0 %v371
    %730 = vmatprep.subr.mxu0 %v368
    %731 = vmatpush1.msra.mxu0 %v367
    %732 = vmatprep.subr.mxu0 %v364
    %733 = vmatpush1.msra.mxu0 %v363
    %734 = vmatprep.subr.mxu0 %v360
    %735 = vmatpush1.msra.mxu0 %v359
    %736 = vmatprep.subr.mxu0 %v356
    %737 = vmatpush1.msra.mxu0 %v355
    %738 = vmatprep.subr.mxu0 %v352
    %739 = vmatpush1.msra.mxu0 %v351
    %740 = vmatprep.subr.mxu0 %v348
    %741 = vmatpush1.msra.mxu0 %v347
    %742 = vmatprep.subr.mxu0 %v344
    %743 = vmatpush1.msra.mxu0 %v343
    %744 = vmatprep.subr.mxu0 %v340
    %745 = vmatpush1.msra.mxu0 %v339
    %746 = vmatprep.subr.mxu0 %v336
    %747 = vmatpush1.msra.mxu0 %v335
    %748 = vmatprep.subr.mxu0 0.0
    %749 = vmatpush2.msra.mxu0 0.0
    %750 = vmatprep.subr.mxu0 0.0
    %751 = vmatpush2.msra.mxu0 0.0
    %752 = vmatprep.subr.mxu0 0.0
    %753 = vmatpush2.msra.mxu0 0.0
    %754 = vmatprep.subr.mxu0 0.0
    %755 = vmatpush2.msra.mxu0 0.0
    %756 = vmatprep.subr.mxu0 0.0
    %757 = vmatpush2.msra.mxu0 0.0
    %758 = vmatprep.subr.mxu0 0.0
    %759 = vmatpush2.msra.mxu0 0.0
    %760 = vmatprep.subr.mxu0 0.0
    %761 = vmatpush2.msra.mxu0 0.0
    %762 = vmatprep.subr.mxu0 0.0
    %763 = vmatpush2.msra.mxu0 0.0
    %764 = vmatprep.subr.mxu0 0.0
    %765 = vmatpush2.msra.mxu0 0.0
    %766 = vmatprep.subr.mxu0 0.0
    %767 = vmatpush2.msra.mxu0 0.0
    %768 = vmatprep.subr.mxu0 0.0
    %769 = vmatpush2.msra.mxu0 0.0
    %770 = vmatprep.subr.mxu0 0.0
    %771 = vmatpush2.msra.mxu0 0.0
    %772 = vmatprep.subr.mxu0 0.0
    %773 = vmatpush2.msra.mxu0 0.0
    %774 = vmatprep.subr.mxu0 0.0
    %775 = vmatpush2.msra.mxu0 0.0
    %776 = vmatprep.subr.mxu0 0.0
    %777 = vmatpush2.msra.mxu0 0.0
    %778 = vmatprep.subr.mxu0 0.0
    %779 = vmatpush2.msra.mxu0 0.0
    %780 = vmatprep.mubr.f32.mxu0 0.0
    %781 = vmatmul.mubr.f32.gmra.mxu0 %v715
    %v782 = vpop.f32.mrf.mxu0
    %v783 = vadd.f32 %v609, %v782
    %v784 = vpop.f32.mrf.mxu0
    %v785 = vadd.f32 %v611, %v784
    %786 = vdwg.mxu0
    %787 = vmatprep.subr.mxu0 %v398
    %788 = vmatpush1.msra.mxu0 %v397
    %789 = vmatprep.subr.mxu0 %v394
    %790 = vmatpush1.msra.mxu0 %v393
    %791 = vmatprep.subr.mxu0 %v390
    %792 = vmatpush1.msra.mxu0 %v389
    %793 = vmatprep.subr.mxu0 %v386
    %794 = vmatpush1.msra.mxu0 %v385
    %795 = vmatprep.subr.mxu0 %v382
    %796 = vmatpush1.msra.mxu0 %v381
    %797 = vmatprep.subr.mxu0 %v378
    %798 = vmatpush1.msra.mxu0 %v377
    %799 = vmatprep.subr.mxu0 %v374
    %800 = vmatpush1.msra.mxu0 %v373
    %801 = vmatprep.subr.mxu0 %v370
    %802 = vmatpush1.msra.mxu0 %v369
    %803 = vmatprep.subr.mxu0 %v366
    %804 = vmatpush1.msra.mxu0 %v365
    %805 = vmatprep.subr.mxu0 %v362
    %806 = vmatpush1.msra.mxu0 %v361
    %807 = vmatprep.subr.mxu0 %v358
    %808 = vmatpush1.msra.mxu0 %v357
    %809 = vmatprep.subr.mxu0 %v354
    %810 = vmatpush1.msra.mxu0 %v353
    %811 = vmatprep.subr.mxu0 %v350
    %812 = vmatpush1.msra.mxu0 %v349
    %813 = vmatprep.subr.mxu0 %v346
    %814 = vmatpush1.msra.mxu0 %v345
    %815 = vmatprep.subr.mxu0 %v342
    %816 = vmatpush1.msra.mxu0 %v341
    %817 = vmatprep.subr.mxu0 %v338
    %818 = vmatpush1.msra.mxu0 %v337
    %819 = vmatprep.subr.mxu0 0.0
    %820 = vmatpush2.msra.mxu0 0.0
    %821 = vmatprep.subr.mxu0 0.0
    %822 = vmatpush2.msra.mxu0 0.0
    %823 = vmatprep.subr.mxu0 0.0
    %824 = vmatpush2.msra.mxu0 0.0
    %825 = vmatprep.subr.mxu0 0.0
    %826 = vmatpush2.msra.mxu0 0.0
    %827 = vmatprep.subr.mxu0 0.0
    %828 = vmatpush2.msra.mxu0 0.0
    %829 = vmatprep.subr.mxu0 0.0
    %830 = vmatpush2.msra.mxu0 0.0
    %831 = vmatprep.subr.mxu0 0.0
    %832 = vmatpush2.msra.mxu0 0.0
    %833 = vmatprep.subr.mxu0 0.0
    %834 = vmatpush2.msra.mxu0 0.0
    %835 = vmatprep.subr.mxu0 0.0
    %836 = vmatpush2.msra.mxu0 0.0
    %837 = vmatprep.subr.mxu0 0.0
    %838 = vmatpush2.msra.mxu0 0.0
    %839 = vmatprep.subr.mxu0 0.0
    %840 = vmatpush2.msra.mxu0 0.0
    %841 = vmatprep.subr.mxu0 0.0
    %842 = vmatpush2.msra.mxu0 0.0
    %843 = vmatprep.subr.mxu0 0.0
    %844 = vmatpush2.msra.mxu0 0.0
    %845 = vmatprep.subr.mxu0 0.0
    %846 = vmatpush2.msra.mxu0 0.0
    %847 = vmatprep.subr.mxu0 0.0
    %848 = vmatpush2.msra.mxu0 0.0
    %849 = vmatprep.subr.mxu0 0.0
    %850 = vmatpush2.msra.mxu0 0.0
    %851 = vmatprep.mubr.f32.mxu0 0.0
    %852 = vmatmul.mubr.f32.gmra.mxu0 %v715
    %v853 = vpop.f32.mrf.mxu0
    %v854 = vadd.f32 %v680, %v853
    %v855 = vpop.f32.mrf.mxu0
    %v856 = vadd.f32 %v682, %v855
    %857 = vdwg.mxu0
    %v859 = vlaneseq
    %v860 = vshrl.u32 %v859, 7
    %v861 = vsub.s32 0, %v860
    %v862 = vrot.slane %v399, %v861
    %v863 = vlaneseq
    %v864 = vshrl.u32 %v863, 7
    %v865 = vsub.s32 1, %v864
    %v866 = vrot.slane %v399, %v865
    %v867 = vlaneseq
    %v868 = vshrl.u32 %v867, 7
    %v869 = vsub.s32 2, %v868
    %v870 = vrot.slane %v399, %v869
    %v871 = vlaneseq
    %v872 = vshrl.u32 %v871, 7
    %v873 = vsub.s32 3, %v872
    %v874 = vrot.slane %v399, %v873
    %v879 = vadd.f32 %v783, %v862
    %v880 = vadd.f32 %v785, %v866
    %v881 = vadd.f32 %v854, %v870
    %v882 = vadd.f32 %v856, %v874
    %v883 = vtanh.pop %v879
    %v884 = vxor.u32 %v880, 2147483648
    %v885 = vmul.f32 %v884, 1.442695
    %v886 = vpow.pop %v885
    %v887 = vadd.f32 %v886, 1.0
    %v888 = vrcp.pop %v887
    %v889 = vmul.f32 1.0, %v888
    %v890 = vxor.u32 %v881, 2147483648
    %v891 = vmul.f32 %v890, 1.442695
    %v892 = vpow.pop %v891
    %v893 = vadd.f32 %v892, 1.0
    %v894 = vrcp.pop %v893
    %v895 = vmul.f32 1.0, %v894
    %v896 = vxor.u32 %v882, 2147483648
    %v897 = vmul.f32 %v896, 1.442695
    %v898 = vpow.pop %v897
    %v899 = vadd.f32 %v898, 1.0
    %v900 = vrcp.pop %v899
    %v901 = vmul.f32 1.0, %v900
    %v902 = vmul.f32 %v883, %v889
    %v903 = vmul.f32 %v895, 0.0
    %v904 = vadd.f32 %v902, %v903
    %v905 = vtanh.pop %v904
    %v906 = vmul.f32 %v905, %v901
    %907 = vmatprep.subr.mxu0 %v200
    %908 = vmatpush1.msra.mxu0 %v199
    %909 = vmatprep.subr.mxu0 %v192
    %910 = vmatpush1.msra.mxu0 %v191
    %911 = vmatprep.subr.mxu0 %v184
    %912 = vmatpush1.msra.mxu0 %v183
    %913 = vmatprep.subr.mxu0 %v176
    %914 = vmatpush1.msra.mxu0 %v175
    %915 = vmatprep.subr.mxu0 %v168
    %916 = vmatpush1.msra.mxu0 %v167
    %917 = vmatprep.subr.mxu0 %v160
    %918 = vmatpush1.msra.mxu0 %v159
    %919 = vmatprep.subr.mxu0 %v152
    %920 = vmatpush1.msra.mxu0 %v151
    %921 = vmatprep.subr.mxu0 %v144
    %922 = vmatpush1.msra.mxu0 %v143
    %923 = vmatprep.subr.mxu0 %v136
    %924 = vmatpush1.msra.mxu0 %v135
    %925 = vmatprep.subr.mxu0 %v128
    %926 = vmatpush1.msra.mxu0 %v127
    %927 = vmatprep.subr.mxu0 %v120
    %928 = vmatpush1.msra.mxu0 %v119
    %929 = vmatprep.subr.mxu0 %v112
    %930 = vmatpush1.msra.mxu0 %v111
    %931 = vmatprep.subr.mxu0 %v104
    %932 = vmatpush1.msra.mxu0 %v103
    %933 = vmatprep.subr.mxu0 %v96
    %934 = vmatpush1.msra.mxu0 %v95
    %935 = vmatprep.subr.mxu0 %v88
    %936 = vmatpush1.msra.mxu0 %v87
    %937 = vmatprep.subr.mxu0 %v80
    %938 = vmatpush1.msra.mxu0 %v79
    %939 = vmatprep.subr.mxu0 %v328
    %940 = vmatpush2.msra.mxu0 %v327
    %941 = vmatprep.subr.mxu0 %v320
    %942 = vmatpush2.msra.mxu0 %v319
    %943 = vmatprep.subr.mxu0 %v312
    %944 = vmatpush2.msra.mxu0 %v311
    %945 = vmatprep.subr.mxu0 %v304
    %946 = vmatpush2.msra.mxu0 %v303
    %947 = vmatprep.subr.mxu0 %v296
    %948 = vmatpush2.msra.mxu0 %v295
    %949 = vmatprep.subr.mxu0 %v288
    %950 = vmatpush2.msra.mxu0 %v287
    %951 = vmatprep.subr.mxu0 %v280
    %952 = vmatpush2.msra.mxu0 %v279
    %953 = vmatprep.subr.mxu0 %v272
    %954 = vmatpush2.msra.mxu0 %v271
    %955 = vmatprep.subr.mxu0 %v264
    %956 = vmatpush2.msra.mxu0 %v263
    %957 = vmatprep.subr.mxu0 %v256
    %958 = vmatpush2.msra.mxu0 %v255
    %959 = vmatprep.subr.mxu0 %v248
    %960 = vmatpush2.msra.mxu0 %v247
    %961 = vmatprep.subr.mxu0 %v240
    %962 = vmatpush2.msra.mxu0 %v239
    %963 = vmatprep.subr.mxu0 %v232
    %964 = vmatpush2.msra.mxu0 %v231
    %965 = vmatprep.subr.mxu0 %v224
    %966 = vmatpush2.msra.mxu0 %v223
    %967 = vmatprep.subr.mxu0 %v216
    %968 = vmatpush2.msra.mxu0 %v215
    %969 = vmatprep.subr.mxu0 %v208
    %970 = vmatpush2.msra.mxu0 %v207
    %971 = vmatprep.mubr.f32.mxu0 %v906
    %972 = vmatmul.mubr.f32.gmra.mxu0 %v715
    %v973 = vpop.f32.mrf.mxu0
    %v974 = vadd.f32 0.0, %v973
    %v975 = vpop.f32.mrf.mxu0
    %v976 = vadd.f32 0.0, %v975
    %977 = vdwg.mxu0
    %978 = vmatprep.subr.mxu0 %v202
    %979 = vmatpush1.msra.mxu0 %v201
    %980 = vmatprep.subr.mxu0 %v194
    %981 = vmatpush1.msra.mxu0 %v193
    %982 = vmatprep.subr.mxu0 %v186
    %983 = vmatpush1.msra.mxu0 %v185
    %984 = vmatprep.subr.mxu0 %v178
    %985 = vmatpush1.msra.mxu0 %v177
    %986 = vmatprep.subr.mxu0 %v170
    %987 = vmatpush1.msra.mxu0 %v169
    %988 = vmatprep.subr.mxu0 %v162
    %989 = vmatpush1.msra.mxu0 %v161
    %990 = vmatprep.subr.mxu0 %v154
    %991 = vmatpush1.msra.mxu0 %v153
    %992 = vmatprep.subr.mxu0 %v146
    %993 = vmatpush1.msra.mxu0 %v145
    %994 = vmatprep.subr.mxu0 %v138
    %995 = vmatpush1.msra.mxu0 %v137
    %996 = vmatprep.subr.mxu0 %v130
    %997 = vmatpush1.msra.mxu0 %v129
    %998 = vmatprep.subr.mxu0 %v122
    %999 = vmatpush1.msra.mxu0 %v121
    %1000 = vmatprep.subr.mxu0 %v114
    %1001 = vmatpush1.msra.mxu0 %v113
    %1002 = vmatprep.subr.mxu0 %v106
    %1003 = vmatpush1.msra.mxu0 %v105
    %1004 = vmatprep.subr.mxu0 %v98
    %1005 = vmatpush1.msra.mxu0 %v97
    %1006 = vmatprep.subr.mxu0 %v90
    %1007 = vmatpush1.msra.mxu0 %v89
    %1008 = vmatprep.subr.mxu0 %v82
    %1009 = vmatpush1.msra.mxu0 %v81
    %1010 = vmatprep.subr.mxu0 %v330
    %1011 = vmatpush2.msra.mxu0 %v329
    %1012 = vmatprep.subr.mxu0 %v322
    %1013 = vmatpush2.msra.mxu0 %v321
    %1014 = vmatprep.subr.mxu0 %v314
    %1015 = vmatpush2.msra.mxu0 %v313
    %1016 = vmatprep.subr.mxu0 %v306
    %1017 = vmatpush2.msra.mxu0 %v305
    %1018 = vmatprep.subr.mxu0 %v298
    %1019 = vmatpush2.msra.mxu0 %v297
    %1020 = vmatprep.subr.mxu0 %v290
    %1021 = vmatpush2.msra.mxu0 %v289
    %1022 = vmatprep.subr.mxu0 %v282
    %1023 = vmatpush2.msra.mxu0 %v281
    %1024 = vmatprep.subr.mxu0 %v274
    %1025 = vmatpush2.msra.mxu0 %v273
    %1026 = vmatprep.subr.mxu0 %v266
    %1027 = vmatpush2.msra.mxu0 %v265
    %1028 = vmatprep.subr.mxu0 %v258
    %1029 = vmatpush2.msra.mxu0 %v257
    %1030 = vmatprep.subr.mxu0 %v250
    %1031 = vmatpush2.msra.mxu0 %v249
    %1032 = vmatprep.subr.mxu0 %v242
    %1033 = vmatpush2.msra.mxu0 %v241
    %1034 = vmatprep.subr.mxu0 %v234
    %1035 = vmatpush2.msra.mxu0 %v233
    %1036 = vmatprep.subr.mxu0 %v226
    %1037 = vmatpush2.msra.mxu0 %v225
    %1038 = vmatprep.subr.mxu0 %v218
    %1039 = vmatpush2.msra.mxu0 %v217
    %1040 = vmatprep.subr.mxu0 %v210
    %1041 = vmatpush2.msra.mxu0 %v209
    %1042 = vmatprep.mubr.f32.mxu0 %v906
    %1043 = vmatmul.mubr.f32.gmra.mxu0 %v715
    %v1044 = vpop.f32.mrf.mxu0
    %v1045 = vadd.f32 0.0, %v1044
    %v1046 = vpop.f32.mrf.mxu0
    %v1047 = vadd.f32 0.0, %v1046
    %1048 = vdwg.mxu0
    %1049 = vmatprep.subr.mxu0 %v204
    %1050 = vmatpush1.msra.mxu0 %v203
    %1051 = vmatprep.subr.mxu0 %v196
    %1052 = vmatpush1.msra.mxu0 %v195
    %1053 = vmatprep.subr.mxu0 %v188
    %1054 = vmatpush1.msra.mxu0 %v187
    %1055 = vmatprep.subr.mxu0 %v180
    %1056 = vmatpush1.msra.mxu0 %v179
    %1057 = vmatprep.subr.mxu0 %v172
    %1058 = vmatpush1.msra.mxu0 %v171
    %1059 = vmatprep.subr.mxu0 %v164
    %1060 = vmatpush1.msra.mxu0 %v163
    %1061 = vmatprep.subr.mxu0 %v156
    %1062 = vmatpush1.msra.mxu0 %v155
    %1063 = vmatprep.subr.mxu0 %v148
    %1064 = vmatpush1.msra.mxu0 %v147
    %1065 = vmatprep.subr.mxu0 %v140
    %1066 = vmatpush1.msra.mxu0 %v139
    %1067 = vmatprep.subr.mxu0 %v132
    %1068 = vmatpush1.msra.mxu0 %v131
    %1069 = vmatprep.subr.mxu0 %v124
    %1070 = vmatpush1.msra.mxu0 %v123
    %1071 = vmatprep.subr.mxu0 %v116
    %1072 = vmatpush1.msra.mxu0 %v115
    %1073 = vmatprep.subr.mxu0 %v108
    %1074 = vmatpush1.msra.mxu0 %v107
    %1075 = vmatprep.subr.mxu0 %v100
    %1076 = vmatpush1.msra.mxu0 %v99
    %1077 = vmatprep.subr.mxu0 %v92
    %1078 = vmatpush1.msra.mxu0 %v91
    %1079 = vmatprep.subr.mxu0 %v84
    %1080 = vmatpush1.msra.mxu0 %v83
    %1081 = vmatprep.subr.mxu0 %v332
    %1082 = vmatpush2.msra.mxu0 %v331
    %1083 = vmatprep.subr.mxu0 %v324
    %1084 = vmatpush2.msra.mxu0 %v323
    %1085 = vmatprep.subr.mxu0 %v316
    %1086 = vmatpush2.msra.mxu0 %v315
    %1087 = vmatprep.subr.mxu0 %v308
    %1088 = vmatpush2.msra.mxu0 %v307
    %1089 = vmatprep.subr.mxu0 %v300
    %1090 = vmatpush2.msra.mxu0 %v299
    %1091 = vmatprep.subr.mxu0 %v292
    %1092 = vmatpush2.msra.mxu0 %v291
    %1093 = vmatprep.subr.mxu0 %v284
    %1094 = vmatpush2.msra.mxu0 %v283
    %1095 = vmatprep.subr.mxu0 %v276
    %1096 = vmatpush2.msra.mxu0 %v275
    %1097 = vmatprep.subr.mxu0 %v268
    %1098 = vmatpush2.msra.mxu0 %v267
    %1099 = vmatprep.subr.mxu0 %v260
    %1100 = vmatpush2.msra.mxu0 %v259
    %1101 = vmatprep.subr.mxu0 %v252
    %1102 = vmatpush2.msra.mxu0 %v251
    %1103 = vmatprep.subr.mxu0 %v244
    %1104 = vmatpush2.msra.mxu0 %v243
    %1105 = vmatprep.subr.mxu0 %v236
    %1106 = vmatpush2.msra.mxu0 %v235
    %1107 = vmatprep.subr.mxu0 %v228
    %1108 = vmatpush2.msra.mxu0 %v227
    %1109 = vmatprep.subr.mxu0 %v220
    %1110 = vmatpush2.msra.mxu0 %v219
    %1111 = vmatprep.subr.mxu0 %v212
    %1112 = vmatpush2.msra.mxu0 %v211
    %1113 = vmatprep.mubr.f32.mxu0 %v906
    %1114 = vmatmul.mubr.f32.gmra.mxu0 %v715
    %v1115 = vpop.f32.mrf.mxu0
    %v1116 = vadd.f32 0.0, %v1115
    %v1117 = vpop.f32.mrf.mxu0
    %v1118 = vadd.f32 0.0, %v1117
    %1119 = vdwg.mxu0
    %1120 = vmatprep.subr.mxu0 %v206
    %1121 = vmatpush1.msra.mxu0 %v205
    %1122 = vmatprep.subr.mxu0 %v198
    %1123 = vmatpush1.msra.mxu0 %v197
    %1124 = vmatprep.subr.mxu0 %v190
    %1125 = vmatpush1.msra.mxu0 %v189
    %1126 = vmatprep.subr.mxu0 %v182
    %1127 = vmatpush1.msra.mxu0 %v181
    %1128 = vmatprep.subr.mxu0 %v174
    %1129 = vmatpush1.msra.mxu0 %v173
    %1130 = vmatprep.subr.mxu0 %v166
    %1131 = vmatpush1.msra.mxu0 %v165
    %1132 = vmatprep.subr.mxu0 %v158
    %1133 = vmatpush1.msra.mxu0 %v157
    %1134 = vmatprep.subr.mxu0 %v150
    %1135 = vmatpush1.msra.mxu0 %v149
    %1136 = vmatprep.subr.mxu0 %v142
    %1137 = vmatpush1.msra.mxu0 %v141
    %1138 = vmatprep.subr.mxu0 %v134
    %1139 = vmatpush1.msra.mxu0 %v133
    %1140 = vmatprep.subr.mxu0 %v126
    %1141 = vmatpush1.msra.mxu0 %v125
    %1142 = vmatprep.subr.mxu0 %v118
    %1143 = vmatpush1.msra.mxu0 %v117
    %1144 = vmatprep.subr.mxu0 %v110
    %1145 = vmatpush1.msra.mxu0 %v109
    %1146 = vmatprep.subr.mxu0 %v102
    %1147 = vmatpush1.msra.mxu0 %v101
    %1148 = vmatprep.subr.mxu0 %v94
    %1149 = vmatpush1.msra.mxu0 %v93
    %1150 = vmatprep.subr.mxu0 %v86
    %1151 = vmatpush1.msra.mxu0 %v85
    %1152 = vmatprep.subr.mxu0 %v334
    %1153 = vmatpush2.msra.mxu0 %v333
    %1154 = vmatprep.subr.mxu0 %v326
    %1155 = vmatpush2.msra.mxu0 %v325
    %1156 = vmatprep.subr.mxu0 %v318
    %1157 = vmatpush2.msra.mxu0 %v317
    %1158 = vmatprep.subr.mxu0 %v310
    %1159 = vmatpush2.msra.mxu0 %v309
    %1160 = vmatprep.subr.mxu0 %v302
    %1161 = vmatpush2.msra.mxu0 %v301
    %1162 = vmatprep.subr.mxu0 %v294
    %1163 = vmatpush2.msra.mxu0 %v293
    %1164 = vmatprep.subr.mxu0 %v286
    %1165 = vmatpush2.msra.mxu0 %v285
    %1166 = vmatprep.subr.mxu0 %v278
    %1167 = vmatpush2.msra.mxu0 %v277
    %1168 = vmatprep.subr.mxu0 %v270
    %1169 = vmatpush2.msra.mxu0 %v269
    %1170 = vmatprep.subr.mxu0 %v262
    %1171 = vmatpush2.msra.mxu0 %v261
    %1172 = vmatprep.subr.mxu0 %v254
    %1173 = vmatpush2.msra.mxu0 %v253
    %1174 = vmatprep.subr.mxu0 %v246
    %1175 = vmatpush2.msra.mxu0 %v245
    %1176 = vmatprep.subr.mxu0 %v238
    %1177 = vmatpush2.msra.mxu0 %v237
    %1178 = vmatprep.subr.mxu0 %v230
    %1179 = vmatpush2.msra.mxu0 %v229
    %1180 = vmatprep.subr.mxu0 %v222
    %1181 = vmatpush2.msra.mxu0 %v221
    %1182 = vmatprep.subr.mxu0 %v214
    %1183 = vmatpush2.msra.mxu0 %v213
    %1184 = vmatprep.mubr.f32.mxu0 %v906
    %1185 = vmatmul.mubr.f32.gmra.mxu0 %v715
    %v1186 = vpop.f32.mrf.mxu0
    %v1187 = vadd.f32 0.0, %v1186
    %v1188 = vpop.f32.mrf.mxu0
    %v1189 = vadd.f32 0.0, %v1188
    %1190 = vdwg.mxu0
    %s1191 = scalar_lea.vmem [#allocation2], 32
    %v1192 = vld [vmem:[%s1191] sm:$0xff]
    %v1193 = vld [vmem:[%s1191 + $0x8] sm:$0xff]
    %v1194 = vld [vmem:[%s1191 + $0x10] sm:$0xff]
    %v1195 = vld [vmem:[%s1191 + $0x18] sm:$0xff]
    %v1196 = vadd.f32 %v1192, %v974
    %v1197 = vadd.f32 %v1193, %v976
    %v1198 = vadd.f32 %v1194, %v1045
    %v1199 = vadd.f32 %v1195, %v1047
    %v1200 = vtanh.pop %v1196
    %v1201 = vxor.u32 %v1197, 2147483648
    %v1202 = vmul.f32 %v1201, 1.442695
    %v1203 = vpow.pop %v1202
    %v1204 = vadd.f32 %v1203, 1.0
    %v1205 = vrcp.pop %v1204
    %v1206 = vmul.f32 1.0, %v1205
    %v1207 = vxor.u32 %v1198, 2147483648
    %v1208 = vmul.f32 %v1207, 1.442695
    %v1209 = vpow.pop %v1208
    %v1210 = vadd.f32 %v1209, 1.0
    %v1211 = vrcp.pop %v1210
    %v1212 = vmul.f32 1.0, %v1211
    %v1213 = vxor.u32 %v1199, 2147483648
    %v1214 = vmul.f32 %v1213, 1.442695
    %v1215 = vpow.pop %v1214
    %v1216 = vadd.f32 %v1215, 1.0
    %v1217 = vrcp.pop %v1216
    %v1218 = vmul.f32 1.0, %v1217
    %v1219 = vmul.f32 %v1200, %v1206
    %v1220 = vmul.f32 %v713, %v1212
    %v1221 = vadd.f32 %v1219, %v1220
    %v1222 = vtanh.pop %v1221
    %v1223 = vmul.f32 %v1222, %v1218
    %1224 = vmatprep.subr.mxu0 %v396
    %1225 = vmatpush1.msra.mxu0 %v395
    %1226 = vmatprep.subr.mxu0 %v392
    %1227 = vmatpush1.msra.mxu0 %v391
    %1228 = vmatprep.subr.mxu0 %v388
    %1229 = vmatpush1.msra.mxu0 %v387
    %1230 = vmatprep.subr.mxu0 %v384
    %1231 = vmatpush1.msra.mxu0 %v383
    %1232 = vmatprep.subr.mxu0 %v380
    %1233 = vmatpush1.msra.mxu0 %v379
    %1234 = vmatprep.subr.mxu0 %v376
    %1235 = vmatpush1.msra.mxu0 %v375
    %1236 = vmatprep.subr.mxu0 %v372
    %1237 = vmatpush1.msra.mxu0 %v371
    %1238 = vmatprep.subr.mxu0 %v368
    %1239 = vmatpush1.msra.mxu0 %v367
    %1240 = vmatprep.subr.mxu0 %v364
    %1241 = vmatpush1.msra.mxu0 %v363
    %1242 = vmatprep.subr.mxu0 %v360
    %1243 = vmatpush1.msra.mxu0 %v359
    %1244 = vmatprep.subr.mxu0 %v356
    %1245 = vmatpush1.msra.mxu0 %v355
    %1246 = vmatprep.subr.mxu0 %v352
    %1247 = vmatpush1.msra.mxu0 %v351
    %1248 = vmatprep.subr.mxu0 %v348
    %1249 = vmatpush1.msra.mxu0 %v347
    %1250 = vmatprep.subr.mxu0 %v344
    %1251 = vmatpush1.msra.mxu0 %v343
    %1252 = vmatprep.subr.mxu0 %v340
    %1253 = vmatpush1.msra.mxu0 %v339
    %1254 = vmatprep.subr.mxu0 %v336
    %1255 = vmatpush1.msra.mxu0 %v335
    %1256 = vmatprep.subr.mxu0 0.0
    %1257 = vmatpush2.msra.mxu0 0.0
    %1258 = vmatprep.subr.mxu0 0.0
    %1259 = vmatpush2.msra.mxu0 0.0
    %1260 = vmatprep.subr.mxu0 0.0
    %1261 = vmatpush2.msra.mxu0 0.0
    %1262 = vmatprep.subr.mxu0 0.0
    %1263 = vmatpush2.msra.mxu0 0.0
    %1264 = vmatprep.subr.mxu0 0.0
    %1265 = vmatpush2.msra.mxu0 0.0
    %1266 = vmatprep.subr.mxu0 0.0
    %1267 = vmatpush2.msra.mxu0 0.0
    %1268 = vmatprep.subr.mxu0 0.0
    %1269 = vmatpush2.msra.mxu0 0.0
    %1270 = vmatprep.subr.mxu0 0.0
    %1271 = vmatpush2.msra.mxu0 0.0
    %1272 = vmatprep.subr.mxu0 0.0
    %1273 = vmatpush2.msra.mxu0 0.0
    %1274 = vmatprep.subr.mxu0 0.0
    %1275 = vmatpush2.msra.mxu0 0.0
    %1276 = vmatprep.subr.mxu0 0.0
    %1277 = vmatpush2.msra.mxu0 0.0
    %1278 = vmatprep.subr.mxu0 0.0
    %1279 = vmatpush2.msra.mxu0 0.0
    %1280 = vmatprep.subr.mxu0 0.0
    %1281 = vmatpush2.msra.mxu0 0.0
    %1282 = vmatprep.subr.mxu0 0.0
    %1283 = vmatpush2.msra.mxu0 0.0
    %1284 = vmatprep.subr.mxu0 0.0
    %1285 = vmatpush2.msra.mxu0 0.0
    %1286 = vmatprep.subr.mxu0 0.0
    %1287 = vmatpush2.msra.mxu0 0.0
    %1288 = vmatprep.mubr.f32.mxu0 0.0
    %1289 = vmatmul.mubr.f32.gmra.mxu0 %v1223
    %v1290 = vpop.f32.mrf.mxu0
    %v1291 = vadd.f32 %v1116, %v1290
    %v1292 = vpop.f32.mrf.mxu0
    %v1293 = vadd.f32 %v1118, %v1292
    %1294 = vdwg.mxu0
    %1295 = vmatprep.subr.mxu0 %v398
    %1296 = vmatpush1.msra.mxu0 %v397
    %1297 = vmatprep.subr.mxu0 %v394
    %1298 = vmatpush1.msra.mxu0 %v393
    %1299 = vmatprep.subr.mxu0 %v390
    %1300 = vmatpush1.msra.mxu0 %v389
    %1301 = vmatprep.subr.mxu0 %v386
    %1302 = vmatpush1.msra.mxu0 %v385
    %1303 = vmatprep.subr.mxu0 %v382
    %1304 = vmatpush1.msra.mxu0 %v381
    %1305 = vmatprep.subr.mxu0 %v378
    %1306 = vmatpush1.msra.mxu0 %v377
    %1307 = vmatprep.subr.mxu0 %v374
    %1308 = vmatpush1.msra.mxu0 %v373
    %1309 = vmatprep.subr.mxu0 %v370
    %1310 = vmatpush1.msra.mxu0 %v369
    %1311 = vmatprep.subr.mxu0 %v366
    %1312 = vmatpush1.msra.mxu0 %v365
    %1313 = vmatprep.subr.mxu0 %v362
    %1314 = vmatpush1.msra.mxu0 %v361
    %1315 = vmatprep.subr.mxu0 %v358
    %1316 = vmatpush1.msra.mxu0 %v357
    %1317 = vmatprep.subr.mxu0 %v354
    %1318 = vmatpush1.msra.mxu0 %v353
    %1319 = vmatprep.subr.mxu0 %v350
    %1320 = vmatpush1.msra.mxu0 %v349
    %1321 = vmatprep.subr.mxu0 %v346
    %1322 = vmatpush1.msra.mxu0 %v345
    %1323 = vmatprep.subr.mxu0 %v342
    %1324 = vmatpush1.msra.mxu0 %v341
    %1325 = vmatprep.subr.mxu0 %v338
    %1326 = vmatpush1.msra.mxu0 %v337
    %1327 = vmatprep.subr.mxu0 0.0
    %1328 = vmatpush2.msra.mxu0 0.0
    %1329 = vmatprep.subr.mxu0 0.0
    %1330 = vmatpush2.msra.mxu0 0.0
    %1331 = vmatprep.subr.mxu0 0.0
    %1332 = vmatpush2.msra.mxu0 0.0
    %1333 = vmatprep.subr.mxu0 0.0
    %1334 = vmatpush2.msra.mxu0 0.0
    %1335 = vmatprep.subr.mxu0 0.0
    %1336 = vmatpush2.msra.mxu0 0.0
    %1337 = vmatprep.subr.mxu0 0.0
    %1338 = vmatpush2.msra.mxu0 0.0
    %1339 = vmatprep.subr.mxu0 0.0
    %1340 = vmatpush2.msra.mxu0 0.0
    %1341 = vmatprep.subr.mxu0 0.0
    %1342 = vmatpush2.msra.mxu0 0.0
    %1343 = vmatprep.subr.mxu0 0.0
    %1344 = vmatpush2.msra.mxu0 0.0
    %1345 = vmatprep.subr.mxu0 0.0
    %1346 = vmatpush2.msra.mxu0 0.0
    %1347 = vmatprep.subr.mxu0 0.0
    %1348 = vmatpush2.msra.mxu0 0.0
    %1349 = vmatprep.subr.mxu0 0.0
    %1350 = vmatpush2.msra.mxu0 0.0
    %1351 = vmatprep.subr.mxu0 0.0
    %1352 = vmatpush2.msra.mxu0 0.0
    %1353 = vmatprep.subr.mxu0 0.0
    %1354 = vmatpush2.msra.mxu0 0.0
    %1355 = vmatprep.subr.mxu0 0.0
    %1356 = vmatpush2.msra.mxu0 0.0
    %1357 = vmatprep.subr.mxu0 0.0
    %1358 = vmatpush2.msra.mxu0 0.0
    %1359 = vmatprep.mubr.f32.mxu0 0.0
    %1360 = vmatmul.mubr.f32.gmra.mxu0 %v1223
    %v1361 = vpop.f32.mrf.mxu0
    %v1362 = vadd.f32 %v1187, %v1361
    %v1363 = vpop.f32.mrf.mxu0
    %v1364 = vadd.f32 %v1189, %v1363
    %1365 = vdwg.mxu0
    %v1366 = vadd.f32 %v1291, %v862
    %v1367 = vadd.f32 %v1293, %v866
    %v1368 = vadd.f32 %v1362, %v870
    %v1369 = vadd.f32 %v1364, %v874
    %v1370 = vtanh.pop %v1366
    %v1371 = vxor.u32 %v1367, 2147483648
    %v1372 = vmul.f32 %v1371, 1.442695
    %v1373 = vpow.pop %v1372
    %v1374 = vadd.f32 %v1373, 1.0
    %v1375 = vrcp.pop %v1374
    %v1376 = vmul.f32 1.0, %v1375
    %v1377 = vxor.u32 %v1368, 2147483648
    %v1378 = vmul.f32 %v1377, 1.442695
    %v1379 = vpow.pop %v1378
    %v1380 = vadd.f32 %v1379, 1.0
    %v1381 = vrcp.pop %v1380
    %v1382 = vmul.f32 1.0, %v1381
    %v1383 = vxor.u32 %v1369, 2147483648
    %v1384 = vmul.f32 %v1383, 1.442695
    %v1385 = vpow.pop %v1384
    %v1386 = vadd.f32 %v1385, 1.0
    %v1387 = vrcp.pop %v1386
    %v1388 = vmul.f32 1.0, %v1387
    %v1389 = vmul.f32 %v1370, %v1376
    %v1390 = vmul.f32 %v904, %v1382
    %v1391 = vadd.f32 %v1389, %v1390
    %v1392 = vtanh.pop %v1391
    %v1393 = vmul.f32 %v1392, %v1388
    %1394 = vmatprep.subr.mxu0 %v200
    %1395 = vmatpush1.msra.mxu0 %v199
    %1396 = vmatprep.subr.mxu0 %v192
    %1397 = vmatpush1.msra.mxu0 %v191
    %1398 = vmatprep.subr.mxu0 %v184
    %1399 = vmatpush1.msra.mxu0 %v183
    %1400 = vmatprep.subr.mxu0 %v176
    %1401 = vmatpush1.msra.mxu0 %v175
    %1402 = vmatprep.subr.mxu0 %v168
    %1403 = vmatpush1.msra.mxu0 %v167
    %1404 = vmatprep.subr.mxu0 %v160
    %1405 = vmatpush1.msra.mxu0 %v159
    %1406 = vmatprep.subr.mxu0 %v152
    %1407 = vmatpush1.msra.mxu0 %v151
    %1408 = vmatprep.subr.mxu0 %v144
    %1409 = vmatpush1.msra.mxu0 %v143
    %1410 = vmatprep.subr.mxu0 %v136
    %1411 = vmatpush1.msra.mxu0 %v135
    %1412 = vmatprep.subr.mxu0 %v128
    %1413 = vmatpush1.msra.mxu0 %v127
    %1414 = vmatprep.subr.mxu0 %v120
    %1415 = vmatpush1.msra.mxu0 %v119
    %1416 = vmatprep.subr.mxu0 %v112
    %1417 = vmatpush1.msra.mxu0 %v111
    %1418 = vmatprep.subr.mxu0 %v104
    %1419 = vmatpush1.msra.mxu0 %v103
    %1420 = vmatprep.subr.mxu0 %v96
    %1421 = vmatpush1.msra.mxu0 %v95
    %1422 = vmatprep.subr.mxu0 %v88
    %1423 = vmatpush1.msra.mxu0 %v87
    %1424 = vmatprep.subr.mxu0 %v80
    %1425 = vmatpush1.msra.mxu0 %v79
    %1426 = vmatprep.subr.mxu0 %v328
    %1427 = vmatpush2.msra.mxu0 %v327
    %1428 = vmatprep.subr.mxu0 %v320
    %1429 = vmatpush2.msra.mxu0 %v319
    %1430 = vmatprep.subr.mxu0 %v312
    %1431 = vmatpush2.msra.mxu0 %v311
    %1432 = vmatprep.subr.mxu0 %v304
    %1433 = vmatpush2.msra.mxu0 %v303
    %1434 = vmatprep.subr.mxu0 %v296
    %1435 = vmatpush2.msra.mxu0 %v295
    %1436 = vmatprep.subr.mxu0 %v288
    %1437 = vmatpush2.msra.mxu0 %v287
    %1438 = vmatprep.subr.mxu0 %v280
    %1439 = vmatpush2.msra.mxu0 %v279
    %1440 = vmatprep.subr.mxu0 %v272
    %1441 = vmatpush2.msra.mxu0 %v271
    %1442 = vmatprep.subr.mxu0 %v264
    %1443 = vmatpush2.msra.mxu0 %v263
    %1444 = vmatprep.subr.mxu0 %v256
    %1445 = vmatpush2.msra.mxu0 %v255
    %1446 = vmatprep.subr.mxu0 %v248
    %1447 = vmatpush2.msra.mxu0 %v247
    %1448 = vmatprep.subr.mxu0 %v240
    %1449 = vmatpush2.msra.mxu0 %v239
    %1450 = vmatprep.subr.mxu0 %v232
    %1451 = vmatpush2.msra.mxu0 %v231
    %1452 = vmatprep.subr.mxu0 %v224
    %1453 = vmatpush2.msra.mxu0 %v223
    %1454 = vmatprep.subr.mxu0 %v216
    %1455 = vmatpush2.msra.mxu0 %v215
    %1456 = vmatprep.subr.mxu0 %v208
    %1457 = vmatpush2.msra.mxu0 %v207
    %1458 = vmatprep.mubr.f32.mxu0 %v1393
    %1459 = vmatmul.mubr.f32.gmra.mxu0 %v1223
    %v1460 = vpop.f32.mrf.mxu0
    %v1461 = vadd.f32 0.0, %v1460
    %v1462 = vpop.f32.mrf.mxu0
    %v1463 = vadd.f32 0.0, %v1462
    %1464 = vdwg.mxu0
    %1465 = vmatprep.subr.mxu0 %v202
    %1466 = vmatpush1.msra.mxu0 %v201
    %1467 = vmatprep.subr.mxu0 %v194
    %1468 = vmatpush1.msra.mxu0 %v193
    %1469 = vmatprep.subr.mxu0 %v186
    %1470 = vmatpush1.msra.mxu0 %v185
    %1471 = vmatprep.subr.mxu0 %v178
    %1472 = vmatpush1.msra.mxu0 %v177
    %1473 = vmatprep.subr.mxu0 %v170
    %1474 = vmatpush1.msra.mxu0 %v169
    %1475 = vmatprep.subr.mxu0 %v162
    %1476 = vmatpush1.msra.mxu0 %v161
    %1477 = vmatprep.subr.mxu0 %v154
    %1478 = vmatpush1.msra.mxu0 %v153
    %1479 = vmatprep.subr.mxu0 %v146
    %1480 = vmatpush1.msra.mxu0 %v145
    %1481 = vmatprep.subr.mxu0 %v138
    %1482 = vmatpush1.msra.mxu0 %v137
    %1483 = vmatprep.subr.mxu0 %v130
    %1484 = vmatpush1.msra.mxu0 %v129
    %1485 = vmatprep.subr.mxu0 %v122
    %1486 = vmatpush1.msra.mxu0 %v121
    %1487 = vmatprep.subr.mxu0 %v114
    %1488 = vmatpush1.msra.mxu0 %v113
    %1489 = vmatprep.subr.mxu0 %v106
    %1490 = vmatpush1.msra.mxu0 %v105
    %1491 = vmatprep.subr.mxu0 %v98
    %1492 = vmatpush1.msra.mxu0 %v97
    %1493 = vmatprep.subr.mxu0 %v90
    %1494 = vmatpush1.msra.mxu0 %v89
    %1495 = vmatprep.subr.mxu0 %v82
    %1496 = vmatpush1.msra.mxu0 %v81
    %1497 = vmatprep.subr.mxu0 %v330
    %1498 = vmatpush2.msra.mxu0 %v329
    %1499 = vmatprep.subr.mxu0 %v322
    %1500 = vmatpush2.msra.mxu0 %v321
    %1501 = vmatprep.subr.mxu0 %v314
    %1502 = vmatpush2.msra.mxu0 %v313
    %1503 = vmatprep.subr.mxu0 %v306
    %1504 = vmatpush2.msra.mxu0 %v305
    %1505 = vmatprep.subr.mxu0 %v298
    %1506 = vmatpush2.msra.mxu0 %v297
    %1507 = vmatprep.subr.mxu0 %v290
    %1508 = vmatpush2.msra.mxu0 %v289
    %1509 = vmatprep.subr.mxu0 %v282
    %1510 = vmatpush2.msra.mxu0 %v281
    %1511 = vmatprep.subr.mxu0 %v274
    %1512 = vmatpush2.msra.mxu0 %v273
    %1513 = vmatprep.subr.mxu0 %v266
    %1514 = vmatpush2.msra.mxu0 %v265
    %1515 = vmatprep.subr.mxu0 %v258
    %1516 = vmatpush2.msra.mxu0 %v257
    %1517 = vmatprep.subr.mxu0 %v250
    %1518 = vmatpush2.msra.mxu0 %v249
    %1519 = vmatprep.subr.mxu0 %v242
    %1520 = vmatpush2.msra.mxu0 %v241
    %1521 = vmatprep.subr.mxu0 %v234
    %1522 = vmatpush2.msra.mxu0 %v233
    %1523 = vmatprep.subr.mxu0 %v226
    %1524 = vmatpush2.msra.mxu0 %v225
    %1525 = vmatprep.subr.mxu0 %v218
    %1526 = vmatpush2.msra.mxu0 %v217
    %1527 = vmatprep.subr.mxu0 %v210
    %1528 = vmatpush2.msra.mxu0 %v209
    %1529 = vmatprep.mubr.f32.mxu0 %v1393
    %1530 = vmatmul.mubr.f32.gmra.mxu0 %v1223
    %v1531 = vpop.f32.mrf.mxu0
    %v1532 = vadd.f32 0.0, %v1531
    %v1533 = vpop.f32.mrf.mxu0
    %v1534 = vadd.f32 0.0, %v1533
    %1535 = vdwg.mxu0
    %1536 = vmatprep.subr.mxu0 %v204
    %1537 = vmatpush1.msra.mxu0 %v203
    %1538 = vmatprep.subr.mxu0 %v196
    %1539 = vmatpush1.msra.mxu0 %v195
    %1540 = vmatprep.subr.mxu0 %v188
    %1541 = vmatpush1.msra.mxu0 %v187
    %1542 = vmatprep.subr.mxu0 %v180
    %1543 = vmatpush1.msra.mxu0 %v179
    %1544 = vmatprep.subr.mxu0 %v172
    %1545 = vmatpush1.msra.mxu0 %v171
    %1546 = vmatprep.subr.mxu0 %v164
    %1547 = vmatpush1.msra.mxu0 %v163
    %1548 = vmatprep.subr.mxu0 %v156
    %1549 = vmatpush1.msra.mxu0 %v155
    %1550 = vmatprep.subr.mxu0 %v148
    %1551 = vmatpush1.msra.mxu0 %v147
    %1552 = vmatprep.subr.mxu0 %v140
    %1553 = vmatpush1.msra.mxu0 %v139
    %1554 = vmatprep.subr.mxu0 %v132
    %1555 = vmatpush1.msra.mxu0 %v131
    %1556 = vmatprep.subr.mxu0 %v124
    %1557 = vmatpush1.msra.mxu0 %v123
    %1558 = vmatprep.subr.mxu0 %v116
    %1559 = vmatpush1.msra.mxu0 %v115
    %1560 = vmatprep.subr.mxu0 %v108
    %1561 = vmatpush1.msra.mxu0 %v107
    %1562 = vmatprep.subr.mxu0 %v100
    %1563 = vmatpush1.msra.mxu0 %v99
    %1564 = vmatprep.subr.mxu0 %v92
    %1565 = vmatpush1.msra.mxu0 %v91
    %1566 = vmatprep.subr.mxu0 %v84
    %1567 = vmatpush1.msra.mxu0 %v83
    %1568 = vmatprep.subr.mxu0 %v332
    %1569 = vmatpush2.msra.mxu0 %v331
    %1570 = vmatprep.subr.mxu0 %v324
    %1571 = vmatpush2.msra.mxu0 %v323
    %1572 = vmatprep.subr.mxu0 %v316
    %1573 = vmatpush2.msra.mxu0 %v315
    %1574 = vmatprep.subr.mxu0 %v308
    %1575 = vmatpush2.msra.mxu0 %v307
    %1576 = vmatprep.subr.mxu0 %v300
    %1577 = vmatpush2.msra.mxu0 %v299
    %1578 = vmatprep.subr.mxu0 %v292
    %1579 = vmatpush2.msra.mxu0 %v291
    %1580 = vmatprep.subr.mxu0 %v284
    %1581 = vmatpush2.msra.mxu0 %v283
    %1582 = vmatprep.subr.mxu0 %v276
    %1583 = vmatpush2.msra.mxu0 %v275
    %1584 = vmatprep.subr.mxu0 %v268
    %1585 = vmatpush2.msra.mxu0 %v267
    %1586 = vmatprep.subr.mxu0 %v260
    %1587 = vmatpush2.msra.mxu0 %v259
    %1588 = vmatprep.subr.mxu0 %v252
    %1589 = vmatpush2.msra.mxu0 %v251
    %1590 = vmatprep.subr.mxu0 %v244
    %1591 = vmatpush2.msra.mxu0 %v243
    %1592 = vmatprep.subr.mxu0 %v236
    %1593 = vmatpush2.msra.mxu0 %v235
    %1594 = vmatprep.subr.mxu0 %v228
    %1595 = vmatpush2.msra.mxu0 %v227
    %1596 = vmatprep.subr.mxu0 %v220
    %1597 = vmatpush2.msra.mxu0 %v219
    %1598 = vmatprep.subr.mxu0 %v212
    %1599 = vmatpush2.msra.mxu0 %v211
    %1600 = vmatprep.mubr.f32.mxu0 %v1393
    %1601 = vmatmul.mubr.f32.gmra.mxu0 %v1223
    %v1602 = vpop.f32.mrf.mxu0
    %v1603 = vadd.f32 0.0, %v1602
    %v1604 = vpop.f32.mrf.mxu0
    %v1605 = vadd.f32 0.0, %v1604
    %1606 = vdwg.mxu0
    %1607 = vmatprep.subr.mxu0 %v206
    %1608 = vmatpush1.msra.mxu0 %v205
    %1609 = vmatprep.subr.mxu0 %v198
    %1610 = vmatpush1.msra.mxu0 %v197
    %1611 = vmatprep.subr.mxu0 %v190
    %1612 = vmatpush1.msra.mxu0 %v189
    %1613 = vmatprep.subr.mxu0 %v182
    %1614 = vmatpush1.msra.mxu0 %v181
    %1615 = vmatprep.subr.mxu0 %v174
    %1616 = vmatpush1.msra.mxu0 %v173
    %1617 = vmatprep.subr.mxu0 %v166
    %1618 = vmatpush1.msra.mxu0 %v165
    %1619 = vmatprep.subr.mxu0 %v158
    %1620 = vmatpush1.msra.mxu0 %v157
    %1621 = vmatprep.subr.mxu0 %v150
    %1622 = vmatpush1.msra.mxu0 %v149
    %1623 = vmatprep.subr.mxu0 %v142
    %1624 = vmatpush1.msra.mxu0 %v141
    %1625 = vmatprep.subr.mxu0 %v134
    %1626 = vmatpush1.msra.mxu0 %v133
    %1627 = vmatprep.subr.mxu0 %v126
    %1628 = vmatpush1.msra.mxu0 %v125
    %1629 = vmatprep.subr.mxu0 %v118
    %1630 = vmatpush1.msra.mxu0 %v117
    %1631 = vmatprep.subr.mxu0 %v110
    %1632 = vmatpush1.msra.mxu0 %v109
    %1633 = vmatprep.subr.mxu0 %v102
    %1634 = vmatpush1.msra.mxu0 %v101
    %1635 = vmatprep.subr.mxu0 %v94
    %1636 = vmatpush1.msra.mxu0 %v93
    %1637 = vmatprep.subr.mxu0 %v86
    %1638 = vmatpush1.msra.mxu0 %v85
    %1639 = vmatprep.subr.mxu0 %v334
    %1640 = vmatpush2.msra.mxu0 %v333
    %1641 = vmatprep.subr.mxu0 %v326
    %1642 = vmatpush2.msra.mxu0 %v325
    %1643 = vmatprep.subr.mxu0 %v318
    %1644 = vmatpush2.msra.mxu0 %v317
    %1645 = vmatprep.subr.mxu0 %v310
    %1646 = vmatpush2.msra.mxu0 %v309
    %1647 = vmatprep.subr.mxu0 %v302
    %1648 = vmatpush2.msra.mxu0 %v301
    %1649 = vmatprep.subr.mxu0 %v294
    %1650 = vmatpush2.msra.mxu0 %v293
    %1651 = vmatprep.subr.mxu0 %v286
    %1652 = vmatpush2.msra.mxu0 %v285
    %1653 = vmatprep.subr.mxu0 %v278
    %1654 = vmatpush2.msra.mxu0 %v277
    %1655 = vmatprep.subr.mxu0 %v270
    %1656 = vmatpush2.msra.mxu0 %v269
    %1657 = vmatprep.subr.mxu0 %v262
    %1658 = vmatpush2.msra.mxu0 %v261
    %1659 = vmatprep.subr.mxu0 %v254
    %1660 = vmatpush2.msra.mxu0 %v253
    %1661 = vmatprep.subr.mxu0 %v246
    %1662 = vmatpush2.msra.mxu0 %v245
    %1663 = vmatprep.subr.mxu0 %v238
    %1664 = vmatpush2.msra.mxu0 %v237
    %1665 = vmatprep.subr.mxu0 %v230
    %1666 = vmatpush2.msra.mxu0 %v229
    %1667 = vmatprep.subr.mxu0 %v222
    %1668 = vmatpush2.msra.mxu0 %v221
    %1669 = vmatprep.subr.mxu0 %v214
    %1670 = vmatpush2.msra.mxu0 %v213
    %1671 = vmatprep.mubr.f32.mxu0 %v1393
    %1672 = vmatmul.mubr.f32.gmra.mxu0 %v1223
    %v1673 = vpop.f32.mrf.mxu0
    %v1674 = vadd.f32 0.0, %v1673
    %v1675 = vpop.f32.mrf.mxu0
    %v1676 = vadd.f32 0.0, %v1675
    %1677 = vdwg.mxu0
    %s1678 = scalar_lea.vmem [#allocation2], 64
    %v1679 = vld [vmem:[%s1678] sm:$0xff]
    %v1680 = vld [vmem:[%s1678 + $0x8] sm:$0xff]
    %v1681 = vld [vmem:[%s1678 + $0x10] sm:$0xff]
    %v1682 = vld [vmem:[%s1678 + $0x18] sm:$0xff]
    %v1683 = vadd.f32 %v1679, %v1461
    %v1684 = vadd.f32 %v1680, %v1463
    %v1685 = vadd.f32 %v1681, %v1532
    %v1686 = vadd.f32 %v1682, %v1534
    %v1687 = vtanh.pop %v1683
    %v1688 = vxor.u32 %v1684, 2147483648
    %v1689 = vmul.f32 %v1688, 1.442695
    %v1690 = vpow.pop %v1689
    %v1691 = vadd.f32 %v1690, 1.0
    %v1692 = vrcp.pop %v1691
    %v1693 = vmul.f32 1.0, %v1692
    %v1694 = vxor.u32 %v1685, 2147483648
    %v1695 = vmul.f32 %v1694, 1.442695
    %v1696 = vpow.pop %v1695
    %v1697 = vadd.f32 %v1696, 1.0
    %v1698 = vrcp.pop %v1697
    %v1699 = vmul.f32 1.0, %v1698
    %v1700 = vxor.u32 %v1686, 2147483648
    %v1701 = vmul.f32 %v1700, 1.442695
    %v1702 = vpow.pop %v1701
    %v1703 = vadd.f32 %v1702, 1.0
    %v1704 = vrcp.pop %v1703
    %v1705 = vmul.f32 1.0, %v1704
    %v1706 = vmul.f32 %v1687, %v1693
    %v1707 = vmul.f32 %v1221, %v1699
    %v1708 = vadd.f32 %v1706, %v1707
    %v1709 = vtanh.pop %v1708
    %v1710 = vmul.f32 %v1709, %v1705
    %1711 = vmatprep.subr.mxu0 %v396
    %1712 = vmatpush1.msra.mxu0 %v395
    %1713 = vmatprep.subr.mxu0 %v392
    %1714 = vmatpush1.msra.mxu0 %v391
    %1715 = vmatprep.subr.mxu0 %v388
    %1716 = vmatpush1.msra.mxu0 %v387
    %1717 = vmatprep.subr.mxu0 %v384
    %1718 = vmatpush1.msra.mxu0 %v383
    %1719 = vmatprep.subr.mxu0 %v380
    %1720 = vmatpush1.msra.mxu0 %v379
    %1721 = vmatprep.subr.mxu0 %v376
    %1722 = vmatpush1.msra.mxu0 %v375
    %1723 = vmatprep.subr.mxu0 %v372
    %1724 = vmatpush1.msra.mxu0 %v371
    %1725 = vmatprep.subr.mxu0 %v368
    %1726 = vmatpush1.msra.mxu0 %v367
    %1727 = vmatprep.subr.mxu0 %v364
    %1728 = vmatpush1.msra.mxu0 %v363
    %1729 = vmatprep.subr.mxu0 %v360
    %1730 = vmatpush1.msra.mxu0 %v359
    %1731 = vmatprep.subr.mxu0 %v356
    %1732 = vmatpush1.msra.mxu0 %v355
    %1733 = vmatprep.subr.mxu0 %v352
    %1734 = vmatpush1.msra.mxu0 %v351
    %1735 = vmatprep.subr.mxu0 %v348
    %1736 = vmatpush1.msra.mxu0 %v347
    %1737 = vmatprep.subr.mxu0 %v344
    %1738 = vmatpush1.msra.mxu0 %v343
    %1739 = vmatprep.subr.mxu0 %v340
    %1740 = vmatpush1.msra.mxu0 %v339
    %1741 = vmatprep.subr.mxu0 %v336
    %1742 = vmatpush1.msra.mxu0 %v335
    %1743 = vmatprep.subr.mxu0 0.0
    %1744 = vmatpush2.msra.mxu0 0.0
    %1745 = vmatprep.subr.mxu0 0.0
    %1746 = vmatpush2.msra.mxu0 0.0
    %1747 = vmatprep.subr.mxu0 0.0
    %1748 = vmatpush2.msra.mxu0 0.0
    %1749 = vmatprep.subr.mxu0 0.0
    %1750 = vmatpush2.msra.mxu0 0.0
    %1751 = vmatprep.subr.mxu0 0.0
    %1752 = vmatpush2.msra.mxu0 0.0
    %1753 = vmatprep.subr.mxu0 0.0
    %1754 = vmatpush2.msra.mxu0 0.0
    %1755 = vmatprep.subr.mxu0 0.0
    %1756 = vmatpush2.msra.mxu0 0.0
    %1757 = vmatprep.subr.mxu0 0.0
    %1758 = vmatpush2.msra.mxu0 0.0
    %1759 = vmatprep.subr.mxu0 0.0
    %1760 = vmatpush2.msra.mxu0 0.0
    %1761 = vmatprep.subr.mxu0 0.0
    %1762 = vmatpush2.msra.mxu0 0.0
    %1763 = vmatprep.subr.mxu0 0.0
    %1764 = vmatpush2.msra.mxu0 0.0
    %1765 = vmatprep.subr.mxu0 0.0
    %1766 = vmatpush2.msra.mxu0 0.0
    %1767 = vmatprep.subr.mxu0 0.0
    %1768 = vmatpush2.msra.mxu0 0.0
    %1769 = vmatprep.subr.mxu0 0.0
    %1770 = vmatpush2.msra.mxu0 0.0
    %1771 = vmatprep.subr.mxu0 0.0
    %1772 = vmatpush2.msra.mxu0 0.0
    %1773 = vmatprep.subr.mxu0 0.0
    %1774 = vmatpush2.msra.mxu0 0.0
    %1775 = vmatprep.mubr.f32.mxu0 0.0
    %1776 = vmatmul.mubr.f32.gmra.mxu0 %v1710
    %v1777 = vpop.f32.mrf.mxu0
    %v1778 = vadd.f32 %v1603, %v1777
    %v1779 = vpop.f32.mrf.mxu0
    %v1780 = vadd.f32 %v1605, %v1779
    %1781 = vdwg.mxu0
    %1782 = vmatprep.subr.mxu0 %v398
    %1783 = vmatpush1.msra.mxu0 %v397
    %1784 = vmatprep.subr.mxu0 %v394
    %1785 = vmatpush1.msra.mxu0 %v393
    %1786 = vmatprep.subr.mxu0 %v390
    %1787 = vmatpush1.msra.mxu0 %v389
    %1788 = vmatprep.subr.mxu0 %v386
    %1789 = vmatpush1.msra.mxu0 %v385
    %1790 = vmatprep.subr.mxu0 %v382
    %1791 = vmatpush1.msra.mxu0 %v381
    %1792 = vmatprep.subr.mxu0 %v378
    %1793 = vmatpush1.msra.mxu0 %v377
    %1794 = vmatprep.subr.mxu0 %v374
    %1795 = vmatpush1.msra.mxu0 %v373
    %1796 = vmatprep.subr.mxu0 %v370
    %1797 = vmatpush1.msra.mxu0 %v369
    %1798 = vmatprep.subr.mxu0 %v366
    %1799 = vmatpush1.msra.mxu0 %v365
    %1800 = vmatprep.subr.mxu0 %v362
    %1801 = vmatpush1.msra.mxu0 %v361
    %1802 = vmatprep.subr.mxu0 %v358
    %1803 = vmatpush1.msra.mxu0 %v357
    %1804 = vmatprep.subr.mxu0 %v354
    %1805 = vmatpush1.msra.mxu0 %v353
    %1806 = vmatprep.subr.mxu0 %v350
    %1807 = vmatpush1.msra.mxu0 %v349
    %1808 = vmatprep.subr.mxu0 %v346
    %1809 = vmatpush1.msra.mxu0 %v345
    %1810 = vmatprep.subr.mxu0 %v342
    %1811 = vmatpush1.msra.mxu0 %v341
    %1812 = vmatprep.subr.mxu0 %v338
    %1813 = vmatpush1.msra.mxu0 %v337
    %1814 = vmatprep.subr.mxu0 0.0
    %1815 = vmatpush2.msra.mxu0 0.0
    %1816 = vmatprep.subr.mxu0 0.0
    %1817 = vmatpush2.msra.mxu0 0.0
    %1818 = vmatprep.subr.mxu0 0.0
    %1819 = vmatpush2.msra.mxu0 0.0
    %1820 = vmatprep.subr.mxu0 0.0
    %1821 = vmatpush2.msra.mxu0 0.0
    %1822 = vmatprep.subr.mxu0 0.0
    %1823 = vmatpush2.msra.mxu0 0.0
    %1824 = vmatprep.subr.mxu0 0.0
    %1825 = vmatpush2.msra.mxu0 0.0
    %1826 = vmatprep.subr.mxu0 0.0
    %1827 = vmatpush2.msra.mxu0 0.0
    %1828 = vmatprep.subr.mxu0 0.0
    %1829 = vmatpush2.msra.mxu0 0.0
    %1830 = vmatprep.subr.mxu0 0.0
    %1831 = vmatpush2.msra.mxu0 0.0
    %1832 = vmatprep.subr.mxu0 0.0
    %1833 = vmatpush2.msra.mxu0 0.0
    %1834 = vmatprep.subr.mxu0 0.0
    %1835 = vmatpush2.msra.mxu0 0.0
    %1836 = vmatprep.subr.mxu0 0.0
    %1837 = vmatpush2.msra.mxu0 0.0
    %1838 = vmatprep.subr.mxu0 0.0
    %1839 = vmatpush2.msra.mxu0 0.0
    %1840 = vmatprep.subr.mxu0 0.0
    %1841 = vmatpush2.msra.mxu0 0.0
    %1842 = vmatprep.subr.mxu0 0.0
    %1843 = vmatpush2.msra.mxu0 0.0
    %1844 = vmatprep.subr.mxu0 0.0
    %1845 = vmatpush2.msra.mxu0 0.0
    %1846 = vmatprep.mubr.f32.mxu0 0.0
    %1847 = vmatmul.mubr.f32.gmra.mxu0 %v1710
    %v1848 = vpop.f32.mrf.mxu0
    %v1849 = vadd.f32 %v1674, %v1848
    %v1850 = vpop.f32.mrf.mxu0
    %v1851 = vadd.f32 %v1676, %v1850
    %1852 = vdwg.mxu0
    %v1853 = vadd.f32 %v1778, %v862
    %v1854 = vadd.f32 %v1780, %v866
    %v1855 = vadd.f32 %v1849, %v870
    %v1856 = vadd.f32 %v1851, %v874
    %v1857 = vtanh.pop %v1853
    %v1858 = vxor.u32 %v1854, 2147483648
    %v1859 = vmul.f32 %v1858, 1.442695
    %v1860 = vpow.pop %v1859
    %v1861 = vadd.f32 %v1860, 1.0
    %v1862 = vrcp.pop %v1861
    %v1863 = vmul.f32 1.0, %v1862
    %v1864 = vxor.u32 %v1855, 2147483648
    %v1865 = vmul.f32 %v1864, 1.442695
    %v1866 = vpow.pop %v1865
    %v1867 = vadd.f32 %v1866, 1.0
    %v1868 = vrcp.pop %v1867
    %v1869 = vmul.f32 1.0, %v1868
    %v1870 = vxor.u32 %v1856, 2147483648
    %v1871 = vmul.f32 %v1870, 1.442695
    %v1872 = vpow.pop %v1871
    %v1873 = vadd.f32 %v1872, 1.0
    %v1874 = vrcp.pop %v1873
    %v1875 = vmul.f32 1.0, %v1874
    %v1876 = vmul.f32 %v1857, %v1863
    %v1877 = vmul.f32 %v1391, %v1869
    %v1878 = vadd.f32 %v1876, %v1877
    %v1879 = vtanh.pop %v1878
    %v1880 = vmul.f32 %v1879, %v1875
    %1881 = vmatprep.subr.mxu0 %v200
    %1882 = vmatpush1.msra.mxu0 %v199
    %1883 = vmatprep.subr.mxu0 %v192
    %1884 = vmatpush1.msra.mxu0 %v191
    %1885 = vmatprep.subr.mxu0 %v184
    %1886 = vmatpush1.msra.mxu0 %v183
    %1887 = vmatprep.subr.mxu0 %v176
    %1888 = vmatpush1.msra.mxu0 %v175
    %1889 = vmatprep.subr.mxu0 %v168
    %1890 = vmatpush1.msra.mxu0 %v167
    %1891 = vmatprep.subr.mxu0 %v160
    %1892 = vmatpush1.msra.mxu0 %v159
    %1893 = vmatprep.subr.mxu0 %v152
    %1894 = vmatpush1.msra.mxu0 %v151
    %1895 = vmatprep.subr.mxu0 %v144
    %1896 = vmatpush1.msra.mxu0 %v143
    %1897 = vmatprep.subr.mxu0 %v136
    %1898 = vmatpush1.msra.mxu0 %v135
    %1899 = vmatprep.subr.mxu0 %v128
    %1900 = vmatpush1.msra.mxu0 %v127
    %1901 = vmatprep.subr.mxu0 %v120
    %1902 = vmatpush1.msra.mxu0 %v119
    %1903 = vmatprep.subr.mxu0 %v112
    %1904 = vmatpush1.msra.mxu0 %v111
    %1905 = vmatprep.subr.mxu0 %v104
    %1906 = vmatpush1.msra.mxu0 %v103
    %1907 = vmatprep.subr.mxu0 %v96
    %1908 = vmatpush1.msra.mxu0 %v95
    %1909 = vmatprep.subr.mxu0 %v88
    %1910 = vmatpush1.msra.mxu0 %v87
    %1911 = vmatprep.subr.mxu0 %v80
    %1912 = vmatpush1.msra.mxu0 %v79
    %1913 = vmatprep.subr.mxu0 %v328
    %1914 = vmatpush2.msra.mxu0 %v327
    %1915 = vmatprep.subr.mxu0 %v320
    %1916 = vmatpush2.msra.mxu0 %v319
    %1917 = vmatprep.subr.mxu0 %v312
    %1918 = vmatpush2.msra.mxu0 %v311
    %1919 = vmatprep.subr.mxu0 %v304
    %1920 = vmatpush2.msra.mxu0 %v303
    %1921 = vmatprep.subr.mxu0 %v296
    %1922 = vmatpush2.msra.mxu0 %v295
    %1923 = vmatprep.subr.mxu0 %v288
    %1924 = vmatpush2.msra.mxu0 %v287
    %1925 = vmatprep.subr.mxu0 %v280
    %1926 = vmatpush2.msra.mxu0 %v279
    %1927 = vmatprep.subr.mxu0 %v272
    %1928 = vmatpush2.msra.mxu0 %v271
    %1929 = vmatprep.subr.mxu0 %v264
    %1930 = vmatpush2.msra.mxu0 %v263
    %1931 = vmatprep.subr.mxu0 %v256
    %1932 = vmatpush2.msra.mxu0 %v255
    %1933 = vmatprep.subr.mxu0 %v248
    %1934 = vmatpush2.msra.mxu0 %v247
    %1935 = vmatprep.subr.mxu0 %v240
    %1936 = vmatpush2.msra.mxu0 %v239
    %1937 = vmatprep.subr.mxu0 %v232
    %1938 = vmatpush2.msra.mxu0 %v231
    %1939 = vmatprep.subr.mxu0 %v224
    %1940 = vmatpush2.msra.mxu0 %v223
    %1941 = vmatprep.subr.mxu0 %v216
    %1942 = vmatpush2.msra.mxu0 %v215
    %1943 = vmatprep.subr.mxu0 %v208
    %1944 = vmatpush2.msra.mxu0 %v207
    %1945 = vmatprep.mubr.f32.mxu0 %v1880
    %1946 = vmatmul.mubr.f32.gmra.mxu0 %v1710
    %v1947 = vpop.f32.mrf.mxu0
    %v1948 = vadd.f32 0.0, %v1947
    %v1949 = vpop.f32.mrf.mxu0
    %v1950 = vadd.f32 0.0, %v1949
    %1951 = vdwg.mxu0
    %1952 = vmatprep.subr.mxu0 %v202
    %1953 = vmatpush1.msra.mxu0 %v201
    %1954 = vmatprep.subr.mxu0 %v194
    %1955 = vmatpush1.msra.mxu0 %v193
    %1956 = vmatprep.subr.mxu0 %v186
    %1957 = vmatpush1.msra.mxu0 %v185
    %1958 = vmatprep.subr.mxu0 %v178
    %1959 = vmatpush1.msra.mxu0 %v177
    %1960 = vmatprep.subr.mxu0 %v170
    %1961 = vmatpush1.msra.mxu0 %v169
    %1962 = vmatprep.subr.mxu0 %v162
    %1963 = vmatpush1.msra.mxu0 %v161
    %1964 = vmatprep.subr.mxu0 %v154
    %1965 = vmatpush1.msra.mxu0 %v153
    %1966 = vmatprep.subr.mxu0 %v146
    %1967 = vmatpush1.msra.mxu0 %v145
    %1968 = vmatprep.subr.mxu0 %v138
    %1969 = vmatpush1.msra.mxu0 %v137
    %1970 = vmatprep.subr.mxu0 %v130
    %1971 = vmatpush1.msra.mxu0 %v129
    %1972 = vmatprep.subr.mxu0 %v122
    %1973 = vmatpush1.msra.mxu0 %v121
    %1974 = vmatprep.subr.mxu0 %v114
    %1975 = vmatpush1.msra.mxu0 %v113
    %1976 = vmatprep.subr.mxu0 %v106
    %1977 = vmatpush1.msra.mxu0 %v105
    %1978 = vmatprep.subr.mxu0 %v98
    %1979 = vmatpush1.msra.mxu0 %v97
    %1980 = vmatprep.subr.mxu0 %v90
    %1981 = vmatpush1.msra.mxu0 %v89
    %1982 = vmatprep.subr.mxu0 %v82
    %1983 = vmatpush1.msra.mxu0 %v81
    %1984 = vmatprep.subr.mxu0 %v330
    %1985 = vmatpush2.msra.mxu0 %v329
    %1986 = vmatprep.subr.mxu0 %v322
    %1987 = vmatpush2.msra.mxu0 %v321
    %1988 = vmatprep.subr.mxu0 %v314
    %1989 = vmatpush2.msra.mxu0 %v313
    %1990 = vmatprep.subr.mxu0 %v306
    %1991 = vmatpush2.msra.mxu0 %v305
    %1992 = vmatprep.subr.mxu0 %v298
    %1993 = vmatpush2.msra.mxu0 %v297
    %1994 = vmatprep.subr.mxu0 %v290
    %1995 = vmatpush2.msra.mxu0 %v289
    %1996 = vmatprep.subr.mxu0 %v282
    %1997 = vmatpush2.msra.mxu0 %v281
    %1998 = vmatprep.subr.mxu0 %v274
    %1999 = vmatpush2.msra.mxu0 %v273
    %2000 = vmatprep.subr.mxu0 %v266
    %2001 = vmatpush2.msra.mxu0 %v265
    %2002 = vmatprep.subr.mxu0 %v258
    %2003 = vmatpush2.msra.mxu0 %v257
    %2004 = vmatprep.subr.mxu0 %v250
    %2005 = vmatpush2.msra.mxu0 %v249
    %2006 = vmatprep.subr.mxu0 %v242
    %2007 = vmatpush2.msra.mxu0 %v241
    %2008 = vmatprep.subr.mxu0 %v234
    %2009 = vmatpush2.msra.mxu0 %v233
    %2010 = vmatprep.subr.mxu0 %v226
    %2011 = vmatpush2.msra.mxu0 %v225
    %2012 = vmatprep.subr.mxu0 %v218
    %2013 = vmatpush2.msra.mxu0 %v217
    %2014 = vmatprep.subr.mxu0 %v210
    %2015 = vmatpush2.msra.mxu0 %v209
    %2016 = vmatprep.mubr.f32.mxu0 %v1880
    %2017 = vmatmul.mubr.f32.gmra.mxu0 %v1710
    %v2018 = vpop.f32.mrf.mxu0
    %v2019 = vadd.f32 0.0, %v2018
    %v2020 = vpop.f32.mrf.mxu0
    %v2021 = vadd.f32 0.0, %v2020
    %2022 = vdwg.mxu0
    %2023 = vmatprep.subr.mxu0 %v204
    %2024 = vmatpush1.msra.mxu0 %v203
    %2025 = vmatprep.subr.mxu0 %v196
    %2026 = vmatpush1.msra.mxu0 %v195
    %2027 = vmatprep.subr.mxu0 %v188
    %2028 = vmatpush1.msra.mxu0 %v187
    %2029 = vmatprep.subr.mxu0 %v180
    %2030 = vmatpush1.msra.mxu0 %v179
    %2031 = vmatprep.subr.mxu0 %v172
    %2032 = vmatpush1.msra.mxu0 %v171
    %2033 = vmatprep.subr.mxu0 %v164
    %2034 = vmatpush1.msra.mxu0 %v163
    %2035 = vmatprep.subr.mxu0 %v156
    %2036 = vmatpush1.msra.mxu0 %v155
    %2037 = vmatprep.subr.mxu0 %v148
    %2038 = vmatpush1.msra.mxu0 %v147
    %2039 = vmatprep.subr.mxu0 %v140
    %2040 = vmatpush1.msra.mxu0 %v139
    %2041 = vmatprep.subr.mxu0 %v132
    %2042 = vmatpush1.msra.mxu0 %v131
    %2043 = vmatprep.subr.mxu0 %v124
    %2044 = vmatpush1.msra.mxu0 %v123
    %2045 = vmatprep.subr.mxu0 %v116
    %2046 = vmatpush1.msra.mxu0 %v115
    %2047 = vmatprep.subr.mxu0 %v108
    %2048 = vmatpush1.msra.mxu0 %v107
    %2049 = vmatprep.subr.mxu0 %v100
    %2050 = vmatpush1.msra.mxu0 %v99
    %2051 = vmatprep.subr.mxu0 %v92
    %2052 = vmatpush1.msra.mxu0 %v91
    %2053 = vmatprep.subr.mxu0 %v84
    %2054 = vmatpush1.msra.mxu0 %v83
    %2055 = vmatprep.subr.mxu0 %v332
    %2056 = vmatpush2.msra.mxu0 %v331
    %2057 = vmatprep.subr.mxu0 %v324
    %2058 = vmatpush2.msra.mxu0 %v323
    %2059 = vmatprep.subr.mxu0 %v316
    %2060 = vmatpush2.msra.mxu0 %v315
    %2061 = vmatprep.subr.mxu0 %v308
    %2062 = vmatpush2.msra.mxu0 %v307
    %2063 = vmatprep.subr.mxu0 %v300
    %2064 = vmatpush2.msra.mxu0 %v299
    %2065 = vmatprep.subr.mxu0 %v292
    %2066 = vmatpush2.msra.mxu0 %v291
    %2067 = vmatprep.subr.mxu0 %v284
    %2068 = vmatpush2.msra.mxu0 %v283
    %2069 = vmatprep.subr.mxu0 %v276
    %2070 = vmatpush2.msra.mxu0 %v275
    %2071 = vmatprep.subr.mxu0 %v268
    %2072 = vmatpush2.msra.mxu0 %v267
    %2073 = vmatprep.subr.mxu0 %v260
    %2074 = vmatpush2.msra.mxu0 %v259
    %2075 = vmatprep.subr.mxu0 %v252
    %2076 = vmatpush2.msra.mxu0 %v251
    %2077 = vmatprep.subr.mxu0 %v244
    %2078 = vmatpush2.msra.mxu0 %v243
    %2079 = vmatprep.subr.mxu0 %v236
    %2080 = vmatpush2.msra.mxu0 %v235
    %2081 = vmatprep.subr.mxu0 %v228
    %2082 = vmatpush2.msra.mxu0 %v227
    %2083 = vmatprep.subr.mxu0 %v220
    %2084 = vmatpush2.msra.mxu0 %v219
    %2085 = vmatprep.subr.mxu0 %v212
    %2086 = vmatpush2.msra.mxu0 %v211
    %2087 = vmatprep.mubr.f32.mxu0 %v1880
    %2088 = vmatmul.mubr.f32.gmra.mxu0 %v1710
    %v2089 = vpop.f32.mrf.mxu0
    %v2090 = vadd.f32 0.0, %v2089
    %v2091 = vpop.f32.mrf.mxu0
    %v2092 = vadd.f32 0.0, %v2091
    %2093 = vdwg.mxu0
    %2094 = vmatprep.subr.mxu0 %v206
    %2095 = vmatpush1.msra.mxu0 %v205
    %2096 = vmatprep.subr.mxu0 %v198
    %2097 = vmatpush1.msra.mxu0 %v197
    %2098 = vmatprep.subr.mxu0 %v190
    %2099 = vmatpush1.msra.mxu0 %v189
    %2100 = vmatprep.subr.mxu0 %v182
    %2101 = vmatpush1.msra.mxu0 %v181
    %2102 = vmatprep.subr.mxu0 %v174
    %2103 = vmatpush1.msra.mxu0 %v173
    %2104 = vmatprep.subr.mxu0 %v166
    %2105 = vmatpush1.msra.mxu0 %v165
    %2106 = vmatprep.subr.mxu0 %v158
    %2107 = vmatpush1.msra.mxu0 %v157
    %2108 = vmatprep.subr.mxu0 %v150
    %2109 = vmatpush1.msra.mxu0 %v149
    %2110 = vmatprep.subr.mxu0 %v142
    %2111 = vmatpush1.msra.mxu0 %v141
    %2112 = vmatprep.subr.mxu0 %v134
    %2113 = vmatpush1.msra.mxu0 %v133
    %2114 = vmatprep.subr.mxu0 %v126
    %2115 = vmatpush1.msra.mxu0 %v125
    %2116 = vmatprep.subr.mxu0 %v118
    %2117 = vmatpush1.msra.mxu0 %v117
    %2118 = vmatprep.subr.mxu0 %v110
    %2119 = vmatpush1.msra.mxu0 %v109
    %2120 = vmatprep.subr.mxu0 %v102
    %2121 = vmatpush1.msra.mxu0 %v101
    %2122 = vmatprep.subr.mxu0 %v94
    %2123 = vmatpush1.msra.mxu0 %v93
    %2124 = vmatprep.subr.mxu0 %v86
    %2125 = vmatpush1.msra.mxu0 %v85
    %2126 = vmatprep.subr.mxu0 %v334
    %2127 = vmatpush2.msra.mxu0 %v333
    %2128 = vmatprep.subr.mxu0 %v326
    %2129 = vmatpush2.msra.mxu0 %v325
    %2130 = vmatprep.subr.mxu0 %v318
    %2131 = vmatpush2.msra.mxu0 %v317
    %2132 = vmatprep.subr.mxu0 %v310
    %2133 = vmatpush2.msra.mxu0 %v309
    %2134 = vmatprep.subr.mxu0 %v302
    %2135 = vmatpush2.msra.mxu0 %v301
    %2136 = vmatprep.subr.mxu0 %v294
    %2137 = vmatpush2.msra.mxu0 %v293
    %2138 = vmatprep.subr.mxu0 %v286
    %2139 = vmatpush2.msra.mxu0 %v285
    %2140 = vmatprep.subr.mxu0 %v278
    %2141 = vmatpush2.msra.mxu0 %v277
    %2142 = vmatprep.subr.mxu0 %v270
    %2143 = vmatpush2.msra.mxu0 %v269
    %2144 = vmatprep.subr.mxu0 %v262
    %2145 = vmatpush2.msra.mxu0 %v261
    %2146 = vmatprep.subr.mxu0 %v254
    %2147 = vmatpush2.msra.mxu0 %v253
    %2148 = vmatprep.subr.mxu0 %v246
    %2149 = vmatpush2.msra.mxu0 %v245
    %2150 = vmatprep.subr.mxu0 %v238
    %2151 = vmatpush2.msra.mxu0 %v237
    %2152 = vmatprep.subr.mxu0 %v230
    %2153 = vmatpush2.msra.mxu0 %v229
    %2154 = vmatprep.subr.mxu0 %v222
    %2155 = vmatpush2.msra.mxu0 %v221
    %2156 = vmatprep.subr.mxu0 %v214
    %2157 = vmatpush2.msra.mxu0 %v213
    %2158 = vmatprep.mubr.f32.mxu0 %v1880
    %2159 = vmatmul.mubr.f32.gmra.mxu0 %v1710
    %v2160 = vpop.f32.mrf.mxu0
    %v2161 = vadd.f32 0.0, %v2160
    %v2162 = vpop.f32.mrf.mxu0
    %v2163 = vadd.f32 0.0, %v2162
    %2164 = vdwg.mxu0
    %s2165 = scalar_lea.vmem [#allocation2], 96
    %v2166 = vld [vmem:[%s2165] sm:$0xff]
    %v2167 = vld [vmem:[%s2165 + $0x8] sm:$0xff]
    %v2168 = vld [vmem:[%s2165 + $0x10] sm:$0xff]
    %v2169 = vld [vmem:[%s2165 + $0x18] sm:$0xff]
    %v2170 = vadd.f32 %v2166, %v1948
    %v2171 = vadd.f32 %v2167, %v1950
    %v2172 = vadd.f32 %v2168, %v2019
    %v2173 = vadd.f32 %v2169, %v2021
    %v2174 = vtanh.pop %v2170
    %v2175 = vxor.u32 %v2171, 2147483648
    %v2176 = vmul.f32 %v2175, 1.442695
    %v2177 = vpow.pop %v2176
    %v2178 = vadd.f32 %v2177, 1.0
    %v2179 = vrcp.pop %v2178
    %v2180 = vmul.f32 1.0, %v2179
    %v2181 = vxor.u32 %v2172, 2147483648
    %v2182 = vmul.f32 %v2181, 1.442695
    %v2183 = vpow.pop %v2182
    %v2184 = vadd.f32 %v2183, 1.0
    %v2185 = vrcp.pop %v2184
    %v2186 = vmul.f32 1.0, %v2185
    %v2187 = vxor.u32 %v2173, 2147483648
    %v2188 = vmul.f32 %v2187, 1.442695
    %v2189 = vpow.pop %v2188
    %v2190 = vadd.f32 %v2189, 1.0
    %v2191 = vrcp.pop %v2190
    %v2192 = vmul.f32 1.0, %v2191
    %v2193 = vmul.f32 %v2174, %v2180
    %v2194 = vmul.f32 %v1708, %v2186
    %v2195 = vadd.f32 %v2193, %v2194
    %v2196 = vtanh.pop %v2195
    %v2197 = vmul.f32 %v2196, %v2192
    %2198 = vmatprep.subr.mxu0 %v396
    %2199 = vmatpush1.msra.mxu0 %v395
    %2200 = vmatprep.subr.mxu0 %v392
    %2201 = vmatpush1.msra.mxu0 %v391
    %2202 = vmatprep.subr.mxu0 %v388
    %2203 = vmatpush1.msra.mxu0 %v387
    %2204 = vmatprep.subr.mxu0 %v384
    %2205 = vmatpush1.msra.mxu0 %v383
    %2206 = vmatprep.subr.mxu0 %v380
    %2207 = vmatpush1.msra.mxu0 %v379
    %2208 = vmatprep.subr.mxu0 %v376
    %2209 = vmatpush1.msra.mxu0 %v375
    %2210 = vmatprep.subr.mxu0 %v372
    %2211 = vmatpush1.msra.mxu0 %v371
    %2212 = vmatprep.subr.mxu0 %v368
    %2213 = vmatpush1.msra.mxu0 %v367
    %2214 = vmatprep.subr.mxu0 %v364
    %2215 = vmatpush1.msra.mxu0 %v363
    %2216 = vmatprep.subr.mxu0 %v360
    %2217 = vmatpush1.msra.mxu0 %v359
    %2218 = vmatprep.subr.mxu0 %v356
    %2219 = vmatpush1.msra.mxu0 %v355
    %2220 = vmatprep.subr.mxu0 %v352
    %2221 = vmatpush1.msra.mxu0 %v351
    %2222 = vmatprep.subr.mxu0 %v348
    %2223 = vmatpush1.msra.mxu0 %v347
    %2224 = vmatprep.subr.mxu0 %v344
    %2225 = vmatpush1.msra.mxu0 %v343
    %2226 = vmatprep.subr.mxu0 %v340
    %2227 = vmatpush1.msra.mxu0 %v339
    %2228 = vmatprep.subr.mxu0 %v336
    %2229 = vmatpush1.msra.mxu0 %v335
    %2230 = vmatprep.subr.mxu0 0.0
    %2231 = vmatpush2.msra.mxu0 0.0
    %2232 = vmatprep.subr.mxu0 0.0
    %2233 = vmatpush2.msra.mxu0 0.0
    %2234 = vmatprep.subr.mxu0 0.0
    %2235 = vmatpush2.msra.mxu0 0.0
    %2236 = vmatprep.subr.mxu0 0.0
    %2237 = vmatpush2.msra.mxu0 0.0
    %2238 = vmatprep.subr.mxu0 0.0
    %2239 = vmatpush2.msra.mxu0 0.0
    %2240 = vmatprep.subr.mxu0 0.0
    %2241 = vmatpush2.msra.mxu0 0.0
    %2242 = vmatprep.subr.mxu0 0.0
    %2243 = vmatpush2.msra.mxu0 0.0
    %2244 = vmatprep.subr.mxu0 0.0
    %2245 = vmatpush2.msra.mxu0 0.0
    %2246 = vmatprep.subr.mxu0 0.0
    %2247 = vmatpush2.msra.mxu0 0.0
    %2248 = vmatprep.subr.mxu0 0.0
    %2249 = vmatpush2.msra.mxu0 0.0
    %2250 = vmatprep.subr.mxu0 0.0
    %2251 = vmatpush2.msra.mxu0 0.0
    %2252 = vmatprep.subr.mxu0 0.0
    %2253 = vmatpush2.msra.mxu0 0.0
    %2254 = vmatprep.subr.mxu0 0.0
    %2255 = vmatpush2.msra.mxu0 0.0
    %2256 = vmatprep.subr.mxu0 0.0
    %2257 = vmatpush2.msra.mxu0 0.0
    %2258 = vmatprep.subr.mxu0 0.0
    %2259 = vmatpush2.msra.mxu0 0.0
    %2260 = vmatprep.subr.mxu0 0.0
    %2261 = vmatpush2.msra.mxu0 0.0
    %2262 = vmatprep.mubr.f32.mxu0 0.0
    %2263 = vmatmul.mubr.f32.gmra.mxu0 %v2197
    %v2264 = vpop.f32.mrf.mxu0
    %v2265 = vadd.f32 %v2090, %v2264
    %v2266 = vpop.f32.mrf.mxu0
    %v2267 = vadd.f32 %v2092, %v2266
    %2268 = vdwg.mxu0
    %2269 = vmatprep.subr.mxu0 %v398
    %2270 = vmatpush1.msra.mxu0 %v397
    %2271 = vmatprep.subr.mxu0 %v394
    %2272 = vmatpush1.msra.mxu0 %v393
    %2273 = vmatprep.subr.mxu0 %v390
    %2274 = vmatpush1.msra.mxu0 %v389
    %2275 = vmatprep.subr.mxu0 %v386
    %2276 = vmatpush1.msra.mxu0 %v385
    %2277 = vmatprep.subr.mxu0 %v382
    %2278 = vmatpush1.msra.mxu0 %v381
    %2279 = vmatprep.subr.mxu0 %v378
    %2280 = vmatpush1.msra.mxu0 %v377
    %2281 = vmatprep.subr.mxu0 %v374
    %2282 = vmatpush1.msra.mxu0 %v373
    %2283 = vmatprep.subr.mxu0 %v370
    %2284 = vmatpush1.msra.mxu0 %v369
    %2285 = vmatprep.subr.mxu0 %v366
    %2286 = vmatpush1.msra.mxu0 %v365
    %2287 = vmatprep.subr.mxu0 %v362
    %2288 = vmatpush1.msra.mxu0 %v361
    %2289 = vmatprep.subr.mxu0 %v358
    %2290 = vmatpush1.msra.mxu0 %v357
    %2291 = vmatprep.subr.mxu0 %v354
    %2292 = vmatpush1.msra.mxu0 %v353
    %2293 = vmatprep.subr.mxu0 %v350
    %2294 = vmatpush1.msra.mxu0 %v349
    %2295 = vmatprep.subr.mxu0 %v346
    %2296 = vmatpush1.msra.mxu0 %v345
    %2297 = vmatprep.subr.mxu0 %v342
    %2298 = vmatpush1.msra.mxu0 %v341
    %2299 = vmatprep.subr.mxu0 %v338
    %2300 = vmatpush1.msra.mxu0 %v337
    %2301 = vmatprep.subr.mxu0 0.0
    %2302 = vmatpush2.msra.mxu0 0.0
    %2303 = vmatprep.subr.mxu0 0.0
    %2304 = vmatpush2.msra.mxu0 0.0
    %2305 = vmatprep.subr.mxu0 0.0
    %2306 = vmatpush2.msra.mxu0 0.0
    %2307 = vmatprep.subr.mxu0 0.0
    %2308 = vmatpush2.msra.mxu0 0.0
    %2309 = vmatprep.subr.mxu0 0.0
    %2310 = vmatpush2.msra.mxu0 0.0
    %2311 = vmatprep.subr.mxu0 0.0
    %2312 = vmatpush2.msra.mxu0 0.0
    %2313 = vmatprep.subr.mxu0 0.0
    %2314 = vmatpush2.msra.mxu0 0.0
    %2315 = vmatprep.subr.mxu0 0.0
    %2316 = vmatpush2.msra.mxu0 0.0
    %2317 = vmatprep.subr.mxu0 0.0
    %2318 = vmatpush2.msra.mxu0 0.0
    %2319 = vmatprep.subr.mxu0 0.0
    %2320 = vmatpush2.msra.mxu0 0.0
    %2321 = vmatprep.subr.mxu0 0.0
    %2322 = vmatpush2.msra.mxu0 0.0
    %2323 = vmatprep.subr.mxu0 0.0
    %2324 = vmatpush2.msra.mxu0 0.0
    %2325 = vmatprep.subr.mxu0 0.0
    %2326 = vmatpush2.msra.mxu0 0.0
    %2327 = vmatprep.subr.mxu0 0.0
    %2328 = vmatpush2.msra.mxu0 0.0
    %2329 = vmatprep.subr.mxu0 0.0
    %2330 = vmatpush2.msra.mxu0 0.0
    %2331 = vmatprep.subr.mxu0 0.0
    %2332 = vmatpush2.msra.mxu0 0.0
    %2333 = vmatprep.mubr.f32.mxu0 0.0
    %2334 = vmatmul.mubr.f32.gmra.mxu0 %v2197
    %v2335 = vpop.f32.mrf.mxu0
    %v2336 = vadd.f32 %v2161, %v2335
    %v2337 = vpop.f32.mrf.mxu0
    %v2338 = vadd.f32 %v2163, %v2337
    %2339 = vdwg.mxu0
    %v2340 = vadd.f32 %v2265, %v862
    %v2341 = vadd.f32 %v2267, %v866
    %v2342 = vadd.f32 %v2336, %v870
    %v2343 = vadd.f32 %v2338, %v874
    %v2344 = vtanh.pop %v2340
    %v2345 = vxor.u32 %v2341, 2147483648
    %v2346 = vmul.f32 %v2345, 1.442695
    %v2347 = vpow.pop %v2346
    %v2348 = vadd.f32 %v2347, 1.0
    %v2349 = vrcp.pop %v2348
    %v2350 = vmul.f32 1.0, %v2349
    %v2351 = vxor.u32 %v2342, 2147483648
    %v2352 = vmul.f32 %v2351, 1.442695
    %v2353 = vpow.pop %v2352
    %v2354 = vadd.f32 %v2353, 1.0
    %v2355 = vrcp.pop %v2354
    %v2356 = vmul.f32 1.0, %v2355
    %v2357 = vxor.u32 %v2343, 2147483648
    %v2358 = vmul.f32 %v2357, 1.442695
    %v2359 = vpow.pop %v2358
    %v2360 = vadd.f32 %v2359, 1.0
    %v2361 = vrcp.pop %v2360
    %v2362 = vmul.f32 1.0, %v2361
    %v2363 = vmul.f32 %v2344, %v2350
    %v2364 = vmul.f32 %v1878, %v2356
    %v2365 = vadd.f32 %v2363, %v2364
    %v2366 = vtanh.pop %v2365
    %v2367 = vmul.f32 %v2366, %v2362
    %2368 = vmatprep.subr.mxu0 %v200
    %2369 = vmatpush1.msra.mxu0 %v199
    %2370 = vmatprep.subr.mxu0 %v192
    %2371 = vmatpush1.msra.mxu0 %v191
    %2372 = vmatprep.subr.mxu0 %v184
    %2373 = vmatpush1.msra.mxu0 %v183
    %2374 = vmatprep.subr.mxu0 %v176
    %2375 = vmatpush1.msra.mxu0 %v175
    %2376 = vmatprep.subr.mxu0 %v168
    %2377 = vmatpush1.msra.mxu0 %v167
    %2378 = vmatprep.subr.mxu0 %v160
    %2379 = vmatpush1.msra.mxu0 %v159
    %2380 = vmatprep.subr.mxu0 %v152
    %2381 = vmatpush1.msra.mxu0 %v151
    %2382 = vmatprep.subr.mxu0 %v144
    %2383 = vmatpush1.msra.mxu0 %v143
    %2384 = vmatprep.subr.mxu0 %v136
    %2385 = vmatpush1.msra.mxu0 %v135
    %2386 = vmatprep.subr.mxu0 %v128
    %2387 = vmatpush1.msra.mxu0 %v127
    %2388 = vmatprep.subr.mxu0 %v120
    %2389 = vmatpush1.msra.mxu0 %v119
    %2390 = vmatprep.subr.mxu0 %v112
    %2391 = vmatpush1.msra.mxu0 %v111
    %2392 = vmatprep.subr.mxu0 %v104
    %2393 = vmatpush1.msra.mxu0 %v103
    %2394 = vmatprep.subr.mxu0 %v96
    %2395 = vmatpush1.msra.mxu0 %v95
    %2396 = vmatprep.subr.mxu0 %v88
    %2397 = vmatpush1.msra.mxu0 %v87
    %2398 = vmatprep.subr.mxu0 %v80
    %2399 = vmatpush1.msra.mxu0 %v79
    %2400 = vmatprep.subr.mxu0 %v328
    %2401 = vmatpush2.msra.mxu0 %v327
    %2402 = vmatprep.subr.mxu0 %v320
    %2403 = vmatpush2.msra.mxu0 %v319
    %2404 = vmatprep.subr.mxu0 %v312
    %2405 = vmatpush2.msra.mxu0 %v311
    %2406 = vmatprep.subr.mxu0 %v304
    %2407 = vmatpush2.msra.mxu0 %v303
    %2408 = vmatprep.subr.mxu0 %v296
    %2409 = vmatpush2.msra.mxu0 %v295
    %2410 = vmatprep.subr.mxu0 %v288
    %2411 = vmatpush2.msra.mxu0 %v287
    %2412 = vmatprep.subr.mxu0 %v280
    %2413 = vmatpush2.msra.mxu0 %v279
    %2414 = vmatprep.subr.mxu0 %v272
    %2415 = vmatpush2.msra.mxu0 %v271
    %2416 = vmatprep.subr.mxu0 %v264
    %2417 = vmatpush2.msra.mxu0 %v263
    %2418 = vmatprep.subr.mxu0 %v256
    %2419 = vmatpush2.msra.mxu0 %v255
    %2420 = vmatprep.subr.mxu0 %v248
    %2421 = vmatpush2.msra.mxu0 %v247
    %2422 = vmatprep.subr.mxu0 %v240
    %2423 = vmatpush2.msra.mxu0 %v239
    %2424 = vmatprep.subr.mxu0 %v232
    %2425 = vmatpush2.msra.mxu0 %v231
    %2426 = vmatprep.subr.mxu0 %v224
    %2427 = vmatpush2.msra.mxu0 %v223
    %2428 = vmatprep.subr.mxu0 %v216
    %2429 = vmatpush2.msra.mxu0 %v215
    %2430 = vmatprep.subr.mxu0 %v208
    %2431 = vmatpush2.msra.mxu0 %v207
    %2432 = vmatprep.mubr.f32.mxu0 %v2367
    %2433 = vmatmul.mubr.f32.gmra.mxu0 %v2197
    %v2434 = vpop.f32.mrf.mxu0
    %v2435 = vadd.f32 0.0, %v2434
    %v2436 = vpop.f32.mrf.mxu0
    %v2437 = vadd.f32 0.0, %v2436
    %2438 = vdwg.mxu0
    %2439 = vmatprep.subr.mxu0 %v202
    %2440 = vmatpush1.msra.mxu0 %v201
    %2441 = vmatprep.subr.mxu0 %v194
    %2442 = vmatpush1.msra.mxu0 %v193
    %2443 = vmatprep.subr.mxu0 %v186
    %2444 = vmatpush1.msra.mxu0 %v185
    %2445 = vmatprep.subr.mxu0 %v178
    %2446 = vmatpush1.msra.mxu0 %v177
    %2447 = vmatprep.subr.mxu0 %v170
    %2448 = vmatpush1.msra.mxu0 %v169
    %2449 = vmatprep.subr.mxu0 %v162
    %2450 = vmatpush1.msra.mxu0 %v161
    %2451 = vmatprep.subr.mxu0 %v154
    %2452 = vmatpush1.msra.mxu0 %v153
    %2453 = vmatprep.subr.mxu0 %v146
    %2454 = vmatpush1.msra.mxu0 %v145
    %2455 = vmatprep.subr.mxu0 %v138
    %2456 = vmatpush1.msra.mxu0 %v137
    %2457 = vmatprep.subr.mxu0 %v130
    %2458 = vmatpush1.msra.mxu0 %v129
    %2459 = vmatprep.subr.mxu0 %v122
    %2460 = vmatpush1.msra.mxu0 %v121
    %2461 = vmatprep.subr.mxu0 %v114
    %2462 = vmatpush1.msra.mxu0 %v113
    %2463 = vmatprep.subr.mxu0 %v106
    %2464 = vmatpush1.msra.mxu0 %v105
    %2465 = vmatprep.subr.mxu0 %v98
    %2466 = vmatpush1.msra.mxu0 %v97
    %2467 = vmatprep.subr.mxu0 %v90
    %2468 = vmatpush1.msra.mxu0 %v89
    %2469 = vmatprep.subr.mxu0 %v82
    %2470 = vmatpush1.msra.mxu0 %v81
    %2471 = vmatprep.subr.mxu0 %v330
    %2472 = vmatpush2.msra.mxu0 %v329
    %2473 = vmatprep.subr.mxu0 %v322
    %2474 = vmatpush2.msra.mxu0 %v321
    %2475 = vmatprep.subr.mxu0 %v314
    %2476 = vmatpush2.msra.mxu0 %v313
    %2477 = vmatprep.subr.mxu0 %v306
    %2478 = vmatpush2.msra.mxu0 %v305
    %2479 = vmatprep.subr.mxu0 %v298
    %2480 = vmatpush2.msra.mxu0 %v297
    %2481 = vmatprep.subr.mxu0 %v290
    %2482 = vmatpush2.msra.mxu0 %v289
    %2483 = vmatprep.subr.mxu0 %v282
    %2484 = vmatpush2.msra.mxu0 %v281
    %2485 = vmatprep.subr.mxu0 %v274
    %2486 = vmatpush2.msra.mxu0 %v273
    %2487 = vmatprep.subr.mxu0 %v266
    %2488 = vmatpush2.msra.mxu0 %v265
    %2489 = vmatprep.subr.mxu0 %v258
    %2490 = vmatpush2.msra.mxu0 %v257
    %2491 = vmatprep.subr.mxu0 %v250
    %2492 = vmatpush2.msra.mxu0 %v249
    %2493 = vmatprep.subr.mxu0 %v242
    %2494 = vmatpush2.msra.mxu0 %v241
    %2495 = vmatprep.subr.mxu0 %v234
    %2496 = vmatpush2.msra.mxu0 %v233
    %2497 = vmatprep.subr.mxu0 %v226
    %2498 = vmatpush2.msra.mxu0 %v225
    %2499 = vmatprep.subr.mxu0 %v218
    %2500 = vmatpush2.msra.mxu0 %v217
    %2501 = vmatprep.subr.mxu0 %v210
    %2502 = vmatpush2.msra.mxu0 %v209
    %2503 = vmatprep.mubr.f32.mxu0 %v2367
    %2504 = vmatmul.mubr.f32.gmra.mxu0 %v2197
    %v2505 = vpop.f32.mrf.mxu0
    %v2506 = vadd.f32 0.0, %v2505
    %v2507 = vpop.f32.mrf.mxu0
    %v2508 = vadd.f32 0.0, %v2507
    %2509 = vdwg.mxu0
    %2510 = vmatprep.subr.mxu0 %v204
    %2511 = vmatpush1.msra.mxu0 %v203
    %2512 = vmatprep.subr.mxu0 %v196
    %2513 = vmatpush1.msra.mxu0 %v195
    %2514 = vmatprep.subr.mxu0 %v188
    %2515 = vmatpush1.msra.mxu0 %v187
    %2516 = vmatprep.subr.mxu0 %v180
    %2517 = vmatpush1.msra.mxu0 %v179
    %2518 = vmatprep.subr.mxu0 %v172
    %2519 = vmatpush1.msra.mxu0 %v171
    %2520 = vmatprep.subr.mxu0 %v164
    %2521 = vmatpush1.msra.mxu0 %v163
    %2522 = vmatprep.subr.mxu0 %v156
    %2523 = vmatpush1.msra.mxu0 %v155
    %2524 = vmatprep.subr.mxu0 %v148
    %2525 = vmatpush1.msra.mxu0 %v147
    %2526 = vmatprep.subr.mxu0 %v140
    %2527 = vmatpush1.msra.mxu0 %v139
    %2528 = vmatprep.subr.mxu0 %v132
    %2529 = vmatpush1.msra.mxu0 %v131
    %2530 = vmatprep.subr.mxu0 %v124
    %2531 = vmatpush1.msra.mxu0 %v123
    %2532 = vmatprep.subr.mxu0 %v116
    %2533 = vmatpush1.msra.mxu0 %v115
    %2534 = vmatprep.subr.mxu0 %v108
    %2535 = vmatpush1.msra.mxu0 %v107
    %2536 = vmatprep.subr.mxu0 %v100
    %2537 = vmatpush1.msra.mxu0 %v99
    %2538 = vmatprep.subr.mxu0 %v92
    %2539 = vmatpush1.msra.mxu0 %v91
    %2540 = vmatprep.subr.mxu0 %v84
    %2541 = vmatpush1.msra.mxu0 %v83
    %2542 = vmatprep.subr.mxu0 %v332
    %2543 = vmatpush2.msra.mxu0 %v331
    %2544 = vmatprep.subr.mxu0 %v324
    %2545 = vmatpush2.msra.mxu0 %v323
    %2546 = vmatprep.subr.mxu0 %v316
    %2547 = vmatpush2.msra.mxu0 %v315
    %2548 = vmatprep.subr.mxu0 %v308
    %2549 = vmatpush2.msra.mxu0 %v307
    %2550 = vmatprep.subr.mxu0 %v300
    %2551 = vmatpush2.msra.mxu0 %v299
    %2552 = vmatprep.subr.mxu0 %v292
    %2553 = vmatpush2.msra.mxu0 %v291
    %2554 = vmatprep.subr.mxu0 %v284
    %2555 = vmatpush2.msra.mxu0 %v283
    %2556 = vmatprep.subr.mxu0 %v276
    %2557 = vmatpush2.msra.mxu0 %v275
    %2558 = vmatprep.subr.mxu0 %v268
    %2559 = vmatpush2.msra.mxu0 %v267
    %2560 = vmatprep.subr.mxu0 %v260
    %2561 = vmatpush2.msra.mxu0 %v259
    %2562 = vmatprep.subr.mxu0 %v252
    %2563 = vmatpush2.msra.mxu0 %v251
    %2564 = vmatprep.subr.mxu0 %v244
    %2565 = vmatpush2.msra.mxu0 %v243
    %2566 = vmatprep.subr.mxu0 %v236
    %2567 = vmatpush2.msra.mxu0 %v235
    %2568 = vmatprep.subr.mxu0 %v228
    %2569 = vmatpush2.msra.mxu0 %v227
    %2570 = vmatprep.subr.mxu0 %v220
    %2571 = vmatpush2.msra.mxu0 %v219
    %2572 = vmatprep.subr.mxu0 %v212
    %2573 = vmatpush2.msra.mxu0 %v211
    %2574 = vmatprep.mubr.f32.mxu0 %v2367
    %2575 = vmatmul.mubr.f32.gmra.mxu0 %v2197
    %v2576 = vpop.f32.mrf.mxu0
    %v2577 = vadd.f32 0.0, %v2576
    %v2578 = vpop.f32.mrf.mxu0
    %v2579 = vadd.f32 0.0, %v2578
    %2580 = vdwg.mxu0
    %2581 = vmatprep.subr.mxu0 %v206
    %2582 = vmatpush1.msra.mxu0 %v205
    %2583 = vmatprep.subr.mxu0 %v198
    %2584 = vmatpush1.msra.mxu0 %v197
    %2585 = vmatprep.subr.mxu0 %v190
    %2586 = vmatpush1.msra.mxu0 %v189
    %2587 = vmatprep.subr.mxu0 %v182
    %2588 = vmatpush1.msra.mxu0 %v181
    %2589 = vmatprep.subr.mxu0 %v174
    %2590 = vmatpush1.msra.mxu0 %v173
    %2591 = vmatprep.subr.mxu0 %v166
    %2592 = vmatpush1.msra.mxu0 %v165
    %2593 = vmatprep.subr.mxu0 %v158
    %2594 = vmatpush1.msra.mxu0 %v157
    %2595 = vmatprep.subr.mxu0 %v150
    %2596 = vmatpush1.msra.mxu0 %v149
    %2597 = vmatprep.subr.mxu0 %v142
    %2598 = vmatpush1.msra.mxu0 %v141
    %2599 = vmatprep.subr.mxu0 %v134
    %2600 = vmatpush1.msra.mxu0 %v133
    %2601 = vmatprep.subr.mxu0 %v126
    %2602 = vmatpush1.msra.mxu0 %v125
    %2603 = vmatprep.subr.mxu0 %v118
    %2604 = vmatpush1.msra.mxu0 %v117
    %2605 = vmatprep.subr.mxu0 %v110
    %2606 = vmatpush1.msra.mxu0 %v109
    %2607 = vmatprep.subr.mxu0 %v102
    %2608 = vmatpush1.msra.mxu0 %v101
    %2609 = vmatprep.subr.mxu0 %v94
    %2610 = vmatpush1.msra.mxu0 %v93
    %2611 = vmatprep.subr.mxu0 %v86
    %2612 = vmatpush1.msra.mxu0 %v85
    %2613 = vmatprep.subr.mxu0 %v334
    %2614 = vmatpush2.msra.mxu0 %v333
    %2615 = vmatprep.subr.mxu0 %v326
    %2616 = vmatpush2.msra.mxu0 %v325
    %2617 = vmatprep.subr.mxu0 %v318
    %2618 = vmatpush2.msra.mxu0 %v317
    %2619 = vmatprep.subr.mxu0 %v310
    %2620 = vmatpush2.msra.mxu0 %v309
    %2621 = vmatprep.subr.mxu0 %v302
    %2622 = vmatpush2.msra.mxu0 %v301
    %2623 = vmatprep.subr.mxu0 %v294
    %2624 = vmatpush2.msra.mxu0 %v293
    %2625 = vmatprep.subr.mxu0 %v286
    %2626 = vmatpush2.msra.mxu0 %v285
    %2627 = vmatprep.subr.mxu0 %v278
    %2628 = vmatpush2.msra.mxu0 %v277
    %2629 = vmatprep.subr.mxu0 %v270
    %2630 = vmatpush2.msra.mxu0 %v269
    %2631 = vmatprep.subr.mxu0 %v262
    %2632 = vmatpush2.msra.mxu0 %v261
    %2633 = vmatprep.subr.mxu0 %v254
    %2634 = vmatpush2.msra.mxu0 %v253
    %2635 = vmatprep.subr.mxu0 %v246
    %2636 = vmatpush2.msra.mxu0 %v245
    %2637 = vmatprep.subr.mxu0 %v238
    %2638 = vmatpush2.msra.mxu0 %v237
    %2639 = vmatprep.subr.mxu0 %v230
    %2640 = vmatpush2.msra.mxu0 %v229
    %2641 = vmatprep.subr.mxu0 %v222
    %2642 = vmatpush2.msra.mxu0 %v221
    %2643 = vmatprep.subr.mxu0 %v214
    %2644 = vmatpush2.msra.mxu0 %v213
    %2645 = vmatprep.mubr.f32.mxu0 %v2367
    %2646 = vmatmul.mubr.f32.gmra.mxu0 %v2197
    %v2647 = vpop.f32.mrf.mxu0
    %v2648 = vadd.f32 0.0, %v2647
    %v2649 = vpop.f32.mrf.mxu0
    %v2650 = vadd.f32 0.0, %v2649
    %2651 = vdwg.mxu0
    %s2652 = scalar_lea.vmem [#allocation2], 128
    %v2653 = vld [vmem:[%s2652] sm:$0xff]
    %v2654 = vld [vmem:[%s2652 + $0x8] sm:$0xff]
    %v2655 = vld [vmem:[%s2652 + $0x10] sm:$0xff]
    %v2656 = vld [vmem:[%s2652 + $0x18] sm:$0xff]
    %v2657 = vadd.f32 %v2653, %v2435
    %v2658 = vadd.f32 %v2654, %v2437
    %v2659 = vadd.f32 %v2655, %v2506
    %v2660 = vadd.f32 %v2656, %v2508
    %v2661 = vtanh.pop %v2657
    %v2662 = vxor.u32 %v2658, 2147483648
    %v2663 = vmul.f32 %v2662, 1.442695
    %v2664 = vpow.pop %v2663
    %v2665 = vadd.f32 %v2664, 1.0
    %v2666 = vrcp.pop %v2665
    %v2667 = vmul.f32 1.0, %v2666
    %v2668 = vxor.u32 %v2659, 2147483648
    %v2669 = vmul.f32 %v2668, 1.442695
    %v2670 = vpow.pop %v2669
    %v2671 = vadd.f32 %v2670, 1.0
    %v2672 = vrcp.pop %v2671
    %v2673 = vmul.f32 1.0, %v2672
    %v2674 = vxor.u32 %v2660, 2147483648
    %v2675 = vmul.f32 %v2674, 1.442695
    %v2676 = vpow.pop %v2675
    %v2677 = vadd.f32 %v2676, 1.0
    %v2678 = vrcp.pop %v2677
    %v2679 = vmul.f32 1.0, %v2678
    %v2680 = vmul.f32 %v2661, %v2667
    %v2681 = vmul.f32 %v2195, %v2673
    %v2682 = vadd.f32 %v2680, %v2681
    %v2683 = vtanh.pop %v2682
    %v2684 = vmul.f32 %v2683, %v2679
    %2685 = vmatprep.subr.mxu0 %v396
    %2686 = vmatpush1.msra.mxu0 %v395
    %2687 = vmatprep.subr.mxu0 %v392
    %2688 = vmatpush1.msra.mxu0 %v391
    %2689 = vmatprep.subr.mxu0 %v388
    %2690 = vmatpush1.msra.mxu0 %v387
    %2691 = vmatprep.subr.mxu0 %v384
    %2692 = vmatpush1.msra.mxu0 %v383
    %2693 = vmatprep.subr.mxu0 %v380
    %2694 = vmatpush1.msra.mxu0 %v379
    %2695 = vmatprep.subr.mxu0 %v376
    %2696 = vmatpush1.msra.mxu0 %v375
    %2697 = vmatprep.subr.mxu0 %v372
    %2698 = vmatpush1.msra.mxu0 %v371
    %2699 = vmatprep.subr.mxu0 %v368
    %2700 = vmatpush1.msra.mxu0 %v367
    %2701 = vmatprep.subr.mxu0 %v364
    %2702 = vmatpush1.msra.mxu0 %v363
    %2703 = vmatprep.subr.mxu0 %v360
    %2704 = vmatpush1.msra.mxu0 %v359
    %2705 = vmatprep.subr.mxu0 %v356
    %2706 = vmatpush1.msra.mxu0 %v355
    %2707 = vmatprep.subr.mxu0 %v352
    %2708 = vmatpush1.msra.mxu0 %v351
    %2709 = vmatprep.subr.mxu0 %v348
    %2710 = vmatpush1.msra.mxu0 %v347
    %2711 = vmatprep.subr.mxu0 %v344
    %2712 = vmatpush1.msra.mxu0 %v343
    %2713 = vmatprep.subr.mxu0 %v340
    %2714 = vmatpush1.msra.mxu0 %v339
    %2715 = vmatprep.subr.mxu0 %v336
    %2716 = vmatpush1.msra.mxu0 %v335
    %2717 = vmatprep.subr.mxu0 0.0
    %2718 = vmatpush2.msra.mxu0 0.0
    %2719 = vmatprep.subr.mxu0 0.0
    %2720 = vmatpush2.msra.mxu0 0.0
    %2721 = vmatprep.subr.mxu0 0.0
    %2722 = vmatpush2.msra.mxu0 0.0
    %2723 = vmatprep.subr.mxu0 0.0
    %2724 = vmatpush2.msra.mxu0 0.0
    %2725 = vmatprep.subr.mxu0 0.0
    %2726 = vmatpush2.msra.mxu0 0.0
    %2727 = vmatprep.subr.mxu0 0.0
    %2728 = vmatpush2.msra.mxu0 0.0
    %2729 = vmatprep.subr.mxu0 0.0
    %2730 = vmatpush2.msra.mxu0 0.0
    %2731 = vmatprep.subr.mxu0 0.0
    %2732 = vmatpush2.msra.mxu0 0.0
    %2733 = vmatprep.subr.mxu0 0.0
    %2734 = vmatpush2.msra.mxu0 0.0
    %2735 = vmatprep.subr.mxu0 0.0
    %2736 = vmatpush2.msra.mxu0 0.0
    %2737 = vmatprep.subr.mxu0 0.0
    %2738 = vmatpush2.msra.mxu0 0.0
    %2739 = vmatprep.subr.mxu0 0.0
    %2740 = vmatpush2.msra.mxu0 0.0
    %2741 = vmatprep.subr.mxu0 0.0
    %2742 = vmatpush2.msra.mxu0 0.0
    %2743 = vmatprep.subr.mxu0 0.0
    %2744 = vmatpush2.msra.mxu0 0.0
    %2745 = vmatprep.subr.mxu0 0.0
    %2746 = vmatpush2.msra.mxu0 0.0
    %2747 = vmatprep.subr.mxu0 0.0
    %2748 = vmatpush2.msra.mxu0 0.0
    %2749 = vmatprep.mubr.f32.mxu0 0.0
    %2750 = vmatmul.mubr.f32.gmra.mxu0 %v2684
    %v2751 = vpop.f32.mrf.mxu0
    %v2752 = vadd.f32 %v2577, %v2751
    %v2753 = vpop.f32.mrf.mxu0
    %v2754 = vadd.f32 %v2579, %v2753
    %2755 = vdwg.mxu0
    %2756 = vmatprep.subr.mxu0 %v398
    %2757 = vmatpush1.msra.mxu0 %v397
    %2758 = vmatprep.subr.mxu0 %v394
    %2759 = vmatpush1.msra.mxu0 %v393
    %2760 = vmatprep.subr.mxu0 %v390
    %2761 = vmatpush1.msra.mxu0 %v389
    %2762 = vmatprep.subr.mxu0 %v386
    %2763 = vmatpush1.msra.mxu0 %v385
    %2764 = vmatprep.subr.mxu0 %v382
    %2765 = vmatpush1.msra.mxu0 %v381
    %2766 = vmatprep.subr.mxu0 %v378
    %2767 = vmatpush1.msra.mxu0 %v377
    %2768 = vmatprep.subr.mxu0 %v374
    %2769 = vmatpush1.msra.mxu0 %v373
    %2770 = vmatprep.subr.mxu0 %v370
    %2771 = vmatpush1.msra.mxu0 %v369
    %2772 = vmatprep.subr.mxu0 %v366
    %2773 = vmatpush1.msra.mxu0 %v365
    %2774 = vmatprep.subr.mxu0 %v362
    %2775 = vmatpush1.msra.mxu0 %v361
    %2776 = vmatprep.subr.mxu0 %v358
    %2777 = vmatpush1.msra.mxu0 %v357
    %2778 = vmatprep.subr.mxu0 %v354
    %2779 = vmatpush1.msra.mxu0 %v353
    %2780 = vmatprep.subr.mxu0 %v350
    %2781 = vmatpush1.msra.mxu0 %v349
    %2782 = vmatprep.subr.mxu0 %v346
    %2783 = vmatpush1.msra.mxu0 %v345
    %2784 = vmatprep.subr.mxu0 %v342
    %2785 = vmatpush1.msra.mxu0 %v341
    %2786 = vmatprep.subr.mxu0 %v338
    %2787 = vmatpush1.msra.mxu0 %v337
    %2788 = vmatprep.subr.mxu0 0.0
    %2789 = vmatpush2.msra.mxu0 0.0
    %2790 = vmatprep.subr.mxu0 0.0
    %2791 = vmatpush2.msra.mxu0 0.0
    %2792 = vmatprep.subr.mxu0 0.0
    %2793 = vmatpush2.msra.mxu0 0.0
    %2794 = vmatprep.subr.mxu0 0.0
    %2795 = vmatpush2.msra.mxu0 0.0
    %2796 = vmatprep.subr.mxu0 0.0
    %2797 = vmatpush2.msra.mxu0 0.0
    %2798 = vmatprep.subr.mxu0 0.0
    %2799 = vmatpush2.msra.mxu0 0.0
    %2800 = vmatprep.subr.mxu0 0.0
    %2801 = vmatpush2.msra.mxu0 0.0
    %2802 = vmatprep.subr.mxu0 0.0
    %2803 = vmatpush2.msra.mxu0 0.0
    %2804 = vmatprep.subr.mxu0 0.0
    %2805 = vmatpush2.msra.mxu0 0.0
    %2806 = vmatprep.subr.mxu0 0.0
    %2807 = vmatpush2.msra.mxu0 0.0
    %2808 = vmatprep.subr.mxu0 0.0
    %2809 = vmatpush2.msra.mxu0 0.0
    %2810 = vmatprep.subr.mxu0 0.0
    %2811 = vmatpush2.msra.mxu0 0.0
    %2812 = vmatprep.subr.mxu0 0.0
    %2813 = vmatpush2.msra.mxu0 0.0
    %2814 = vmatprep.subr.mxu0 0.0
    %2815 = vmatpush2.msra.mxu0 0.0
    %2816 = vmatprep.subr.mxu0 0.0
    %2817 = vmatpush2.msra.mxu0 0.0
    %2818 = vmatprep.subr.mxu0 0.0
    %2819 = vmatpush2.msra.mxu0 0.0
    %2820 = vmatprep.mubr.f32.mxu0 0.0
    %2821 = vmatmul.mubr.f32.gmra.mxu0 %v2684
    %v2822 = vpop.f32.mrf.mxu0
    %v2823 = vadd.f32 %v2648, %v2822
    %v2824 = vpop.f32.mrf.mxu0
    %v2825 = vadd.f32 %v2650, %v2824
    %2826 = vdwg.mxu0
    %v2827 = vadd.f32 %v2752, %v862
    %v2828 = vadd.f32 %v2754, %v866
    %v2829 = vadd.f32 %v2823, %v870
    %v2830 = vadd.f32 %v2825, %v874
    %v2831 = vtanh.pop %v2827
    %v2832 = vxor.u32 %v2828, 2147483648
    %v2833 = vmul.f32 %v2832, 1.442695
    %v2834 = vpow.pop %v2833
    %v2835 = vadd.f32 %v2834, 1.0
    %v2836 = vrcp.pop %v2835
    %v2837 = vmul.f32 1.0, %v2836
    %v2838 = vxor.u32 %v2829, 2147483648
    %v2839 = vmul.f32 %v2838, 1.442695
    %v2840 = vpow.pop %v2839
    %v2841 = vadd.f32 %v2840, 1.0
    %v2842 = vrcp.pop %v2841
    %v2843 = vmul.f32 1.0, %v2842
    %v2844 = vxor.u32 %v2830, 2147483648
    %v2845 = vmul.f32 %v2844, 1.442695
    %v2846 = vpow.pop %v2845
    %v2847 = vadd.f32 %v2846, 1.0
    %v2848 = vrcp.pop %v2847
    %v2849 = vmul.f32 1.0, %v2848
    %v2850 = vmul.f32 %v2831, %v2837
    %v2851 = vmul.f32 %v2365, %v2843
    %v2852 = vadd.f32 %v2850, %v2851
    %v2853 = vtanh.pop %v2852
    %v2854 = vmul.f32 %v2853, %v2849
    %2855 = vmatprep.subr.mxu0 %v200
    %2856 = vmatpush1.msra.mxu0 %v199
    %2857 = vmatprep.subr.mxu0 %v192
    %2858 = vmatpush1.msra.mxu0 %v191
    %2859 = vmatprep.subr.mxu0 %v184
    %2860 = vmatpush1.msra.mxu0 %v183
    %2861 = vmatprep.subr.mxu0 %v176
    %2862 = vmatpush1.msra.mxu0 %v175
    %2863 = vmatprep.subr.mxu0 %v168
    %2864 = vmatpush1.msra.mxu0 %v167
    %2865 = vmatprep.subr.mxu0 %v160
    %2866 = vmatpush1.msra.mxu0 %v159
    %2867 = vmatprep.subr.mxu0 %v152
    %2868 = vmatpush1.msra.mxu0 %v151
    %2869 = vmatprep.subr.mxu0 %v144
    %2870 = vmatpush1.msra.mxu0 %v143
    %2871 = vmatprep.subr.mxu0 %v136
    %2872 = vmatpush1.msra.mxu0 %v135
    %2873 = vmatprep.subr.mxu0 %v128
    %2874 = vmatpush1.msra.mxu0 %v127
    %2875 = vmatprep.subr.mxu0 %v120
    %2876 = vmatpush1.msra.mxu0 %v119
    %2877 = vmatprep.subr.mxu0 %v112
    %2878 = vmatpush1.msra.mxu0 %v111
    %2879 = vmatprep.subr.mxu0 %v104
    %2880 = vmatpush1.msra.mxu0 %v103
    %2881 = vmatprep.subr.mxu0 %v96
    %2882 = vmatpush1.msra.mxu0 %v95
    %2883 = vmatprep.subr.mxu0 %v88
    %2884 = vmatpush1.msra.mxu0 %v87
    %2885 = vmatprep.subr.mxu0 %v80
    %2886 = vmatpush1.msra.mxu0 %v79
    %2887 = vmatprep.subr.mxu0 %v328
    %2888 = vmatpush2.msra.mxu0 %v327
    %2889 = vmatprep.subr.mxu0 %v320
    %2890 = vmatpush2.msra.mxu0 %v319
    %2891 = vmatprep.subr.mxu0 %v312
    %2892 = vmatpush2.msra.mxu0 %v311
    %2893 = vmatprep.subr.mxu0 %v304
    %2894 = vmatpush2.msra.mxu0 %v303
    %2895 = vmatprep.subr.mxu0 %v296
    %2896 = vmatpush2.msra.mxu0 %v295
    %2897 = vmatprep.subr.mxu0 %v288
    %2898 = vmatpush2.msra.mxu0 %v287
    %2899 = vmatprep.subr.mxu0 %v280
    %2900 = vmatpush2.msra.mxu0 %v279
    %2901 = vmatprep.subr.mxu0 %v272
    %2902 = vmatpush2.msra.mxu0 %v271
    %2903 = vmatprep.subr.mxu0 %v264
    %2904 = vmatpush2.msra.mxu0 %v263
    %2905 = vmatprep.subr.mxu0 %v256
    %2906 = vmatpush2.msra.mxu0 %v255
    %2907 = vmatprep.subr.mxu0 %v248
    %2908 = vmatpush2.msra.mxu0 %v247
    %2909 = vmatprep.subr.mxu0 %v240
    %2910 = vmatpush2.msra.mxu0 %v239
    %2911 = vmatprep.subr.mxu0 %v232
    %2912 = vmatpush2.msra.mxu0 %v231
    %2913 = vmatprep.subr.mxu0 %v224
    %2914 = vmatpush2.msra.mxu0 %v223
    %2915 = vmatprep.subr.mxu0 %v216
    %2916 = vmatpush2.msra.mxu0 %v215
    %2917 = vmatprep.subr.mxu0 %v208
    %2918 = vmatpush2.msra.mxu0 %v207
    %2919 = vmatprep.mubr.f32.mxu0 %v2854
    %2920 = vmatmul.mubr.f32.gmra.mxu0 %v2684
    %v2921 = vpop.f32.mrf.mxu0
    %v2922 = vadd.f32 0.0, %v2921
    %v2923 = vpop.f32.mrf.mxu0
    %v2924 = vadd.f32 0.0, %v2923
    %2925 = vdwg.mxu0
    %2926 = vmatprep.subr.mxu0 %v202
    %2927 = vmatpush1.msra.mxu0 %v201
    %2928 = vmatprep.subr.mxu0 %v194
    %2929 = vmatpush1.msra.mxu0 %v193
    %2930 = vmatprep.subr.mxu0 %v186
    %2931 = vmatpush1.msra.mxu0 %v185
    %2932 = vmatprep.subr.mxu0 %v178
    %2933 = vmatpush1.msra.mxu0 %v177
    %2934 = vmatprep.subr.mxu0 %v170
    %2935 = vmatpush1.msra.mxu0 %v169
    %2936 = vmatprep.subr.mxu0 %v162
    %2937 = vmatpush1.msra.mxu0 %v161
    %2938 = vmatprep.subr.mxu0 %v154
    %2939 = vmatpush1.msra.mxu0 %v153
    %2940 = vmatprep.subr.mxu0 %v146
    %2941 = vmatpush1.msra.mxu0 %v145
    %2942 = vmatprep.subr.mxu0 %v138
    %2943 = vmatpush1.msra.mxu0 %v137
    %2944 = vmatprep.subr.mxu0 %v130
    %2945 = vmatpush1.msra.mxu0 %v129
    %2946 = vmatprep.subr.mxu0 %v122
    %2947 = vmatpush1.msra.mxu0 %v121
    %2948 = vmatprep.subr.mxu0 %v114
    %2949 = vmatpush1.msra.mxu0 %v113
    %2950 = vmatprep.subr.mxu0 %v106
    %2951 = vmatpush1.msra.mxu0 %v105
    %2952 = vmatprep.subr.mxu0 %v98
    %2953 = vmatpush1.msra.mxu0 %v97
    %2954 = vmatprep.subr.mxu0 %v90
    %2955 = vmatpush1.msra.mxu0 %v89
    %2956 = vmatprep.subr.mxu0 %v82
    %2957 = vmatpush1.msra.mxu0 %v81
    %2958 = vmatprep.subr.mxu0 %v330
    %2959 = vmatpush2.msra.mxu0 %v329
    %2960 = vmatprep.subr.mxu0 %v322
    %2961 = vmatpush2.msra.mxu0 %v321
    %2962 = vmatprep.subr.mxu0 %v314
    %2963 = vmatpush2.msra.mxu0 %v313
    %2964 = vmatprep.subr.mxu0 %v306
    %2965 = vmatpush2.msra.mxu0 %v305
    %2966 = vmatprep.subr.mxu0 %v298
    %2967 = vmatpush2.msra.mxu0 %v297
    %2968 = vmatprep.subr.mxu0 %v290
    %2969 = vmatpush2.msra.mxu0 %v289
    %2970 = vmatprep.subr.mxu0 %v282
    %2971 = vmatpush2.msra.mxu0 %v281
    %2972 = vmatprep.subr.mxu0 %v274
    %2973 = vmatpush2.msra.mxu0 %v273
    %2974 = vmatprep.subr.mxu0 %v266
    %2975 = vmatpush2.msra.mxu0 %v265
    %2976 = vmatprep.subr.mxu0 %v258
    %2977 = vmatpush2.msra.mxu0 %v257
    %2978 = vmatprep.subr.mxu0 %v250
    %2979 = vmatpush2.msra.mxu0 %v249
    %2980 = vmatprep.subr.mxu0 %v242
    %2981 = vmatpush2.msra.mxu0 %v241
    %2982 = vmatprep.subr.mxu0 %v234
    %2983 = vmatpush2.msra.mxu0 %v233
    %2984 = vmatprep.subr.mxu0 %v226
    %2985 = vmatpush2.msra.mxu0 %v225
    %2986 = vmatprep.subr.mxu0 %v218
    %2987 = vmatpush2.msra.mxu0 %v217
    %2988 = vmatprep.subr.mxu0 %v210
    %2989 = vmatpush2.msra.mxu0 %v209
    %2990 = vmatprep.mubr.f32.mxu0 %v2854
    %2991 = vmatmul.mubr.f32.gmra.mxu0 %v2684
    %v2992 = vpop.f32.mrf.mxu0
    %v2993 = vadd.f32 0.0, %v2992
    %v2994 = vpop.f32.mrf.mxu0
    %v2995 = vadd.f32 0.0, %v2994
    %2996 = vdwg.mxu0
    %2997 = vmatprep.subr.mxu0 %v204
    %2998 = vmatpush1.msra.mxu0 %v203
    %2999 = vmatprep.subr.mxu0 %v196
    %3000 = vmatpush1.msra.mxu0 %v195
    %3001 = vmatprep.subr.mxu0 %v188
    %3002 = vmatpush1.msra.mxu0 %v187
    %3003 = vmatprep.subr.mxu0 %v180
    %3004 = vmatpush1.msra.mxu0 %v179
    %3005 = vmatprep.subr.mxu0 %v172
    %3006 = vmatpush1.msra.mxu0 %v171
    %3007 = vmatprep.subr.mxu0 %v164
    %3008 = vmatpush1.msra.mxu0 %v163
    %3009 = vmatprep.subr.mxu0 %v156
    %3010 = vmatpush1.msra.mxu0 %v155
    %3011 = vmatprep.subr.mxu0 %v148
    %3012 = vmatpush1.msra.mxu0 %v147
    %3013 = vmatprep.subr.mxu0 %v140
    %3014 = vmatpush1.msra.mxu0 %v139
    %3015 = vmatprep.subr.mxu0 %v132
    %3016 = vmatpush1.msra.mxu0 %v131
    %3017 = vmatprep.subr.mxu0 %v124
    %3018 = vmatpush1.msra.mxu0 %v123
    %3019 = vmatprep.subr.mxu0 %v116
    %3020 = vmatpush1.msra.mxu0 %v115
    %3021 = vmatprep.subr.mxu0 %v108
    %3022 = vmatpush1.msra.mxu0 %v107
    %3023 = vmatprep.subr.mxu0 %v100
    %3024 = vmatpush1.msra.mxu0 %v99
    %3025 = vmatprep.subr.mxu0 %v92
    %3026 = vmatpush1.msra.mxu0 %v91
    %3027 = vmatprep.subr.mxu0 %v84
    %3028 = vmatpush1.msra.mxu0 %v83
    %3029 = vmatprep.subr.mxu0 %v332
    %3030 = vmatpush2.msra.mxu0 %v331
    %3031 = vmatprep.subr.mxu0 %v324
    %3032 = vmatpush2.msra.mxu0 %v323
    %3033 = vmatprep.subr.mxu0 %v316
    %3034 = vmatpush2.msra.mxu0 %v315
    %3035 = vmatprep.subr.mxu0 %v308
    %3036 = vmatpush2.msra.mxu0 %v307
    %3037 = vmatprep.subr.mxu0 %v300
    %3038 = vmatpush2.msra.mxu0 %v299
    %3039 = vmatprep.subr.mxu0 %v292
    %3040 = vmatpush2.msra.mxu0 %v291
    %3041 = vmatprep.subr.mxu0 %v284
    %3042 = vmatpush2.msra.mxu0 %v283
    %3043 = vmatprep.subr.mxu0 %v276
    %3044 = vmatpush2.msra.mxu0 %v275
    %3045 = vmatprep.subr.mxu0 %v268
    %3046 = vmatpush2.msra.mxu0 %v267
    %3047 = vmatprep.subr.mxu0 %v260
    %3048 = vmatpush2.msra.mxu0 %v259
    %3049 = vmatprep.subr.mxu0 %v252
    %3050 = vmatpush2.msra.mxu0 %v251
    %3051 = vmatprep.subr.mxu0 %v244
    %3052 = vmatpush2.msra.mxu0 %v243
    %3053 = vmatprep.subr.mxu0 %v236
    %3054 = vmatpush2.msra.mxu0 %v235
    %3055 = vmatprep.subr.mxu0 %v228
    %3056 = vmatpush2.msra.mxu0 %v227
    %3057 = vmatprep.subr.mxu0 %v220
    %3058 = vmatpush2.msra.mxu0 %v219
    %3059 = vmatprep.subr.mxu0 %v212
    %3060 = vmatpush2.msra.mxu0 %v211
    %3061 = vmatprep.mubr.f32.mxu0 %v2854
    %3062 = vmatmul.mubr.f32.gmra.mxu0 %v2684
    %v3063 = vpop.f32.mrf.mxu0
    %v3064 = vadd.f32 0.0, %v3063
    %v3065 = vpop.f32.mrf.mxu0
    %v3066 = vadd.f32 0.0, %v3065
    %3067 = vdwg.mxu0
    %3068 = vmatprep.subr.mxu0 %v206
    %3069 = vmatpush1.msra.mxu0 %v205
    %3070 = vmatprep.subr.mxu0 %v198
    %3071 = vmatpush1.msra.mxu0 %v197
    %3072 = vmatprep.subr.mxu0 %v190
    %3073 = vmatpush1.msra.mxu0 %v189
    %3074 = vmatprep.subr.mxu0 %v182
    %3075 = vmatpush1.msra.mxu0 %v181
    %3076 = vmatprep.subr.mxu0 %v174
    %3077 = vmatpush1.msra.mxu0 %v173
    %3078 = vmatprep.subr.mxu0 %v166
    %3079 = vmatpush1.msra.mxu0 %v165
    %3080 = vmatprep.subr.mxu0 %v158
    %3081 = vmatpush1.msra.mxu0 %v157
    %3082 = vmatprep.subr.mxu0 %v150
    %3083 = vmatpush1.msra.mxu0 %v149
    %3084 = vmatprep.subr.mxu0 %v142
    %3085 = vmatpush1.msra.mxu0 %v141
    %3086 = vmatprep.subr.mxu0 %v134
    %3087 = vmatpush1.msra.mxu0 %v133
    %3088 = vmatprep.subr.mxu0 %v126
    %3089 = vmatpush1.msra.mxu0 %v125
    %3090 = vmatprep.subr.mxu0 %v118
    %3091 = vmatpush1.msra.mxu0 %v117
    %3092 = vmatprep.subr.mxu0 %v110
    %3093 = vmatpush1.msra.mxu0 %v109
    %3094 = vmatprep.subr.mxu0 %v102
    %3095 = vmatpush1.msra.mxu0 %v101
    %3096 = vmatprep.subr.mxu0 %v94
    %3097 = vmatpush1.msra.mxu0 %v93
    %3098 = vmatprep.subr.mxu0 %v86
    %3099 = vmatpush1.msra.mxu0 %v85
    %3100 = vmatprep.subr.mxu0 %v334
    %3101 = vmatpush2.msra.mxu0 %v333
    %3102 = vmatprep.subr.mxu0 %v326
    %3103 = vmatpush2.msra.mxu0 %v325
    %3104 = vmatprep.subr.mxu0 %v318
    %3105 = vmatpush2.msra.mxu0 %v317
    %3106 = vmatprep.subr.mxu0 %v310
    %3107 = vmatpush2.msra.mxu0 %v309
    %3108 = vmatprep.subr.mxu0 %v302
    %3109 = vmatpush2.msra.mxu0 %v301
    %3110 = vmatprep.subr.mxu0 %v294
    %3111 = vmatpush2.msra.mxu0 %v293
    %3112 = vmatprep.subr.mxu0 %v286
    %3113 = vmatpush2.msra.mxu0 %v285
    %3114 = vmatprep.subr.mxu0 %v278
    %3115 = vmatpush2.msra.mxu0 %v277
    %3116 = vmatprep.subr.mxu0 %v270
    %3117 = vmatpush2.msra.mxu0 %v269
    %3118 = vmatprep.subr.mxu0 %v262
    %3119 = vmatpush2.msra.mxu0 %v261
    %3120 = vmatprep.subr.mxu0 %v254
    %3121 = vmatpush2.msra.mxu0 %v253
    %3122 = vmatprep.subr.mxu0 %v246
    %3123 = vmatpush2.msra.mxu0 %v245
    %3124 = vmatprep.subr.mxu0 %v238
    %3125 = vmatpush2.msra.mxu0 %v237
    %3126 = vmatprep.subr.mxu0 %v230
    %3127 = vmatpush2.msra.mxu0 %v229
    %3128 = vmatprep.subr.mxu0 %v222
    %3129 = vmatpush2.msra.mxu0 %v221
    %3130 = vmatprep.subr.mxu0 %v214
    %3131 = vmatpush2.msra.mxu0 %v213
    %3132 = vmatprep.mubr.f32.mxu0 %v2854
    %3133 = vmatmul.mubr.f32.gmra.mxu0 %v2684
    %v3134 = vpop.f32.mrf.mxu0
    %v3135 = vadd.f32 0.0, %v3134
    %v3136 = vpop.f32.mrf.mxu0
    %v3137 = vadd.f32 0.0, %v3136
    %3138 = vdwg.mxu0
    %s3139 = scalar_lea.vmem [#allocation2], 160
    %v3140 = vld [vmem:[%s3139] sm:$0xff]
    %v3141 = vld [vmem:[%s3139 + $0x8] sm:$0xff]
    %v3142 = vld [vmem:[%s3139 + $0x10] sm:$0xff]
    %v3143 = vld [vmem:[%s3139 + $0x18] sm:$0xff]
    %v3144 = vadd.f32 %v3140, %v2922
    %v3145 = vadd.f32 %v3141, %v2924
    %v3146 = vadd.f32 %v3142, %v2993
    %v3147 = vadd.f32 %v3143, %v2995
    %v3148 = vtanh.pop %v3144
    %v3149 = vxor.u32 %v3145, 2147483648
    %v3150 = vmul.f32 %v3149, 1.442695
    %v3151 = vpow.pop %v3150
    %v3152 = vadd.f32 %v3151, 1.0
    %v3153 = vrcp.pop %v3152
    %v3154 = vmul.f32 1.0, %v3153
    %v3155 = vxor.u32 %v3146, 2147483648
    %v3156 = vmul.f32 %v3155, 1.442695
    %v3157 = vpow.pop %v3156
    %v3158 = vadd.f32 %v3157, 1.0
    %v3159 = vrcp.pop %v3158
    %v3160 = vmul.f32 1.0, %v3159
    %v3161 = vxor.u32 %v3147, 2147483648
    %v3162 = vmul.f32 %v3161, 1.442695
    %v3163 = vpow.pop %v3162
    %v3164 = vadd.f32 %v3163, 1.0
    %v3165 = vrcp.pop %v3164
    %v3166 = vmul.f32 1.0, %v3165
    %v3167 = vmul.f32 %v3148, %v3154
    %v3168 = vmul.f32 %v2682, %v3160
    %v3169 = vadd.f32 %v3167, %v3168
    %v3170 = vtanh.pop %v3169
    %v3171 = vmul.f32 %v3170, %v3166
    %3172 = vmatprep.subr.mxu0 %v396
    %3173 = vmatpush1.msra.mxu0 %v395
    %3174 = vmatprep.subr.mxu0 %v392
    %3175 = vmatpush1.msra.mxu0 %v391
    %3176 = vmatprep.subr.mxu0 %v388
    %3177 = vmatpush1.msra.mxu0 %v387
    %3178 = vmatprep.subr.mxu0 %v384
    %3179 = vmatpush1.msra.mxu0 %v383
    %3180 = vmatprep.subr.mxu0 %v380
    %3181 = vmatpush1.msra.mxu0 %v379
    %3182 = vmatprep.subr.mxu0 %v376
    %3183 = vmatpush1.msra.mxu0 %v375
    %3184 = vmatprep.subr.mxu0 %v372
    %3185 = vmatpush1.msra.mxu0 %v371
    %3186 = vmatprep.subr.mxu0 %v368
    %3187 = vmatpush1.msra.mxu0 %v367
    %3188 = vmatprep.subr.mxu0 %v364
    %3189 = vmatpush1.msra.mxu0 %v363
    %3190 = vmatprep.subr.mxu0 %v360
    %3191 = vmatpush1.msra.mxu0 %v359
    %3192 = vmatprep.subr.mxu0 %v356
    %3193 = vmatpush1.msra.mxu0 %v355
    %3194 = vmatprep.subr.mxu0 %v352
    %3195 = vmatpush1.msra.mxu0 %v351
    %3196 = vmatprep.subr.mxu0 %v348
    %3197 = vmatpush1.msra.mxu0 %v347
    %3198 = vmatprep.subr.mxu0 %v344
    %3199 = vmatpush1.msra.mxu0 %v343
    %3200 = vmatprep.subr.mxu0 %v340
    %3201 = vmatpush1.msra.mxu0 %v339
    %3202 = vmatprep.subr.mxu0 %v336
    %3203 = vmatpush1.msra.mxu0 %v335
    %3204 = vmatprep.subr.mxu0 0.0
    %3205 = vmatpush2.msra.mxu0 0.0
    %3206 = vmatprep.subr.mxu0 0.0
    %3207 = vmatpush2.msra.mxu0 0.0
    %3208 = vmatprep.subr.mxu0 0.0
    %3209 = vmatpush2.msra.mxu0 0.0
    %3210 = vmatprep.subr.mxu0 0.0
    %3211 = vmatpush2.msra.mxu0 0.0
    %3212 = vmatprep.subr.mxu0 0.0
    %3213 = vmatpush2.msra.mxu0 0.0
    %3214 = vmatprep.subr.mxu0 0.0
    %3215 = vmatpush2.msra.mxu0 0.0
    %3216 = vmatprep.subr.mxu0 0.0
    %3217 = vmatpush2.msra.mxu0 0.0
    %3218 = vmatprep.subr.mxu0 0.0
    %3219 = vmatpush2.msra.mxu0 0.0
    %3220 = vmatprep.subr.mxu0 0.0
    %3221 = vmatpush2.msra.mxu0 0.0
    %3222 = vmatprep.subr.mxu0 0.0
    %3223 = vmatpush2.msra.mxu0 0.0
    %3224 = vmatprep.subr.mxu0 0.0
    %3225 = vmatpush2.msra.mxu0 0.0
    %3226 = vmatprep.subr.mxu0 0.0
    %3227 = vmatpush2.msra.mxu0 0.0
    %3228 = vmatprep.subr.mxu0 0.0
    %3229 = vmatpush2.msra.mxu0 0.0
    %3230 = vmatprep.subr.mxu0 0.0
    %3231 = vmatpush2.msra.mxu0 0.0
    %3232 = vmatprep.subr.mxu0 0.0
    %3233 = vmatpush2.msra.mxu0 0.0
    %3234 = vmatprep.subr.mxu0 0.0
    %3235 = vmatpush2.msra.mxu0 0.0
    %3236 = vmatprep.mubr.f32.mxu0 0.0
    %3237 = vmatmul.mubr.f32.gmra.mxu0 %v3171
    %v3238 = vpop.f32.mrf.mxu0
    %v3239 = vadd.f32 %v3064, %v3238
    %v3240 = vpop.f32.mrf.mxu0
    %v3241 = vadd.f32 %v3066, %v3240
    %3242 = vdwg.mxu0
    %3243 = vmatprep.subr.mxu0 %v398
    %3244 = vmatpush1.msra.mxu0 %v397
    %3245 = vmatprep.subr.mxu0 %v394
    %3246 = vmatpush1.msra.mxu0 %v393
    %3247 = vmatprep.subr.mxu0 %v390
    %3248 = vmatpush1.msra.mxu0 %v389
    %3249 = vmatprep.subr.mxu0 %v386
    %3250 = vmatpush1.msra.mxu0 %v385
    %3251 = vmatprep.subr.mxu0 %v382
    %3252 = vmatpush1.msra.mxu0 %v381
    %3253 = vmatprep.subr.mxu0 %v378
    %3254 = vmatpush1.msra.mxu0 %v377
    %3255 = vmatprep.subr.mxu0 %v374
    %3256 = vmatpush1.msra.mxu0 %v373
    %3257 = vmatprep.subr.mxu0 %v370
    %3258 = vmatpush1.msra.mxu0 %v369
    %3259 = vmatprep.subr.mxu0 %v366
    %3260 = vmatpush1.msra.mxu0 %v365
    %3261 = vmatprep.subr.mxu0 %v362
    %3262 = vmatpush1.msra.mxu0 %v361
    %3263 = vmatprep.subr.mxu0 %v358
    %3264 = vmatpush1.msra.mxu0 %v357
    %3265 = vmatprep.subr.mxu0 %v354
    %3266 = vmatpush1.msra.mxu0 %v353
    %3267 = vmatprep.subr.mxu0 %v350
    %3268 = vmatpush1.msra.mxu0 %v349
    %3269 = vmatprep.subr.mxu0 %v346
    %3270 = vmatpush1.msra.mxu0 %v345
    %3271 = vmatprep.subr.mxu0 %v342
    %3272 = vmatpush1.msra.mxu0 %v341
    %3273 = vmatprep.subr.mxu0 %v338
    %3274 = vmatpush1.msra.mxu0 %v337
    %3275 = vmatprep.subr.mxu0 0.0
    %3276 = vmatpush2.msra.mxu0 0.0
    %3277 = vmatprep.subr.mxu0 0.0
    %3278 = vmatpush2.msra.mxu0 0.0
    %3279 = vmatprep.subr.mxu0 0.0
    %3280 = vmatpush2.msra.mxu0 0.0
    %3281 = vmatprep.subr.mxu0 0.0
    %3282 = vmatpush2.msra.mxu0 0.0
    %3283 = vmatprep.subr.mxu0 0.0
    %3284 = vmatpush2.msra.mxu0 0.0
    %3285 = vmatprep.subr.mxu0 0.0
    %3286 = vmatpush2.msra.mxu0 0.0
    %3287 = vmatprep.subr.mxu0 0.0
    %3288 = vmatpush2.msra.mxu0 0.0
    %3289 = vmatprep.subr.mxu0 0.0
    %3290 = vmatpush2.msra.mxu0 0.0
    %3291 = vmatprep.subr.mxu0 0.0
    %3292 = vmatpush2.msra.mxu0 0.0
    %3293 = vmatprep.subr.mxu0 0.0
    %3294 = vmatpush2.msra.mxu0 0.0
    %3295 = vmatprep.subr.mxu0 0.0
    %3296 = vmatpush2.msra.mxu0 0.0
    %3297 = vmatprep.subr.mxu0 0.0
    %3298 = vmatpush2.msra.mxu0 0.0
    %3299 = vmatprep.subr.mxu0 0.0
    %3300 = vmatpush2.msra.mxu0 0.0
    %3301 = vmatprep.subr.mxu0 0.0
    %3302 = vmatpush2.msra.mxu0 0.0
    %3303 = vmatprep.subr.mxu0 0.0
    %3304 = vmatpush2.msra.mxu0 0.0
    %3305 = vmatprep.subr.mxu0 0.0
    %3306 = vmatpush2.msra.mxu0 0.0
    %3307 = vmatprep.mubr.f32.mxu0 0.0
    %3308 = vmatmul.mubr.f32.gmra.mxu0 %v3171
    %v3309 = vpop.f32.mrf.mxu0
    %v3310 = vadd.f32 %v3135, %v3309
    %v3311 = vpop.f32.mrf.mxu0
    %v3312 = vadd.f32 %v3137, %v3311
    %3313 = vdwg.mxu0
    %v3314 = vadd.f32 %v3239, %v862
    %v3315 = vadd.f32 %v3241, %v866
    %v3316 = vadd.f32 %v3310, %v870
    %v3317 = vadd.f32 %v3312, %v874
    %v3318 = vtanh.pop %v3314
    %v3319 = vxor.u32 %v3315, 2147483648
    %v3320 = vmul.f32 %v3319, 1.442695
    %v3321 = vpow.pop %v3320
    %v3322 = vadd.f32 %v3321, 1.0
    %v3323 = vrcp.pop %v3322
    %v3324 = vmul.f32 1.0, %v3323
    %v3325 = vxor.u32 %v3316, 2147483648
    %v3326 = vmul.f32 %v3325, 1.442695
    %v3327 = vpow.pop %v3326
    %v3328 = vadd.f32 %v3327, 1.0
    %v3329 = vrcp.pop %v3328
    %v3330 = vmul.f32 1.0, %v3329
    %v3331 = vxor.u32 %v3317, 2147483648
    %v3332 = vmul.f32 %v3331, 1.442695
    %v3333 = vpow.pop %v3332
    %v3334 = vadd.f32 %v3333, 1.0
    %v3335 = vrcp.pop %v3334
    %v3336 = vmul.f32 1.0, %v3335
    %v3337 = vmul.f32 %v3318, %v3324
    %v3338 = vmul.f32 %v2852, %v3330
    %v3339 = vadd.f32 %v3337, %v3338
    %v3340 = vtanh.pop %v3339
    %v3341 = vmul.f32 %v3340, %v3336
    %3342 = vmatprep.subr.mxu0 %v200
    %3343 = vmatpush1.msra.mxu0 %v199
    %3344 = vmatprep.subr.mxu0 %v192
    %3345 = vmatpush1.msra.mxu0 %v191
    %3346 = vmatprep.subr.mxu0 %v184
    %3347 = vmatpush1.msra.mxu0 %v183
    %3348 = vmatprep.subr.mxu0 %v176
    %3349 = vmatpush1.msra.mxu0 %v175
    %3350 = vmatprep.subr.mxu0 %v168
    %3351 = vmatpush1.msra.mxu0 %v167
    %3352 = vmatprep.subr.mxu0 %v160
    %3353 = vmatpush1.msra.mxu0 %v159
    %3354 = vmatprep.subr.mxu0 %v152
    %3355 = vmatpush1.msra.mxu0 %v151
    %3356 = vmatprep.subr.mxu0 %v144
    %3357 = vmatpush1.msra.mxu0 %v143
    %3358 = vmatprep.subr.mxu0 %v136
    %3359 = vmatpush1.msra.mxu0 %v135
    %3360 = vmatprep.subr.mxu0 %v128
    %3361 = vmatpush1.msra.mxu0 %v127
    %3362 = vmatprep.subr.mxu0 %v120
    %3363 = vmatpush1.msra.mxu0 %v119
    %3364 = vmatprep.subr.mxu0 %v112
    %3365 = vmatpush1.msra.mxu0 %v111
    %3366 = vmatprep.subr.mxu0 %v104
    %3367 = vmatpush1.msra.mxu0 %v103
    %3368 = vmatprep.subr.mxu0 %v96
    %3369 = vmatpush1.msra.mxu0 %v95
    %3370 = vmatprep.subr.mxu0 %v88
    %3371 = vmatpush1.msra.mxu0 %v87
    %3372 = vmatprep.subr.mxu0 %v80
    %3373 = vmatpush1.msra.mxu0 %v79
    %3374 = vmatprep.subr.mxu0 %v328
    %3375 = vmatpush2.msra.mxu0 %v327
    %3376 = vmatprep.subr.mxu0 %v320
    %3377 = vmatpush2.msra.mxu0 %v319
    %3378 = vmatprep.subr.mxu0 %v312
    %3379 = vmatpush2.msra.mxu0 %v311
    %3380 = vmatprep.subr.mxu0 %v304
    %3381 = vmatpush2.msra.mxu0 %v303
    %3382 = vmatprep.subr.mxu0 %v296
    %3383 = vmatpush2.msra.mxu0 %v295
    %3384 = vmatprep.subr.mxu0 %v288
    %3385 = vmatpush2.msra.mxu0 %v287
    %3386 = vmatprep.subr.mxu0 %v280
    %3387 = vmatpush2.msra.mxu0 %v279
    %3388 = vmatprep.subr.mxu0 %v272
    %3389 = vmatpush2.msra.mxu0 %v271
    %3390 = vmatprep.subr.mxu0 %v264
    %3391 = vmatpush2.msra.mxu0 %v263
    %3392 = vmatprep.subr.mxu0 %v256
    %3393 = vmatpush2.msra.mxu0 %v255
    %3394 = vmatprep.subr.mxu0 %v248
    %3395 = vmatpush2.msra.mxu0 %v247
    %3396 = vmatprep.subr.mxu0 %v240
    %3397 = vmatpush2.msra.mxu0 %v239
    %3398 = vmatprep.subr.mxu0 %v232
    %3399 = vmatpush2.msra.mxu0 %v231
    %3400 = vmatprep.subr.mxu0 %v224
    %3401 = vmatpush2.msra.mxu0 %v223
    %3402 = vmatprep.subr.mxu0 %v216
    %3403 = vmatpush2.msra.mxu0 %v215
    %3404 = vmatprep.subr.mxu0 %v208
    %3405 = vmatpush2.msra.mxu0 %v207
    %3406 = vmatprep.mubr.f32.mxu0 %v3341
    %3407 = vmatmul.mubr.f32.gmra.mxu0 %v3171
    %v3408 = vpop.f32.mrf.mxu0
    %v3409 = vadd.f32 0.0, %v3408
    %v3410 = vpop.f32.mrf.mxu0
    %v3411 = vadd.f32 0.0, %v3410
    %3412 = vdwg.mxu0
    %3413 = vmatprep.subr.mxu0 %v202
    %3414 = vmatpush1.msra.mxu0 %v201
    %3415 = vmatprep.subr.mxu0 %v194
    %3416 = vmatpush1.msra.mxu0 %v193
    %3417 = vmatprep.subr.mxu0 %v186
    %3418 = vmatpush1.msra.mxu0 %v185
    %3419 = vmatprep.subr.mxu0 %v178
    %3420 = vmatpush1.msra.mxu0 %v177
    %3421 = vmatprep.subr.mxu0 %v170
    %3422 = vmatpush1.msra.mxu0 %v169
    %3423 = vmatprep.subr.mxu0 %v162
    %3424 = vmatpush1.msra.mxu0 %v161
    %3425 = vmatprep.subr.mxu0 %v154
    %3426 = vmatpush1.msra.mxu0 %v153
    %3427 = vmatprep.subr.mxu0 %v146
    %3428 = vmatpush1.msra.mxu0 %v145
    %3429 = vmatprep.subr.mxu0 %v138
    %3430 = vmatpush1.msra.mxu0 %v137
    %3431 = vmatprep.subr.mxu0 %v130
    %3432 = vmatpush1.msra.mxu0 %v129
    %3433 = vmatprep.subr.mxu0 %v122
    %3434 = vmatpush1.msra.mxu0 %v121
    %3435 = vmatprep.subr.mxu0 %v114
    %3436 = vmatpush1.msra.mxu0 %v113
    %3437 = vmatprep.subr.mxu0 %v106
    %3438 = vmatpush1.msra.mxu0 %v105
    %3439 = vmatprep.subr.mxu0 %v98
    %3440 = vmatpush1.msra.mxu0 %v97
    %3441 = vmatprep.subr.mxu0 %v90
    %3442 = vmatpush1.msra.mxu0 %v89
    %3443 = vmatprep.subr.mxu0 %v82
    %3444 = vmatpush1.msra.mxu0 %v81
    %3445 = vmatprep.subr.mxu0 %v330
    %3446 = vmatpush2.msra.mxu0 %v329
    %3447 = vmatprep.subr.mxu0 %v322
    %3448 = vmatpush2.msra.mxu0 %v321
    %3449 = vmatprep.subr.mxu0 %v314
    %3450 = vmatpush2.msra.mxu0 %v313
    %3451 = vmatprep.subr.mxu0 %v306
    %3452 = vmatpush2.msra.mxu0 %v305
    %3453 = vmatprep.subr.mxu0 %v298
    %3454 = vmatpush2.msra.mxu0 %v297
    %3455 = vmatprep.subr.mxu0 %v290
    %3456 = vmatpush2.msra.mxu0 %v289
    %3457 = vmatprep.subr.mxu0 %v282
    %3458 = vmatpush2.msra.mxu0 %v281
    %3459 = vmatprep.subr.mxu0 %v274
    %3460 = vmatpush2.msra.mxu0 %v273
    %3461 = vmatprep.subr.mxu0 %v266
    %3462 = vmatpush2.msra.mxu0 %v265
    %3463 = vmatprep.subr.mxu0 %v258
    %3464 = vmatpush2.msra.mxu0 %v257
    %3465 = vmatprep.subr.mxu0 %v250
    %3466 = vmatpush2.msra.mxu0 %v249
    %3467 = vmatprep.subr.mxu0 %v242
    %3468 = vmatpush2.msra.mxu0 %v241
    %3469 = vmatprep.subr.mxu0 %v234
    %3470 = vmatpush2.msra.mxu0 %v233
    %3471 = vmatprep.subr.mxu0 %v226
    %3472 = vmatpush2.msra.mxu0 %v225
    %3473 = vmatprep.subr.mxu0 %v218
    %3474 = vmatpush2.msra.mxu0 %v217
    %3475 = vmatprep.subr.mxu0 %v210
    %3476 = vmatpush2.msra.mxu0 %v209
    %3477 = vmatprep.mubr.f32.mxu0 %v3341
    %3478 = vmatmul.mubr.f32.gmra.mxu0 %v3171
    %v3479 = vpop.f32.mrf.mxu0
    %v3480 = vadd.f32 0.0, %v3479
    %v3481 = vpop.f32.mrf.mxu0
    %v3482 = vadd.f32 0.0, %v3481
    %3483 = vdwg.mxu0
    %3484 = vmatprep.subr.mxu0 %v204
    %3485 = vmatpush1.msra.mxu0 %v203
    %3486 = vmatprep.subr.mxu0 %v196
    %3487 = vmatpush1.msra.mxu0 %v195
    %3488 = vmatprep.subr.mxu0 %v188
    %3489 = vmatpush1.msra.mxu0 %v187
    %3490 = vmatprep.subr.mxu0 %v180
    %3491 = vmatpush1.msra.mxu0 %v179
    %3492 = vmatprep.subr.mxu0 %v172
    %3493 = vmatpush1.msra.mxu0 %v171
    %3494 = vmatprep.subr.mxu0 %v164
    %3495 = vmatpush1.msra.mxu0 %v163
    %3496 = vmatprep.subr.mxu0 %v156
    %3497 = vmatpush1.msra.mxu0 %v155
    %3498 = vmatprep.subr.mxu0 %v148
    %3499 = vmatpush1.msra.mxu0 %v147
    %3500 = vmatprep.subr.mxu0 %v140
    %3501 = vmatpush1.msra.mxu0 %v139
    %3502 = vmatprep.subr.mxu0 %v132
    %3503 = vmatpush1.msra.mxu0 %v131
    %3504 = vmatprep.subr.mxu0 %v124
    %3505 = vmatpush1.msra.mxu0 %v123
    %3506 = vmatprep.subr.mxu0 %v116
    %3507 = vmatpush1.msra.mxu0 %v115
    %3508 = vmatprep.subr.mxu0 %v108
    %3509 = vmatpush1.msra.mxu0 %v107
    %3510 = vmatprep.subr.mxu0 %v100
    %3511 = vmatpush1.msra.mxu0 %v99
    %3512 = vmatprep.subr.mxu0 %v92
    %3513 = vmatpush1.msra.mxu0 %v91
    %3514 = vmatprep.subr.mxu0 %v84
    %3515 = vmatpush1.msra.mxu0 %v83
    %3516 = vmatprep.subr.mxu0 %v332
    %3517 = vmatpush2.msra.mxu0 %v331
    %3518 = vmatprep.subr.mxu0 %v324
    %3519 = vmatpush2.msra.mxu0 %v323
    %3520 = vmatprep.subr.mxu0 %v316
    %3521 = vmatpush2.msra.mxu0 %v315
    %3522 = vmatprep.subr.mxu0 %v308
    %3523 = vmatpush2.msra.mxu0 %v307
    %3524 = vmatprep.subr.mxu0 %v300
    %3525 = vmatpush2.msra.mxu0 %v299
    %3526 = vmatprep.subr.mxu0 %v292
    %3527 = vmatpush2.msra.mxu0 %v291
    %3528 = vmatprep.subr.mxu0 %v284
    %3529 = vmatpush2.msra.mxu0 %v283
    %3530 = vmatprep.subr.mxu0 %v276
    %3531 = vmatpush2.msra.mxu0 %v275
    %3532 = vmatprep.subr.mxu0 %v268
    %3533 = vmatpush2.msra.mxu0 %v267
    %3534 = vmatprep.subr.mxu0 %v260
    %3535 = vmatpush2.msra.mxu0 %v259
    %3536 = vmatprep.subr.mxu0 %v252
    %3537 = vmatpush2.msra.mxu0 %v251
    %3538 = vmatprep.subr.mxu0 %v244
    %3539 = vmatpush2.msra.mxu0 %v243
    %3540 = vmatprep.subr.mxu0 %v236
    %3541 = vmatpush2.msra.mxu0 %v235
    %3542 = vmatprep.subr.mxu0 %v228
    %3543 = vmatpush2.msra.mxu0 %v227
    %3544 = vmatprep.subr.mxu0 %v220
    %3545 = vmatpush2.msra.mxu0 %v219
    %3546 = vmatprep.subr.mxu0 %v212
    %3547 = vmatpush2.msra.mxu0 %v211
    %3548 = vmatprep.mubr.f32.mxu0 %v3341
    %3549 = vmatmul.mubr.f32.gmra.mxu0 %v3171
    %v3550 = vpop.f32.mrf.mxu0
    %v3551 = vadd.f32 0.0, %v3550
    %v3552 = vpop.f32.mrf.mxu0
    %v3553 = vadd.f32 0.0, %v3552
    %3554 = vdwg.mxu0
    %3555 = vmatprep.subr.mxu0 %v206
    %3556 = vmatpush1.msra.mxu0 %v205
    %3557 = vmatprep.subr.mxu0 %v198
    %3558 = vmatpush1.msra.mxu0 %v197
    %3559 = vmatprep.subr.mxu0 %v190
    %3560 = vmatpush1.msra.mxu0 %v189
    %3561 = vmatprep.subr.mxu0 %v182
    %3562 = vmatpush1.msra.mxu0 %v181
    %3563 = vmatprep.subr.mxu0 %v174
    %3564 = vmatpush1.msra.mxu0 %v173
    %3565 = vmatprep.subr.mxu0 %v166
    %3566 = vmatpush1.msra.mxu0 %v165
    %3567 = vmatprep.subr.mxu0 %v158
    %3568 = vmatpush1.msra.mxu0 %v157
    %3569 = vmatprep.subr.mxu0 %v150
    %3570 = vmatpush1.msra.mxu0 %v149
    %3571 = vmatprep.subr.mxu0 %v142
    %3572 = vmatpush1.msra.mxu0 %v141
    %3573 = vmatprep.subr.mxu0 %v134
    %3574 = vmatpush1.msra.mxu0 %v133
    %3575 = vmatprep.subr.mxu0 %v126
    %3576 = vmatpush1.msra.mxu0 %v125
    %3577 = vmatprep.subr.mxu0 %v118
    %3578 = vmatpush1.msra.mxu0 %v117
    %3579 = vmatprep.subr.mxu0 %v110
    %3580 = vmatpush1.msra.mxu0 %v109
    %3581 = vmatprep.subr.mxu0 %v102
    %3582 = vmatpush1.msra.mxu0 %v101
    %3583 = vmatprep.subr.mxu0 %v94
    %3584 = vmatpush1.msra.mxu0 %v93
    %3585 = vmatprep.subr.mxu0 %v86
    %3586 = vmatpush1.msra.mxu0 %v85
    %3587 = vmatprep.subr.mxu0 %v334
    %3588 = vmatpush2.msra.mxu0 %v333
    %3589 = vmatprep.subr.mxu0 %v326
    %3590 = vmatpush2.msra.mxu0 %v325
    %3591 = vmatprep.subr.mxu0 %v318
    %3592 = vmatpush2.msra.mxu0 %v317
    %3593 = vmatprep.subr.mxu0 %v310
    %3594 = vmatpush2.msra.mxu0 %v309
    %3595 = vmatprep.subr.mxu0 %v302
    %3596 = vmatpush2.msra.mxu0 %v301
    %3597 = vmatprep.subr.mxu0 %v294
    %3598 = vmatpush2.msra.mxu0 %v293
    %3599 = vmatprep.subr.mxu0 %v286
    %3600 = vmatpush2.msra.mxu0 %v285
    %3601 = vmatprep.subr.mxu0 %v278
    %3602 = vmatpush2.msra.mxu0 %v277
    %3603 = vmatprep.subr.mxu0 %v270
    %3604 = vmatpush2.msra.mxu0 %v269
    %3605 = vmatprep.subr.mxu0 %v262
    %3606 = vmatpush2.msra.mxu0 %v261
    %3607 = vmatprep.subr.mxu0 %v254
    %3608 = vmatpush2.msra.mxu0 %v253
    %3609 = vmatprep.subr.mxu0 %v246
    %3610 = vmatpush2.msra.mxu0 %v245
    %3611 = vmatprep.subr.mxu0 %v238
    %3612 = vmatpush2.msra.mxu0 %v237
    %3613 = vmatprep.subr.mxu0 %v230
    %3614 = vmatpush2.msra.mxu0 %v229
    %3615 = vmatprep.subr.mxu0 %v222
    %3616 = vmatpush2.msra.mxu0 %v221
    %3617 = vmatprep.subr.mxu0 %v214
    %3618 = vmatpush2.msra.mxu0 %v213
    %3619 = vmatprep.mubr.f32.mxu0 %v3341
    %3620 = vmatmul.mubr.f32.gmra.mxu0 %v3171
    %v3621 = vpop.f32.mrf.mxu0
    %v3622 = vadd.f32 0.0, %v3621
    %v3623 = vpop.f32.mrf.mxu0
    %v3624 = vadd.f32 0.0, %v3623
    %3625 = vdwg.mxu0
    %s3626 = scalar_lea.vmem [#allocation2], 192
    %v3627 = vld [vmem:[%s3626] sm:$0xff]
    %v3628 = vld [vmem:[%s3626 + $0x8] sm:$0xff]
    %v3629 = vld [vmem:[%s3626 + $0x10] sm:$0xff]
    %v3630 = vld [vmem:[%s3626 + $0x18] sm:$0xff]
    %v3631 = vadd.f32 %v3627, %v3409
    %v3632 = vadd.f32 %v3628, %v3411
    %v3633 = vadd.f32 %v3629, %v3480
    %v3634 = vadd.f32 %v3630, %v3482
    %v3635 = vtanh.pop %v3631
    %v3636 = vxor.u32 %v3632, 2147483648
    %v3637 = vmul.f32 %v3636, 1.442695
    %v3638 = vpow.pop %v3637
    %v3639 = vadd.f32 %v3638, 1.0
    %v3640 = vrcp.pop %v3639
    %v3641 = vmul.f32 1.0, %v3640
    %v3642 = vxor.u32 %v3633, 2147483648
    %v3643 = vmul.f32 %v3642, 1.442695
    %v3644 = vpow.pop %v3643
    %v3645 = vadd.f32 %v3644, 1.0
    %v3646 = vrcp.pop %v3645
    %v3647 = vmul.f32 1.0, %v3646
    %v3648 = vxor.u32 %v3634, 2147483648
    %v3649 = vmul.f32 %v3648, 1.442695
    %v3650 = vpow.pop %v3649
    %v3651 = vadd.f32 %v3650, 1.0
    %v3652 = vrcp.pop %v3651
    %v3653 = vmul.f32 1.0, %v3652
    %v3654 = vmul.f32 %v3635, %v3641
    %v3655 = vmul.f32 %v3169, %v3647
    %v3656 = vadd.f32 %v3654, %v3655
    %v3657 = vtanh.pop %v3656
    %v3658 = vmul.f32 %v3657, %v3653
    %3659 = vmatprep.subr.mxu0 %v396
    %3660 = vmatpush1.msra.mxu0 %v395
    %3661 = vmatprep.subr.mxu0 %v392
    %3662 = vmatpush1.msra.mxu0 %v391
    %3663 = vmatprep.subr.mxu0 %v388
    %3664 = vmatpush1.msra.mxu0 %v387
    %3665 = vmatprep.subr.mxu0 %v384
    %3666 = vmatpush1.msra.mxu0 %v383
    %3667 = vmatprep.subr.mxu0 %v380
    %3668 = vmatpush1.msra.mxu0 %v379
    %3669 = vmatprep.subr.mxu0 %v376
    %3670 = vmatpush1.msra.mxu0 %v375
    %3671 = vmatprep.subr.mxu0 %v372
    %3672 = vmatpush1.msra.mxu0 %v371
    %3673 = vmatprep.subr.mxu0 %v368
    %3674 = vmatpush1.msra.mxu0 %v367
    %3675 = vmatprep.subr.mxu0 %v364
    %3676 = vmatpush1.msra.mxu0 %v363
    %3677 = vmatprep.subr.mxu0 %v360
    %3678 = vmatpush1.msra.mxu0 %v359
    %3679 = vmatprep.subr.mxu0 %v356
    %3680 = vmatpush1.msra.mxu0 %v355
    %3681 = vmatprep.subr.mxu0 %v352
    %3682 = vmatpush1.msra.mxu0 %v351
    %3683 = vmatprep.subr.mxu0 %v348
    %3684 = vmatpush1.msra.mxu0 %v347
    %3685 = vmatprep.subr.mxu0 %v344
    %3686 = vmatpush1.msra.mxu0 %v343
    %3687 = vmatprep.subr.mxu0 %v340
    %3688 = vmatpush1.msra.mxu0 %v339
    %3689 = vmatprep.subr.mxu0 %v336
    %3690 = vmatpush1.msra.mxu0 %v335
    %3691 = vmatprep.subr.mxu0 0.0
    %3692 = vmatpush2.msra.mxu0 0.0
    %3693 = vmatprep.subr.mxu0 0.0
    %3694 = vmatpush2.msra.mxu0 0.0
    %3695 = vmatprep.subr.mxu0 0.0
    %3696 = vmatpush2.msra.mxu0 0.0
    %3697 = vmatprep.subr.mxu0 0.0
    %3698 = vmatpush2.msra.mxu0 0.0
    %3699 = vmatprep.subr.mxu0 0.0
    %3700 = vmatpush2.msra.mxu0 0.0
    %3701 = vmatprep.subr.mxu0 0.0
    %3702 = vmatpush2.msra.mxu0 0.0
    %3703 = vmatprep.subr.mxu0 0.0
    %3704 = vmatpush2.msra.mxu0 0.0
    %3705 = vmatprep.subr.mxu0 0.0
    %3706 = vmatpush2.msra.mxu0 0.0
    %3707 = vmatprep.subr.mxu0 0.0
    %3708 = vmatpush2.msra.mxu0 0.0
    %3709 = vmatprep.subr.mxu0 0.0
    %3710 = vmatpush2.msra.mxu0 0.0
    %3711 = vmatprep.subr.mxu0 0.0
    %3712 = vmatpush2.msra.mxu0 0.0
    %3713 = vmatprep.subr.mxu0 0.0
    %3714 = vmatpush2.msra.mxu0 0.0
    %3715 = vmatprep.subr.mxu0 0.0
    %3716 = vmatpush2.msra.mxu0 0.0
    %3717 = vmatprep.subr.mxu0 0.0
    %3718 = vmatpush2.msra.mxu0 0.0
    %3719 = vmatprep.subr.mxu0 0.0
    %3720 = vmatpush2.msra.mxu0 0.0
    %3721 = vmatprep.subr.mxu0 0.0
    %3722 = vmatpush2.msra.mxu0 0.0
    %3723 = vmatprep.mubr.f32.mxu0 0.0
    %3724 = vmatmul.mubr.f32.gmra.mxu0 %v3658
    %v3725 = vpop.f32.mrf.mxu0
    %v3726 = vadd.f32 %v3551, %v3725
    %v3727 = vpop.f32.mrf.mxu0
    %v3728 = vadd.f32 %v3553, %v3727
    %3729 = vdwg.mxu0
    %3730 = vmatprep.subr.mxu0 %v398
    %3731 = vmatpush1.msra.mxu0 %v397
    %3732 = vmatprep.subr.mxu0 %v394
    %3733 = vmatpush1.msra.mxu0 %v393
    %3734 = vmatprep.subr.mxu0 %v390
    %3735 = vmatpush1.msra.mxu0 %v389
    %3736 = vmatprep.subr.mxu0 %v386
    %3737 = vmatpush1.msra.mxu0 %v385
    %3738 = vmatprep.subr.mxu0 %v382
    %3739 = vmatpush1.msra.mxu0 %v381
    %3740 = vmatprep.subr.mxu0 %v378
    %3741 = vmatpush1.msra.mxu0 %v377
    %3742 = vmatprep.subr.mxu0 %v374
    %3743 = vmatpush1.msra.mxu0 %v373
    %3744 = vmatprep.subr.mxu0 %v370
    %3745 = vmatpush1.msra.mxu0 %v369
    %3746 = vmatprep.subr.mxu0 %v366
    %3747 = vmatpush1.msra.mxu0 %v365
    %3748 = vmatprep.subr.mxu0 %v362
    %3749 = vmatpush1.msra.mxu0 %v361
    %3750 = vmatprep.subr.mxu0 %v358
    %3751 = vmatpush1.msra.mxu0 %v357
    %3752 = vmatprep.subr.mxu0 %v354
    %3753 = vmatpush1.msra.mxu0 %v353
    %3754 = vmatprep.subr.mxu0 %v350
    %3755 = vmatpush1.msra.mxu0 %v349
    %3756 = vmatprep.subr.mxu0 %v346
    %3757 = vmatpush1.msra.mxu0 %v345
    %3758 = vmatprep.subr.mxu0 %v342
    %3759 = vmatpush1.msra.mxu0 %v341
    %3760 = vmatprep.subr.mxu0 %v338
    %3761 = vmatpush1.msra.mxu0 %v337
    %3762 = vmatprep.subr.mxu0 0.0
    %3763 = vmatpush2.msra.mxu0 0.0
    %3764 = vmatprep.subr.mxu0 0.0
    %3765 = vmatpush2.msra.mxu0 0.0
    %3766 = vmatprep.subr.mxu0 0.0
    %3767 = vmatpush2.msra.mxu0 0.0
    %3768 = vmatprep.subr.mxu0 0.0
    %3769 = vmatpush2.msra.mxu0 0.0
    %3770 = vmatprep.subr.mxu0 0.0
    %3771 = vmatpush2.msra.mxu0 0.0
    %3772 = vmatprep.subr.mxu0 0.0
    %3773 = vmatpush2.msra.mxu0 0.0
    %3774 = vmatprep.subr.mxu0 0.0
    %3775 = vmatpush2.msra.mxu0 0.0
    %3776 = vmatprep.subr.mxu0 0.0
    %3777 = vmatpush2.msra.mxu0 0.0
    %3778 = vmatprep.subr.mxu0 0.0
    %3779 = vmatpush2.msra.mxu0 0.0
    %3780 = vmatprep.subr.mxu0 0.0
    %3781 = vmatpush2.msra.mxu0 0.0
    %3782 = vmatprep.subr.mxu0 0.0
    %3783 = vmatpush2.msra.mxu0 0.0
    %3784 = vmatprep.subr.mxu0 0.0
    %3785 = vmatpush2.msra.mxu0 0.0
    %3786 = vmatprep.subr.mxu0 0.0
    %3787 = vmatpush2.msra.mxu0 0.0
    %3788 = vmatprep.subr.mxu0 0.0
    %3789 = vmatpush2.msra.mxu0 0.0
    %3790 = vmatprep.subr.mxu0 0.0
    %3791 = vmatpush2.msra.mxu0 0.0
    %3792 = vmatprep.subr.mxu0 0.0
    %3793 = vmatpush2.msra.mxu0 0.0
    %3794 = vmatprep.mubr.f32.mxu0 0.0
    %3795 = vmatmul.mubr.f32.gmra.mxu0 %v3658
    %v3796 = vpop.f32.mrf.mxu0
    %v3797 = vadd.f32 %v3622, %v3796
    %v3798 = vpop.f32.mrf.mxu0
    %v3799 = vadd.f32 %v3624, %v3798
    %3800 = vdwg.mxu0
    %v3801 = vadd.f32 %v3726, %v862
    %v3802 = vadd.f32 %v3728, %v866
    %v3803 = vadd.f32 %v3797, %v870
    %v3804 = vadd.f32 %v3799, %v874
    %v3805 = vtanh.pop %v3801
    %v3806 = vxor.u32 %v3802, 2147483648
    %v3807 = vmul.f32 %v3806, 1.442695
    %v3808 = vpow.pop %v3807
    %v3809 = vadd.f32 %v3808, 1.0
    %v3810 = vrcp.pop %v3809
    %v3811 = vmul.f32 1.0, %v3810
    %v3812 = vxor.u32 %v3803, 2147483648
    %v3813 = vmul.f32 %v3812, 1.442695
    %v3814 = vpow.pop %v3813
    %v3815 = vadd.f32 %v3814, 1.0
    %v3816 = vrcp.pop %v3815
    %v3817 = vmul.f32 1.0, %v3816
    %v3818 = vxor.u32 %v3804, 2147483648
    %v3819 = vmul.f32 %v3818, 1.442695
    %v3820 = vpow.pop %v3819
    %v3821 = vadd.f32 %v3820, 1.0
    %v3822 = vrcp.pop %v3821
    %v3823 = vmul.f32 1.0, %v3822
    %v3824 = vmul.f32 %v3805, %v3811
    %v3825 = vmul.f32 %v3339, %v3817
    %v3826 = vadd.f32 %v3824, %v3825
    %v3827 = vtanh.pop %v3826
    %v3828 = vmul.f32 %v3827, %v3823
    %3829 = vmatprep.subr.mxu0 %v200
    %3830 = vmatpush1.msra.mxu0 %v199
    %3831 = vmatprep.subr.mxu0 %v192
    %3832 = vmatpush1.msra.mxu0 %v191
    %3833 = vmatprep.subr.mxu0 %v184
    %3834 = vmatpush1.msra.mxu0 %v183
    %3835 = vmatprep.subr.mxu0 %v176
    %3836 = vmatpush1.msra.mxu0 %v175
    %3837 = vmatprep.subr.mxu0 %v168
    %3838 = vmatpush1.msra.mxu0 %v167
    %3839 = vmatprep.subr.mxu0 %v160
    %3840 = vmatpush1.msra.mxu0 %v159
    %3841 = vmatprep.subr.mxu0 %v152
    %3842 = vmatpush1.msra.mxu0 %v151
    %3843 = vmatprep.subr.mxu0 %v144
    %3844 = vmatpush1.msra.mxu0 %v143
    %3845 = vmatprep.subr.mxu0 %v136
    %3846 = vmatpush1.msra.mxu0 %v135
    %3847 = vmatprep.subr.mxu0 %v128
    %3848 = vmatpush1.msra.mxu0 %v127
    %3849 = vmatprep.subr.mxu0 %v120
    %3850 = vmatpush1.msra.mxu0 %v119
    %3851 = vmatprep.subr.mxu0 %v112
    %3852 = vmatpush1.msra.mxu0 %v111
    %3853 = vmatprep.subr.mxu0 %v104
    %3854 = vmatpush1.msra.mxu0 %v103
    %3855 = vmatprep.subr.mxu0 %v96
    %3856 = vmatpush1.msra.mxu0 %v95
    %3857 = vmatprep.subr.mxu0 %v88
    %3858 = vmatpush1.msra.mxu0 %v87
    %3859 = vmatprep.subr.mxu0 %v80
    %3860 = vmatpush1.msra.mxu0 %v79
    %3861 = vmatprep.subr.mxu0 %v328
    %3862 = vmatpush2.msra.mxu0 %v327
    %3863 = vmatprep.subr.mxu0 %v320
    %3864 = vmatpush2.msra.mxu0 %v319
    %3865 = vmatprep.subr.mxu0 %v312
    %3866 = vmatpush2.msra.mxu0 %v311
    %3867 = vmatprep.subr.mxu0 %v304
    %3868 = vmatpush2.msra.mxu0 %v303
    %3869 = vmatprep.subr.mxu0 %v296
    %3870 = vmatpush2.msra.mxu0 %v295
    %3871 = vmatprep.subr.mxu0 %v288
    %3872 = vmatpush2.msra.mxu0 %v287
    %3873 = vmatprep.subr.mxu0 %v280
    %3874 = vmatpush2.msra.mxu0 %v279
    %3875 = vmatprep.subr.mxu0 %v272
    %3876 = vmatpush2.msra.mxu0 %v271
    %3877 = vmatprep.subr.mxu0 %v264
    %3878 = vmatpush2.msra.mxu0 %v263
    %3879 = vmatprep.subr.mxu0 %v256
    %3880 = vmatpush2.msra.mxu0 %v255
    %3881 = vmatprep.subr.mxu0 %v248
    %3882 = vmatpush2.msra.mxu0 %v247
    %3883 = vmatprep.subr.mxu0 %v240
    %3884 = vmatpush2.msra.mxu0 %v239
    %3885 = vmatprep.subr.mxu0 %v232
    %3886 = vmatpush2.msra.mxu0 %v231
    %3887 = vmatprep.subr.mxu0 %v224
    %3888 = vmatpush2.msra.mxu0 %v223
    %3889 = vmatprep.subr.mxu0 %v216
    %3890 = vmatpush2.msra.mxu0 %v215
    %3891 = vmatprep.subr.mxu0 %v208
    %3892 = vmatpush2.msra.mxu0 %v207
    %3893 = vmatprep.mubr.f32.mxu0 %v3828
    %3894 = vmatmul.mubr.f32.gmra.mxu0 %v3658
    %v3895 = vpop.f32.mrf.mxu0
    %v3896 = vadd.f32 0.0, %v3895
    %v3897 = vpop.f32.mrf.mxu0
    %v3898 = vadd.f32 0.0, %v3897
    %3899 = vdwg.mxu0
    %3900 = vmatprep.subr.mxu0 %v202
    %3901 = vmatpush1.msra.mxu0 %v201
    %3902 = vmatprep.subr.mxu0 %v194
    %3903 = vmatpush1.msra.mxu0 %v193
    %3904 = vmatprep.subr.mxu0 %v186
    %3905 = vmatpush1.msra.mxu0 %v185
    %3906 = vmatprep.subr.mxu0 %v178
    %3907 = vmatpush1.msra.mxu0 %v177
    %3908 = vmatprep.subr.mxu0 %v170
    %3909 = vmatpush1.msra.mxu0 %v169
    %3910 = vmatprep.subr.mxu0 %v162
    %3911 = vmatpush1.msra.mxu0 %v161
    %3912 = vmatprep.subr.mxu0 %v154
    %3913 = vmatpush1.msra.mxu0 %v153
    %3914 = vmatprep.subr.mxu0 %v146
    %3915 = vmatpush1.msra.mxu0 %v145
    %3916 = vmatprep.subr.mxu0 %v138
    %3917 = vmatpush1.msra.mxu0 %v137
    %3918 = vmatprep.subr.mxu0 %v130
    %3919 = vmatpush1.msra.mxu0 %v129
    %3920 = vmatprep.subr.mxu0 %v122
    %3921 = vmatpush1.msra.mxu0 %v121
    %3922 = vmatprep.subr.mxu0 %v114
    %3923 = vmatpush1.msra.mxu0 %v113
    %3924 = vmatprep.subr.mxu0 %v106
    %3925 = vmatpush1.msra.mxu0 %v105
    %3926 = vmatprep.subr.mxu0 %v98
    %3927 = vmatpush1.msra.mxu0 %v97
    %3928 = vmatprep.subr.mxu0 %v90
    %3929 = vmatpush1.msra.mxu0 %v89
    %3930 = vmatprep.subr.mxu0 %v82
    %3931 = vmatpush1.msra.mxu0 %v81
    %3932 = vmatprep.subr.mxu0 %v330
    %3933 = vmatpush2.msra.mxu0 %v329
    %3934 = vmatprep.subr.mxu0 %v322
    %3935 = vmatpush2.msra.mxu0 %v321
    %3936 = vmatprep.subr.mxu0 %v314
    %3937 = vmatpush2.msra.mxu0 %v313
    %3938 = vmatprep.subr.mxu0 %v306
    %3939 = vmatpush2.msra.mxu0 %v305
    %3940 = vmatprep.subr.mxu0 %v298
    %3941 = vmatpush2.msra.mxu0 %v297
    %3942 = vmatprep.subr.mxu0 %v290
    %3943 = vmatpush2.msra.mxu0 %v289
    %3944 = vmatprep.subr.mxu0 %v282
    %3945 = vmatpush2.msra.mxu0 %v281
    %3946 = vmatprep.subr.mxu0 %v274
    %3947 = vmatpush2.msra.mxu0 %v273
    %3948 = vmatprep.subr.mxu0 %v266
    %3949 = vmatpush2.msra.mxu0 %v265
    %3950 = vmatprep.subr.mxu0 %v258
    %3951 = vmatpush2.msra.mxu0 %v257
    %3952 = vmatprep.subr.mxu0 %v250
    %3953 = vmatpush2.msra.mxu0 %v249
    %3954 = vmatprep.subr.mxu0 %v242
    %3955 = vmatpush2.msra.mxu0 %v241
    %3956 = vmatprep.subr.mxu0 %v234
    %3957 = vmatpush2.msra.mxu0 %v233
    %3958 = vmatprep.subr.mxu0 %v226
    %3959 = vmatpush2.msra.mxu0 %v225
    %3960 = vmatprep.subr.mxu0 %v218
    %3961 = vmatpush2.msra.mxu0 %v217
    %3962 = vmatprep.subr.mxu0 %v210
    %3963 = vmatpush2.msra.mxu0 %v209
    %3964 = vmatprep.mubr.f32.mxu0 %v3828
    %3965 = vmatmul.mubr.f32.gmra.mxu0 %v3658
    %v3966 = vpop.f32.mrf.mxu0
    %v3967 = vadd.f32 0.0, %v3966
    %v3968 = vpop.f32.mrf.mxu0
    %v3969 = vadd.f32 0.0, %v3968
    %3970 = vdwg.mxu0
    %3971 = vmatprep.subr.mxu0 %v204
    %3972 = vmatpush1.msra.mxu0 %v203
    %3973 = vmatprep.subr.mxu0 %v196
    %3974 = vmatpush1.msra.mxu0 %v195
    %3975 = vmatprep.subr.mxu0 %v188
    %3976 = vmatpush1.msra.mxu0 %v187
    %3977 = vmatprep.subr.mxu0 %v180
    %3978 = vmatpush1.msra.mxu0 %v179
    %3979 = vmatprep.subr.mxu0 %v172
    %3980 = vmatpush1.msra.mxu0 %v171
    %3981 = vmatprep.subr.mxu0 %v164
    %3982 = vmatpush1.msra.mxu0 %v163
    %3983 = vmatprep.subr.mxu0 %v156
    %3984 = vmatpush1.msra.mxu0 %v155
    %3985 = vmatprep.subr.mxu0 %v148
    %3986 = vmatpush1.msra.mxu0 %v147
    %3987 = vmatprep.subr.mxu0 %v140
    %3988 = vmatpush1.msra.mxu0 %v139
    %3989 = vmatprep.subr.mxu0 %v132
    %3990 = vmatpush1.msra.mxu0 %v131
    %3991 = vmatprep.subr.mxu0 %v124
    %3992 = vmatpush1.msra.mxu0 %v123
    %3993 = vmatprep.subr.mxu0 %v116
    %3994 = vmatpush1.msra.mxu0 %v115
    %3995 = vmatprep.subr.mxu0 %v108
    %3996 = vmatpush1.msra.mxu0 %v107
    %3997 = vmatprep.subr.mxu0 %v100
    %3998 = vmatpush1.msra.mxu0 %v99
    %3999 = vmatprep.subr.mxu0 %v92
    %4000 = vmatpush1.msra.mxu0 %v91
    %4001 = vmatprep.subr.mxu0 %v84
    %4002 = vmatpush1.msra.mxu0 %v83
    %4003 = vmatprep.subr.mxu0 %v332
    %4004 = vmatpush2.msra.mxu0 %v331
    %4005 = vmatprep.subr.mxu0 %v324
    %4006 = vmatpush2.msra.mxu0 %v323
    %4007 = vmatprep.subr.mxu0 %v316
    %4008 = vmatpush2.msra.mxu0 %v315
    %4009 = vmatprep.subr.mxu0 %v308
    %4010 = vmatpush2.msra.mxu0 %v307
    %4011 = vmatprep.subr.mxu0 %v300
    %4012 = vmatpush2.msra.mxu0 %v299
    %4013 = vmatprep.subr.mxu0 %v292
    %4014 = vmatpush2.msra.mxu0 %v291
    %4015 = vmatprep.subr.mxu0 %v284
    %4016 = vmatpush2.msra.mxu0 %v283
    %4017 = vmatprep.subr.mxu0 %v276
    %4018 = vmatpush2.msra.mxu0 %v275
    %4019 = vmatprep.subr.mxu0 %v268
    %4020 = vmatpush2.msra.mxu0 %v267
    %4021 = vmatprep.subr.mxu0 %v260
    %4022 = vmatpush2.msra.mxu0 %v259
    %4023 = vmatprep.subr.mxu0 %v252
    %4024 = vmatpush2.msra.mxu0 %v251
    %4025 = vmatprep.subr.mxu0 %v244
    %4026 = vmatpush2.msra.mxu0 %v243
    %4027 = vmatprep.subr.mxu0 %v236
    %4028 = vmatpush2.msra.mxu0 %v235
    %4029 = vmatprep.subr.mxu0 %v228
    %4030 = vmatpush2.msra.mxu0 %v227
    %4031 = vmatprep.subr.mxu0 %v220
    %4032 = vmatpush2.msra.mxu0 %v219
    %4033 = vmatprep.subr.mxu0 %v212
    %4034 = vmatpush2.msra.mxu0 %v211
    %4035 = vmatprep.mubr.f32.mxu0 %v3828
    %4036 = vmatmul.mubr.f32.gmra.mxu0 %v3658
    %v4037 = vpop.f32.mrf.mxu0
    %v4038 = vadd.f32 0.0, %v4037
    %v4039 = vpop.f32.mrf.mxu0
    %v4040 = vadd.f32 0.0, %v4039
    %4041 = vdwg.mxu0
    %4042 = vmatprep.subr.mxu0 %v206
    %4043 = vmatpush1.msra.mxu0 %v205
    %4044 = vmatprep.subr.mxu0 %v198
    %4045 = vmatpush1.msra.mxu0 %v197
    %4046 = vmatprep.subr.mxu0 %v190
    %4047 = vmatpush1.msra.mxu0 %v189
    %4048 = vmatprep.subr.mxu0 %v182
    %4049 = vmatpush1.msra.mxu0 %v181
    %4050 = vmatprep.subr.mxu0 %v174
    %4051 = vmatpush1.msra.mxu0 %v173
    %4052 = vmatprep.subr.mxu0 %v166
    %4053 = vmatpush1.msra.mxu0 %v165
    %4054 = vmatprep.subr.mxu0 %v158
    %4055 = vmatpush1.msra.mxu0 %v157
    %4056 = vmatprep.subr.mxu0 %v150
    %4057 = vmatpush1.msra.mxu0 %v149
    %4058 = vmatprep.subr.mxu0 %v142
    %4059 = vmatpush1.msra.mxu0 %v141
    %4060 = vmatprep.subr.mxu0 %v134
    %4061 = vmatpush1.msra.mxu0 %v133
    %4062 = vmatprep.subr.mxu0 %v126
    %4063 = vmatpush1.msra.mxu0 %v125
    %4064 = vmatprep.subr.mxu0 %v118
    %4065 = vmatpush1.msra.mxu0 %v117
    %4066 = vmatprep.subr.mxu0 %v110
    %4067 = vmatpush1.msra.mxu0 %v109
    %4068 = vmatprep.subr.mxu0 %v102
    %4069 = vmatpush1.msra.mxu0 %v101
    %4070 = vmatprep.subr.mxu0 %v94
    %4071 = vmatpush1.msra.mxu0 %v93
    %4072 = vmatprep.subr.mxu0 %v86
    %4073 = vmatpush1.msra.mxu0 %v85
    %4074 = vmatprep.subr.mxu0 %v334
    %4075 = vmatpush2.msra.mxu0 %v333
    %4076 = vmatprep.subr.mxu0 %v326
    %4077 = vmatpush2.msra.mxu0 %v325
    %4078 = vmatprep.subr.mxu0 %v318
    %4079 = vmatpush2.msra.mxu0 %v317
    %4080 = vmatprep.subr.mxu0 %v310
    %4081 = vmatpush2.msra.mxu0 %v309
    %4082 = vmatprep.subr.mxu0 %v302
    %4083 = vmatpush2.msra.mxu0 %v301
    %4084 = vmatprep.subr.mxu0 %v294
    %4085 = vmatpush2.msra.mxu0 %v293
    %4086 = vmatprep.subr.mxu0 %v286
    %4087 = vmatpush2.msra.mxu0 %v285
    %4088 = vmatprep.subr.mxu0 %v278
    %4089 = vmatpush2.msra.mxu0 %v277
    %4090 = vmatprep.subr.mxu0 %v270
    %4091 = vmatpush2.msra.mxu0 %v269
    %4092 = vmatprep.subr.mxu0 %v262
    %4093 = vmatpush2.msra.mxu0 %v261
    %4094 = vmatprep.subr.mxu0 %v254
    %4095 = vmatpush2.msra.mxu0 %v253
    %4096 = vmatprep.subr.mxu0 %v246
    %4097 = vmatpush2.msra.mxu0 %v245
    %4098 = vmatprep.subr.mxu0 %v238
    %4099 = vmatpush2.msra.mxu0 %v237
    %4100 = vmatprep.subr.mxu0 %v230
    %4101 = vmatpush2.msra.mxu0 %v229
    %4102 = vmatprep.subr.mxu0 %v222
    %4103 = vmatpush2.msra.mxu0 %v221
    %4104 = vmatprep.subr.mxu0 %v214
    %4105 = vmatpush2.msra.mxu0 %v213
    %4106 = vmatprep.mubr.f32.mxu0 %v3828
    %4107 = vmatmul.mubr.f32.gmra.mxu0 %v3658
    %v4108 = vpop.f32.mrf.mxu0
    %v4109 = vadd.f32 0.0, %v4108
    %v4110 = vpop.f32.mrf.mxu0
    %v4111 = vadd.f32 0.0, %v4110
    %4112 = vdwg.mxu0
    %s4113 = scalar_lea.vmem [#allocation2], 224
    %v4114 = vld [vmem:[%s4113] sm:$0xff]
    %v4115 = vld [vmem:[%s4113 + $0x8] sm:$0xff]
    %v4116 = vld [vmem:[%s4113 + $0x10] sm:$0xff]
    %v4117 = vld [vmem:[%s4113 + $0x18] sm:$0xff]
    %v4118 = vadd.f32 %v4114, %v3896
    %v4119 = vadd.f32 %v4115, %v3898
    %v4120 = vadd.f32 %v4116, %v3967
    %v4121 = vadd.f32 %v4117, %v3969
    %v4122 = vtanh.pop %v4118
    %v4123 = vxor.u32 %v4119, 2147483648
    %v4124 = vmul.f32 %v4123, 1.442695
    %v4125 = vpow.pop %v4124
    %v4126 = vadd.f32 %v4125, 1.0
    %v4127 = vrcp.pop %v4126
    %v4128 = vmul.f32 1.0, %v4127
    %v4129 = vxor.u32 %v4120, 2147483648
    %v4130 = vmul.f32 %v4129, 1.442695
    %v4131 = vpow.pop %v4130
    %v4132 = vadd.f32 %v4131, 1.0
    %v4133 = vrcp.pop %v4132
    %v4134 = vmul.f32 1.0, %v4133
    %v4135 = vxor.u32 %v4121, 2147483648
    %v4136 = vmul.f32 %v4135, 1.442695
    %v4137 = vpow.pop %v4136
    %v4138 = vadd.f32 %v4137, 1.0
    %v4139 = vrcp.pop %v4138
    %v4140 = vmul.f32 1.0, %v4139
    %v4141 = vmul.f32 %v4122, %v4128
    %v4142 = vmul.f32 %v3656, %v4134
    %v4143 = vadd.f32 %v4141, %v4142
    %v4144 = vtanh.pop %v4143
    %v4145 = vmul.f32 %v4144, %v4140
    %4146 = vmatprep.subr.mxu0 %v396
    %4147 = vmatpush1.msra.mxu0 %v395
    %4148 = vmatprep.subr.mxu0 %v392
    %4149 = vmatpush1.msra.mxu0 %v391
    %4150 = vmatprep.subr.mxu0 %v388
    %4151 = vmatpush1.msra.mxu0 %v387
    %4152 = vmatprep.subr.mxu0 %v384
    %4153 = vmatpush1.msra.mxu0 %v383
    %4154 = vmatprep.subr.mxu0 %v380
    %4155 = vmatpush1.msra.mxu0 %v379
    %4156 = vmatprep.subr.mxu0 %v376
    %4157 = vmatpush1.msra.mxu0 %v375
    %4158 = vmatprep.subr.mxu0 %v372
    %4159 = vmatpush1.msra.mxu0 %v371
    %4160 = vmatprep.subr.mxu0 %v368
    %4161 = vmatpush1.msra.mxu0 %v367
    %4162 = vmatprep.subr.mxu0 %v364
    %4163 = vmatpush1.msra.mxu0 %v363
    %4164 = vmatprep.subr.mxu0 %v360
    %4165 = vmatpush1.msra.mxu0 %v359
    %4166 = vmatprep.subr.mxu0 %v356
    %4167 = vmatpush1.msra.mxu0 %v355
    %4168 = vmatprep.subr.mxu0 %v352
    %4169 = vmatpush1.msra.mxu0 %v351
    %4170 = vmatprep.subr.mxu0 %v348
    %4171 = vmatpush1.msra.mxu0 %v347
    %4172 = vmatprep.subr.mxu0 %v344
    %4173 = vmatpush1.msra.mxu0 %v343
    %4174 = vmatprep.subr.mxu0 %v340
    %4175 = vmatpush1.msra.mxu0 %v339
    %4176 = vmatprep.subr.mxu0 %v336
    %4177 = vmatpush1.msra.mxu0 %v335
    %4178 = vmatprep.subr.mxu0 0.0
    %4179 = vmatpush2.msra.mxu0 0.0
    %4180 = vmatprep.subr.mxu0 0.0
    %4181 = vmatpush2.msra.mxu0 0.0
    %4182 = vmatprep.subr.mxu0 0.0
    %4183 = vmatpush2.msra.mxu0 0.0
    %4184 = vmatprep.subr.mxu0 0.0
    %4185 = vmatpush2.msra.mxu0 0.0
    %4186 = vmatprep.subr.mxu0 0.0
    %4187 = vmatpush2.msra.mxu0 0.0
    %4188 = vmatprep.subr.mxu0 0.0
    %4189 = vmatpush2.msra.mxu0 0.0
    %4190 = vmatprep.subr.mxu0 0.0
    %4191 = vmatpush2.msra.mxu0 0.0
    %4192 = vmatprep.subr.mxu0 0.0
    %4193 = vmatpush2.msra.mxu0 0.0
    %4194 = vmatprep.subr.mxu0 0.0
    %4195 = vmatpush2.msra.mxu0 0.0
    %4196 = vmatprep.subr.mxu0 0.0
    %4197 = vmatpush2.msra.mxu0 0.0
    %4198 = vmatprep.subr.mxu0 0.0
    %4199 = vmatpush2.msra.mxu0 0.0
    %4200 = vmatprep.subr.mxu0 0.0
    %4201 = vmatpush2.msra.mxu0 0.0
    %4202 = vmatprep.subr.mxu0 0.0
    %4203 = vmatpush2.msra.mxu0 0.0
    %4204 = vmatprep.subr.mxu0 0.0
    %4205 = vmatpush2.msra.mxu0 0.0
    %4206 = vmatprep.subr.mxu0 0.0
    %4207 = vmatpush2.msra.mxu0 0.0
    %4208 = vmatprep.subr.mxu0 0.0
    %4209 = vmatpush2.msra.mxu0 0.0
    %4210 = vmatprep.mubr.f32.mxu0 0.0
    %4211 = vmatmul.mubr.f32.gmra.mxu0 %v4145
    %v4212 = vpop.f32.mrf.mxu0
    %v4213 = vadd.f32 %v4038, %v4212
    %v4214 = vpop.f32.mrf.mxu0
    %v4215 = vadd.f32 %v4040, %v4214
    %4216 = vdwg.mxu0
    %4217 = vmatprep.subr.mxu0 %v398
    %4218 = vmatpush1.msra.mxu0 %v397
    %4219 = vmatprep.subr.mxu0 %v394
    %4220 = vmatpush1.msra.mxu0 %v393
    %4221 = vmatprep.subr.mxu0 %v390
    %4222 = vmatpush1.msra.mxu0 %v389
    %4223 = vmatprep.subr.mxu0 %v386
    %4224 = vmatpush1.msra.mxu0 %v385
    %4225 = vmatprep.subr.mxu0 %v382
    %4226 = vmatpush1.msra.mxu0 %v381
    %4227 = vmatprep.subr.mxu0 %v378
    %4228 = vmatpush1.msra.mxu0 %v377
    %4229 = vmatprep.subr.mxu0 %v374
    %4230 = vmatpush1.msra.mxu0 %v373
    %4231 = vmatprep.subr.mxu0 %v370
    %4232 = vmatpush1.msra.mxu0 %v369
    %4233 = vmatprep.subr.mxu0 %v366
    %4234 = vmatpush1.msra.mxu0 %v365
    %4235 = vmatprep.subr.mxu0 %v362
    %4236 = vmatpush1.msra.mxu0 %v361
    %4237 = vmatprep.subr.mxu0 %v358
    %4238 = vmatpush1.msra.mxu0 %v357
    %4239 = vmatprep.subr.mxu0 %v354
    %4240 = vmatpush1.msra.mxu0 %v353
    %4241 = vmatprep.subr.mxu0 %v350
    %4242 = vmatpush1.msra.mxu0 %v349
    %4243 = vmatprep.subr.mxu0 %v346
    %4244 = vmatpush1.msra.mxu0 %v345
    %4245 = vmatprep.subr.mxu0 %v342
    %4246 = vmatpush1.msra.mxu0 %v341
    %4247 = vmatprep.subr.mxu0 %v338
    %4248 = vmatpush1.msra.mxu0 %v337
    %4249 = vmatprep.subr.mxu0 0.0
    %4250 = vmatpush2.msra.mxu0 0.0
    %4251 = vmatprep.subr.mxu0 0.0
    %4252 = vmatpush2.msra.mxu0 0.0
    %4253 = vmatprep.subr.mxu0 0.0
    %4254 = vmatpush2.msra.mxu0 0.0
    %4255 = vmatprep.subr.mxu0 0.0
    %4256 = vmatpush2.msra.mxu0 0.0
    %4257 = vmatprep.subr.mxu0 0.0
    %4258 = vmatpush2.msra.mxu0 0.0
    %4259 = vmatprep.subr.mxu0 0.0
    %4260 = vmatpush2.msra.mxu0 0.0
    %4261 = vmatprep.subr.mxu0 0.0
    %4262 = vmatpush2.msra.mxu0 0.0
    %4263 = vmatprep.subr.mxu0 0.0
    %4264 = vmatpush2.msra.mxu0 0.0
    %4265 = vmatprep.subr.mxu0 0.0
    %4266 = vmatpush2.msra.mxu0 0.0
    %4267 = vmatprep.subr.mxu0 0.0
    %4268 = vmatpush2.msra.mxu0 0.0
    %4269 = vmatprep.subr.mxu0 0.0
    %4270 = vmatpush2.msra.mxu0 0.0
    %4271 = vmatprep.subr.mxu0 0.0
    %4272 = vmatpush2.msra.mxu0 0.0
    %4273 = vmatprep.subr.mxu0 0.0
    %4274 = vmatpush2.msra.mxu0 0.0
    %4275 = vmatprep.subr.mxu0 0.0
    %4276 = vmatpush2.msra.mxu0 0.0
    %4277 = vmatprep.subr.mxu0 0.0
    %4278 = vmatpush2.msra.mxu0 0.0
    %4279 = vmatprep.subr.mxu0 0.0
    %4280 = vmatpush2.msra.mxu0 0.0
    %4281 = vmatprep.mubr.f32.mxu0 0.0
    %4282 = vmatmul.mubr.f32.gmra.mxu0 %v4145
    %v4283 = vpop.f32.mrf.mxu0
    %v4284 = vadd.f32 %v4109, %v4283
    %v4285 = vpop.f32.mrf.mxu0
    %v4286 = vadd.f32 %v4111, %v4285
    %4287 = vdwg.mxu0
    %v4288 = vadd.f32 %v4213, %v862
    %v4289 = vadd.f32 %v4215, %v866
    %v4290 = vadd.f32 %v4284, %v870
    %v4291 = vadd.f32 %v4286, %v874
    %v4292 = vtanh.pop %v4288
    %v4293 = vxor.u32 %v4289, 2147483648
    %v4294 = vmul.f32 %v4293, 1.442695
    %v4295 = vpow.pop %v4294
    %v4296 = vadd.f32 %v4295, 1.0
    %v4297 = vrcp.pop %v4296
    %v4298 = vmul.f32 1.0, %v4297
    %v4299 = vxor.u32 %v4290, 2147483648
    %v4300 = vmul.f32 %v4299, 1.442695
    %v4301 = vpow.pop %v4300
    %v4302 = vadd.f32 %v4301, 1.0
    %v4303 = vrcp.pop %v4302
    %v4304 = vmul.f32 1.0, %v4303
    %v4305 = vxor.u32 %v4291, 2147483648
    %v4306 = vmul.f32 %v4305, 1.442695
    %v4307 = vpow.pop %v4306
    %v4308 = vadd.f32 %v4307, 1.0
    %v4309 = vrcp.pop %v4308
    %v4310 = vmul.f32 1.0, %v4309
    %v4311 = vmul.f32 %v4292, %v4298
    %v4312 = vmul.f32 %v3826, %v4304
    %v4313 = vadd.f32 %v4311, %v4312
    %v4314 = vtanh.pop %v4313
    %v4315 = vmul.f32 %v4314, %v4310
    %v4316 = vld [vmem:[#allocation8] sm:$0xff]
    %v4317 = vld [vmem:[#allocation8 + $0x8] sm:$0xff]
    %v4318 = vld [vmem:[#allocation8 + $0x10] sm:$0xff]
    %v4319 = vld [vmem:[#allocation8 + $0x18] sm:$0xff]
    %v4320 = vld [vmem:[#allocation8 + $0x20] sm:$0xff]
    %v4321 = vld [vmem:[#allocation8 + $0x28] sm:$0xff]
    %v4322 = vld [vmem:[#allocation8 + $0x30] sm:$0xff]
    %v4323 = vld [vmem:[#allocation8 + $0x38] sm:$0xff]
    %v4324 = vld [vmem:[#allocation8 + $0x40] sm:$0xff]
    %v4325 = vld [vmem:[#allocation8 + $0x48] sm:$0xff]
    %v4326 = vld [vmem:[#allocation8 + $0x50] sm:$0xff]
    %v4327 = vld [vmem:[#allocation8 + $0x58] sm:$0xff]
    %v4328 = vld [vmem:[#allocation8 + $0x60] sm:$0xff]
    %v4329 = vld [vmem:[#allocation8 + $0x68] sm:$0xff]
    %v4330 = vld [vmem:[#allocation8 + $0x70] sm:$0xff]
    %v4331 = vld [vmem:[#allocation8 + $0x78] sm:$0xff]
    %v4332 = vld [vmem:[%s5] sm:$0x1]
    %v4334 = vlaneseq
    %v4335 = vshrl.u32 %v4334, 7
    %v4336 = vsub.s32 0, %v4335
    %v4337 = vrot.slane %v4332, %v4336
    %4339 = vmatprep.subr.mxu0 0.0
    %4340 = vmatpush1.msra.mxu0 %v4331
    %4341 = vmatprep.subr.mxu0 0.0
    %4342 = vmatpush1.msra.mxu0 %v4330
    %4343 = vmatprep.subr.mxu0 0.0
    %4344 = vmatpush1.msra.mxu0 %v4329
    %4345 = vmatprep.subr.mxu0 0.0
    %4346 = vmatpush1.msra.mxu0 %v4328
    %4347 = vmatprep.subr.mxu0 0.0
    %4348 = vmatpush1.msra.mxu0 %v4327
    %4349 = vmatprep.subr.mxu0 0.0
    %4350 = vmatpush1.msra.mxu0 %v4326
    %4351 = vmatprep.subr.mxu0 0.0
    %4352 = vmatpush1.msra.mxu0 %v4325
    %4353 = vmatprep.subr.mxu0 0.0
    %4354 = vmatpush1.msra.mxu0 %v4324
    %4355 = vmatprep.subr.mxu0 0.0
    %4356 = vmatpush1.msra.mxu0 %v4323
    %4357 = vmatprep.subr.mxu0 0.0
    %4358 = vmatpush1.msra.mxu0 %v4322
    %4359 = vmatprep.subr.mxu0 0.0
    %4360 = vmatpush1.msra.mxu0 %v4321
    %4361 = vmatprep.subr.mxu0 0.0
    %4362 = vmatpush1.msra.mxu0 %v4320
    %4363 = vmatprep.subr.mxu0 0.0
    %4364 = vmatpush1.msra.mxu0 %v4319
    %4365 = vmatprep.subr.mxu0 0.0
    %4366 = vmatpush1.msra.mxu0 %v4318
    %4367 = vmatprep.subr.mxu0 0.0
    %4368 = vmatpush1.msra.mxu0 %v4317
    %4369 = vmatprep.subr.mxu0 0.0
    %4370 = vmatpush1.msra.mxu0 %v4316
    %4371 = vmatprep.subr.mxu0 0.0
    %4372 = vmatpush2.msra.mxu0 0.0
    %4373 = vmatprep.subr.mxu0 0.0
    %4374 = vmatpush2.msra.mxu0 0.0
    %4375 = vmatprep.subr.mxu0 0.0
    %4376 = vmatpush2.msra.mxu0 0.0
    %4377 = vmatprep.subr.mxu0 0.0
    %4378 = vmatpush2.msra.mxu0 0.0
    %4379 = vmatprep.subr.mxu0 0.0
    %4380 = vmatpush2.msra.mxu0 0.0
    %4381 = vmatprep.subr.mxu0 0.0
    %4382 = vmatpush2.msra.mxu0 0.0
    %4383 = vmatprep.subr.mxu0 0.0
    %4384 = vmatpush2.msra.mxu0 0.0
    %4385 = vmatprep.subr.mxu0 0.0
    %4386 = vmatpush2.msra.mxu0 0.0
    %4387 = vmatprep.subr.mxu0 0.0
    %4388 = vmatpush2.msra.mxu0 0.0
    %4389 = vmatprep.subr.mxu0 0.0
    %4390 = vmatpush2.msra.mxu0 0.0
    %4391 = vmatprep.subr.mxu0 0.0
    %4392 = vmatpush2.msra.mxu0 0.0
    %4393 = vmatprep.subr.mxu0 0.0
    %4394 = vmatpush2.msra.mxu0 0.0
    %4395 = vmatprep.subr.mxu0 0.0
    %4396 = vmatpush2.msra.mxu0 0.0
    %4397 = vmatprep.subr.mxu0 0.0
    %4398 = vmatpush2.msra.mxu0 0.0
    %4399 = vmatprep.subr.mxu0 0.0
    %4400 = vmatpush2.msra.mxu0 0.0
    %4401 = vmatprep.subr.mxu0 0.0
    %4402 = vmatpush2.msra.mxu0 0.0
    %4403 = vmatprep.mubr.f32.mxu0 0.0
    %4404 = vmatmul.mubr.f32.gmra.mxu0 %v4315
    %v4405 = vpop.f32.mrf.mxu0
    %v4406 = vadd.f32 %v4337, %v4405
    %v4407 = vpop.f32.mrf.mxu0
    %4408 = vdwg.mxu0
    %4409 = vst [vmem:[#allocation10] sm:$0xff] %v4406
    // Predicated region
    $region42: #{tpu_custom_call.1} parent=1 // pred_check
      _
    $region43: #{tpu_custom_call.1} parent=1 // pred_check_branch
      %4411 = sbr.rel (0) target = $region45
    $region44: #{tpu_custom_call.1} parent=1 // pred_region
      %s4413 = ssub.s32 128, 128
      %4414 = vsyncadd [#allocation4], %s4413
      %s4416 = sshll.u32 [#allocation10], 4
      %s4417 = int_to_ptr.vmem [resolvable:$true] %s4416
      %4419 = dma.vmem_to_hbm [thread:$0]  %s4417, 128, %s6, [#allocation4]
    $region45: #{tpu_custom_call.1} parent=1 // pred_fallthru
      _
    // Predicated region
    $region46: #{tpu_custom_call.1} parent=1 // pred_check
      _
    $region47: #{tpu_custom_call.1} parent=1 // pred_check_branch
      %4421 = sbr.rel (0) target = $region49
    $region48: #{tpu_custom_call.1} parent=1 // pred_region
      %4422 = dma.done [#allocation4], 128
    $region49: #{tpu_custom_call.1} parent=1 // pred_fallthru
      _
    %4423 = vsyncpa [#allocation3], 1
    %4424 = vsyncpa [#allocation6], 1
    %4425 = vsyncpa [#allocation9], 1
    %4426 = vsyncpa [#allocation4], 1

</llo_original>
